<compile_context>
chip_gen: v5e
topology: v5e:2x2
jax: 0.10.0
libtpu: 0.0.40
codegen_flags: <defaults>
</compile_context>

<pallas_src>
import functools
import math

import jax
import jax.numpy as jnp
import numpy as np
from jax.experimental import pallas as pl
from jax.experimental.pallas import tpu as pltpu


def _round_up(x, m):
    return ((x + m - 1) // m) * m


def _pick_tm(M, tm):
    """Row-tile choice: multiples of 16 (bf16 sublane packing); >=2 grid steps for
    larger problems so the 'parallel' axis can shard across v7x's 2 TensorCores."""
    Mr = _round_up(max(M, 1), 16)
    TM = min(tm, Mr)
    if TM == Mr and Mr > 256:
        TM = _round_up((Mr + 1) // 2, 16)
    Mp = _round_up(M, TM)
    return TM, Mp


# ----------------------------- Pallas kernels ------------------------------

def _gemm_bias_act_kernel(x_ref, w_ref, b_ref, o_ref, *, relu):
    acc = jnp.dot(x_ref[...], w_ref[...], preferred_element_type=jnp.float32)
    acc = acc + b_ref[...]
    if relu:
        acc = jnp.maximum(acc, 0.0)
    o_ref[...] = acc.astype(o_ref.dtype)


def pallas_matmul_bias(x, w, b, *, relu, out_dtype, tm=1024):
    """y = act(x @ w + b).  x:[M,K] bf16 (M-tiled, parallel grid), w:[K,N] bf16 and
    b:[N] f32 stay VMEM-resident (constant index maps)."""
    M, K = x.shape
    N = w.shape[1]
    TM, Mp = _pick_tm(M, tm)
    if Mp != M:
        x = jnp.pad(x, ((0, Mp - M), (0, 0)))
    grid = (Mp // TM,)
    cost = pl.CostEstimate(
        flops=2 * Mp * K * N,
        transcendentals=0,
        bytes_accessed=Mp * K * x.dtype.itemsize
        + K * N * w.dtype.itemsize
        + N * 4
        + Mp * N * jnp.dtype(out_dtype).itemsize,
    )
    out = pl.pallas_call(
        functools.partial(_gemm_bias_act_kernel, relu=relu),
        out_shape=jax.ShapeDtypeStruct((Mp, N), out_dtype),
        grid=grid,
        in_specs=[
            pl.BlockSpec((TM, K), lambda i: (i, 0)),
            pl.BlockSpec((K, N), lambda i: (0, 0)),
            pl.BlockSpec((1, N), lambda i: (0, 0)),
        ],
        out_specs=pl.BlockSpec((TM, N), lambda i: (i, 0)),
        compiler_params=pltpu.CompilerParams(
            dimension_semantics=("parallel",),
            vmem_limit_bytes=32 * 1024 * 1024,
        ),
        cost_estimate=cost,
    )(x, w, b.reshape(1, N))
    return out if Mp == M else out[:M]


def _fused_head_kernel(x_ref, w1_ref, b1_ref, w2q_ref, b2q_ref, w2i_ref, b2i_ref,
                       q_ref, ilogit_ref, ilogp_ref, *, n_actions, hidden):
    # hidden = relu(flat @ [q1|i1] + b1), fed straight into the second GEMMs
    # (no scratch store/reload; bf16 operands, f32 MXU accumulation).
    h = jnp.dot(x_ref[...], w1_ref[...], preferred_element_type=jnp.float32)
    h = jnp.maximum(h + b1_ref[...], 0.0).astype(jnp.bfloat16)
    hq = h[:, :hidden]
    hi = h[:, hidden:]
    zq = jnp.dot(hq, w2q_ref[...], preferred_element_type=jnp.float32) + b2q_ref[...]
    zi = jnp.dot(hi, w2i_ref[...], preferred_element_type=jnp.float32) + b2i_ref[...]
    q_ref[...] = zq
    ilogit_ref[...] = zi
    # log_softmax over the n_actions real columns (lane-padded columns masked off).
    col = jax.lax.broadcasted_iota(jnp.int32, zi.shape, 1)
    neg = jnp.finfo(jnp.float32).min
    zm = jnp.where(col < n_actions, zi, neg)
    m = jnp.max(zm, axis=1, keepdims=True)
    lse = jnp.log(jnp.sum(jnp.exp(zm - m), axis=1, keepdims=True))
    ilogp_ref[...] = zi - (m + lse)


def pallas_fused_heads(flat, w1, b1, w2q, b2q, w2i, b2i, *, n_actions, pad=128, tm=1024):
    """Fused q/i heads: flat:[M,1024] bf16 -> (q_out, i_logits, i_logp) each [M,n_actions] f32."""
    M, K = flat.shape            # K = 1024
    Htot = w1.shape[1]           # 1024 = 512 (q head) + 512 (i head)
    hidden = Htot // 2
    TM, Mp = _pick_tm(M, tm)
    if Mp != M:
        flat = jnp.pad(flat, ((0, Mp - M), (0, 0)))
    grid = (Mp // TM,)
    cost = pl.CostEstimate(
        flops=2 * Mp * K * Htot + 2 * 2 * Mp * hidden * pad,
        transcendentals=Mp * (pad + 1),
        bytes_accessed=Mp * K * flat.dtype.itemsize
        + int(w1.size) * w1.dtype.itemsize
        + int(w2q.size) * w2q.dtype.itemsize
        + int(w2i.size) * w2i.dtype.itemsize
        + 3 * Mp * pad * 4,
    )
    out_spec = pl.BlockSpec((TM, pad), lambda i: (i, 0))
    q, ilogit, ilogp = pl.pallas_call(
        functools.partial(_fused_head_kernel, n_actions=n_actions, hidden=hidden),
        out_shape=(
            jax.ShapeDtypeStruct((Mp, pad), jnp.float32),
            jax.ShapeDtypeStruct((Mp, pad), jnp.float32),
            jax.ShapeDtypeStruct((Mp, pad), jnp.float32),
        ),
        grid=grid,
        in_specs=[
            pl.BlockSpec((TM, K), lambda i: (i, 0)),
            pl.BlockSpec((K, Htot), lambda i: (0, 0)),
            pl.BlockSpec((1, Htot), lambda i: (0, 0)),
            pl.BlockSpec((hidden, pad), lambda i: (0, 0)),
            pl.BlockSpec((1, pad), lambda i: (0, 0)),
            pl.BlockSpec((hidden, pad), lambda i: (0, 0)),
            pl.BlockSpec((1, pad), lambda i: (0, 0)),
        ],
        out_specs=(out_spec, out_spec, out_spec),
        compiler_params=pltpu.CompilerParams(
            dimension_semantics=("parallel",),
            vmem_limit_bytes=32 * 1024 * 1024,
        ),
        cost_estimate=cost,
    )(flat, w1, b1, w2q, b2q, w2i, b2i)
    return q[:M, :n_actions], ilogit[:M, :n_actions], ilogp[:M, :n_actions]


# ------------------------------ conv wrapper --------------------------------

def conv2d_relu_pallas(x_nhwc, wmat, b, *, k, stride):
    """VALID conv + ReLU in NHWC: XLA patch gather (pure data movement) + Pallas GEMM."""
    B, H, W, Cin = x_nhwc.shape
    Cout = wmat.shape[1]
    OH = (H - k) // stride + 1
    OW = (W - k) // stride + 1
    # Patch features ordered (cin, kh, kw), matching wmat = w_oihw.reshape(Cout,-1).T.
    patches = jax.lax.conv_general_dilated_patches(
        x_nhwc, (k, k), (stride, stride), "VALID",
        dimension_numbers=("NHWC", "HWIO", "NHWC"))          # [B, OH, OW, Cin*k*k]
    cols = patches.reshape(B * OH * OW, Cin * k * k)
    y = pallas_matmul_bias(cols, wmat, b, relu=True, out_dtype=jnp.bfloat16)
    return y.reshape(B, OH, OW, Cout)


# --------------------------- parameter creation -----------------------------

def xavier_uniform(key, shape):
    # shape = (out_ch, in_ch, kh, kw)
    fan_in = shape[1] * shape[2] * shape[3]
    fan_out = shape[0] * shape[2] * shape[3]
    bound = math.sqrt(6.0 / (fan_in + fan_out))
    return jax.random.uniform(key, shape, jnp.float32, -bound, bound)


def linear_init(key, out_f, in_f):
    kw, kb = jax.random.split(key)
    bound = 1.0 / math.sqrt(in_f)
    W = jax.random.uniform(kw, (out_f, in_f), jnp.float32, -bound, bound)
    b = jax.random.uniform(kb, (out_f,), jnp.float32, -bound, bound)
    return W, b


def make_params(key, in_channels=3, action_space=15, hidden_size=64):
    keys = jax.random.split(key, 8)
    params = {}
    params["conv1_w"] = xavier_uniform(keys[0], (32, in_channels, 8, 8))
    params["conv1_b"] = jnp.zeros((32,), jnp.float32)
    params["conv2_w"] = xavier_uniform(keys[1], (hidden_size, 32, 4, 4))
    params["conv2_b"] = jnp.zeros((hidden_size,), jnp.float32)
    params["conv3_w"] = xavier_uniform(keys[2], (64, hidden_size, 3, 3))
    params["conv3_b"] = jnp.zeros((64,), jnp.float32)
    params["q1_w"], params["q1_b"] = linear_init(keys[3], 512, 1024)
    params["q2_w"], params["q2_b"] = linear_init(keys[4], action_space, 512)
    params["i1_w"], params["i1_b"] = linear_init(keys[5], 512, 1024)
    params["i2_w"], params["i2_b"] = linear_init(keys[6], action_space, 512)
    return params


def prepare_params(params, *, action_space=15, pad=128):
    """One-time conversion to Pallas-friendly layouts:
       - conv weights as [Cin*K*K, Cout] bf16 GEMM matrices (conv1 Cin zero-padded
         3 -> 4 so its im2col K = 256);
       - q1/i1 input columns permuted from NCHW-flatten to NHWC-flatten order and
         concatenated into one [1024, 1024] matrix;
       - q2/i2 stored as two separate [512, 128] lane-padded matrices (two half-K
         GEMMs instead of a zero-padded block-diagonal GEMM)."""
    prep = {}
    for name in ("conv1", "conv2", "conv3"):
        w = params[name + "_w"]
        cout, cin = w.shape[0], w.shape[1]
        if name == "conv1":
            cin_p = _round_up(cin, 4)          # 3 -> 4: im2col K = 4*8*8 = 256
            if cin_p != cin:
                w = jnp.pad(w, ((0, 0), (0, cin_p - cin), (0, 0), (0, 0)))
        prep[name + "_w"] = jnp.asarray(w.reshape(cout, -1).T, jnp.bfloat16)
        prep[name + "_b"] = params[name + "_b"].astype(jnp.float32)

    # conv3 output is [B, 4, 4, 64] NHWC; PyTorch flattens NCHW in (c, h, w) order.
    C3, H3, W3 = 64, 4, 4
    perm = np.arange(C3 * H3 * W3).reshape(C3, H3, W3).transpose(1, 2, 0).reshape(-1)
    q1p = params["q1_w"][:, perm]                       # [512, 1024]
    i1p = params["i1_w"][:, perm]                       # [512, 1024]
    w1 = jnp.concatenate([q1p.T, i1p.T], axis=1)        # [1024, 1024]
    b1 = jnp.concatenate([params["q1_b"], params["i1_b"]])   # [1024]

    A = action_space
    w2q = jnp.zeros((512, pad), jnp.float32).at[:, :A].set(params["q2_w"].T)
    b2q = jnp.zeros((pad,), jnp.float32).at[:A].set(params["q2_b"])
    w2i = jnp.zeros((512, pad), jnp.float32).at[:, :A].set(params["i2_w"].T)
    b2i = jnp.zeros((pad,), jnp.float32).at[:A].set(params["i2_b"])

    prep["head_w1"] = w1.astype(jnp.bfloat16)
    prep["head_b1"] = b1.reshape(1, -1).astype(jnp.float32)
    prep["head_w2q"] = w2q.astype(jnp.bfloat16)
    prep["head_b2q"] = b2q.reshape(1, -1)
    prep["head_w2i"] = w2i.astype(jnp.bfloat16)
    prep["head_b2i"] = b2i.reshape(1, -1)
    return prep


# ------------------------------ forward pass --------------------------------

def bcq_encoder_forward(x_nchw, prep, *, action_space=15):
    """Returns (q2(q), log_softmax(i, dim=1), i) — same as the PyTorch module."""
    x = jnp.transpose(x_nchw, (0, 2, 3, 1)).astype(jnp.bfloat16)    # NHWC, once
    cin_p = prep["conv1_w"].shape[0] // (8 * 8)                     # static
    if x.shape[-1] < cin_p:
        x = jnp.pad(x, ((0, 0), (0, 0), (0, 0), (0, cin_p - x.shape[-1])))
    c = conv2d_relu_pallas(x, prep["conv1_w"], prep["conv1_b"], k=8, stride=4)
    c = conv2d_relu_pallas(c, prep["conv2_w"], prep["conv2_b"], k=4, stride=2)
    c = conv2d_relu_pallas(c, prep["conv3_w"], prep["conv3_b"], k=3, stride=1)
    flat = c.reshape(c.shape[0], -1)   # NHWC flatten; head weights pre-permuted to match
    q_out, i_logits, i_logp = pallas_fused_heads(
        flat, prep["head_w1"], prep["head_b1"],
        prep["head_w2q"], prep["head_b2q"], prep["head_w2i"], prep["head_b2i"],
        n_actions=action_space)
    return q_out, i_logp, i_logits


# ------------------------------ pure-JAX reference ---------------------------

def bcq_encoder_reference(x, params):
    def conv(h, w, b, s):
        out = jax.lax.conv_general_dilated(
            h, w, (s, s), "VALID", dimension_numbers=("NCHW", "OIHW", "NCHW"))
        return jax.nn.relu(out + b[None, :, None, None])

    c = conv(x, params["conv1_w"], params["conv1_b"], 4)
    c = conv(c, params["conv2_w"], params["conv2_b"], 2)
    c = conv(c, params["conv3_w"], params["conv3_b"], 1)
    flat = c.reshape(-1, 1024)
    q = jax.nn.relu(flat @ params["q1_w"].T + params["q1_b"])
    q_out = q @ params["q2_w"].T + params["q2_b"]
    i_h = jax.nn.relu(flat @ params["i1_w"].T + params["i1_b"])
    i_logits = i_h @ params["i2_w"].T + params["i2_b"]
    return q_out, jax.nn.log_softmax(i_logits, axis=1), i_logits


# ----------------------------------- main ------------------------------------

if __name__ == "__main__":
    key = jax.random.PRNGKey(0)
    k_x, k_p = jax.random.split(key)

    B, C, H, W = 2, 3, 64, 64   # 64x64 spatial is required for the 1024-d flatten
    x = jax.random.normal(k_x, (B, C, H, W), jnp.float32)
    params = make_params(k_p, in_channels=C, action_space=15, hidden_size=64)
    prep = prepare_params(params, action_space=15)

    fwd = jax.jit(functools.partial(bcq_encoder_forward, action_space=15))
    q_out, i_logp, i_logits = fwd(x, prep)
    jax.block_until_ready((q_out, i_logp, i_logits))

    q_ref, logp_ref, i_ref = bcq_encoder_reference(x, params)
    assert q_out.shape == (B, 15) and i_logp.shape == (B, 15) and i_logits.shape == (B, 15)
    # bf16 GEMM operands (f32 accumulation) -> slightly looser tolerance vs f32 reference.
    assert np.allclose(np.asarray(q_out), np.asarray(q_ref), atol=2e-2, rtol=2e-2)
    assert np.allclose(np.asarray(i_logits), np.asarray(i_ref), atol=2e-2, rtol=2e-2)
    assert np.allclose(np.asarray(i_logp), np.asarray(logp_ref), atol=2e-2, rtol=2e-2)

    print("KERNEL_OK")
</pallas_src>

<mosaic_0001>
module attributes {stable_mosaic.version = 11 : i64} {
  func.func @_gemm_bias_act_kernel(%arg0: i32, %arg1: memref<240x256xbf16, #tpu.memory_space<vmem>>, %arg2: memref<256x32xbf16, #tpu.memory_space<vmem>>, %arg3: memref<1x32xf32, #tpu.memory_space<vmem>>, %arg4: memref<240x32xbf16, #tpu.memory_space<vmem>>) attributes {dimension_semantics = [#tpu.dimension_semantics<parallel>], iteration_bounds = array<i64: 2>, scalar_prefetch = 0 : i64, scratch_operands = 0 : i64, tpu.core_type = #tpu.core_type<tc>, window_params = [{transform_indices = @transform_0, window_bounds = array<i64: 240, 256>}, {pipeline_mode = #tpu.pipeline_mode<synchronous>, transform_indices = @transform_1, window_bounds = array<i64: 256, 32>}, {pipeline_mode = #tpu.pipeline_mode<synchronous>, transform_indices = @transform_2, window_bounds = array<i64: 1, 32>}, {transform_indices = @transform_3, window_bounds = array<i64: 240, 32>}]} {
    %c0 = arith.constant 0 : index
    %c0_0 = arith.constant 0 : index
    %0 = vector.load %arg1[%c0, %c0_0] : memref<240x256xbf16, #tpu.memory_space<vmem>>, vector<240x256xbf16>
    %c0_1 = arith.constant 0 : index
    %c0_2 = arith.constant 0 : index
    %1 = vector.load %arg2[%c0_1, %c0_2] : memref<256x32xbf16, #tpu.memory_space<vmem>>, vector<256x32xbf16>
    %cst = arith.constant dense<0.000000e+00> : vector<240x32xf32>
    %2 = tpu.matmul %0, %1, %cst {dimension_numbers = #tpu.dot_dimension_numbers<[1], [0], [0], [1], [0, 0, 1, 1], [], []>} : vector<240x256xbf16>, vector<256x32xbf16>, vector<240x32xf32> -> vector<240x32xf32>
    %c0_3 = arith.constant 0 : index
    %c0_4 = arith.constant 0 : index
    %3 = vector.load %arg3[%c0_3, %c0_4] : memref<1x32xf32, #tpu.memory_space<vmem>>, vector<1x32xf32>
    %4 = vector.broadcast %3 : vector<1x32xf32> to vector<240x32xf32>
    %5 = arith.addf %2, %4 : vector<240x32xf32>
    %cst_5 = arith.constant 0.000000e+00 : f32
    %6 = vector.broadcast %cst_5 : f32 to vector<240x32xf32>
    %7 = arith.maximumf %5, %6 : vector<240x32xf32>
    %8 = arith.truncf %7 : vector<240x32xf32> to vector<240x32xbf16>
    %c0_6 = arith.constant 0 : index
    %c0_7 = arith.constant 0 : index
    %9 = vector.load %arg4[%c0_6, %c0_7] : memref<240x32xbf16, #tpu.memory_space<vmem>>, vector<240x32xbf16>
    tpu.vector_store %arg4[%c0_6, %c0_7], %8 {strides = array<i32>} : memref<240x32xbf16, #tpu.memory_space<vmem>>, vector<240x32xbf16>,
    return
  }
  func.func @transform_0(%arg0: i32) -> (i32, i32) {
    %c0_i32 = arith.constant 0 : i32
    %c0_i32_0 = arith.constant 0 : i32
    return %arg0, %c0_i32 : i32, i32
  }
  func.func @transform_1(%arg0: i32) -> (i32, i32) {
    %c0_i32 = arith.constant 0 : i32
    %c0_i32_0 = arith.constant 0 : i32
    %c0_i32_1 = arith.constant 0 : i32
    return %c0_i32, %c0_i32_0 : i32, i32
  }
  func.func @transform_2(%arg0: i32) -> (i32, i32) {
    %c0_i32 = arith.constant 0 : i32
    %c0_i32_0 = arith.constant 0 : i32
    %c0_i32_1 = arith.constant 0 : i32
    return %c0_i32, %c0_i32_0 : i32, i32
  }
  func.func @transform_3(%arg0: i32) -> (i32, i32) {
    %c0_i32 = arith.constant 0 : i32
    %c0_i32_0 = arith.constant 0 : i32
    return %arg0, %c0_i32 : i32, i32
  }
}

module attributes {stable_mosaic.version = 11 : i64} {
  func.func @_gemm_bias_act_kernel(%arg0: i32, %arg1: memref<80x512xbf16, #tpu.memory_space<vmem>>, %arg2: memref<512x64xbf16, #tpu.memory_space<vmem>>, %arg3: memref<1x64xf32, #tpu.memory_space<vmem>>, %arg4: memref<80x64xbf16, #tpu.memory_space<vmem>>) attributes {dimension_semantics = [#tpu.dimension_semantics<parallel>], iteration_bounds = array<i64: 1>, scalar_prefetch = 0 : i64, scratch_operands = 0 : i64, tpu.core_type = #tpu.core_type<tc>, window_params = [{transform_indices = @transform_0, window_bounds = array<i64: 80, 512>}, {pipeline_mode = #tpu.pipeline_mode<synchronous>, transform_indices = @transform_1, window_bounds = array<i64: 512, 64>}, {pipeline_mode = #tpu.pipeline_mode<synchronous>, transform_indices = @transform_2, window_bounds = array<i64: 1, 64>}, {transform_indices = @transform_3, window_bounds = array<i64: 80, 64>}]} {
    %c0 = arith.constant 0 : index
    %c0_0 = arith.constant 0 : index
    %0 = vector.load %arg1[%c0, %c0_0] : memref<80x512xbf16, #tpu.memory_space<vmem>>, vector<80x512xbf16>
    %c0_1 = arith.constant 0 : index
    %c0_2 = arith.constant 0 : index
    %1 = vector.load %arg2[%c0_1, %c0_2] : memref<512x64xbf16, #tpu.memory_space<vmem>>, vector<512x64xbf16>
    %cst = arith.constant dense<0.000000e+00> : vector<80x64xf32>
    %2 = tpu.matmul %0, %1, %cst {dimension_numbers = #tpu.dot_dimension_numbers<[1], [0], [0], [1], [0, 0, 1, 1], [], []>} : vector<80x512xbf16>, vector<512x64xbf16>, vector<80x64xf32> -> vector<80x64xf32>
    %c0_3 = arith.constant 0 : index
    %c0_4 = arith.constant 0 : index
    %3 = vector.load %arg3[%c0_3, %c0_4] : memref<1x64xf32, #tpu.memory_space<vmem>>, vector<1x64xf32>
    %4 = vector.broadcast %3 : vector<1x64xf32> to vector<80x64xf32>
    %5 = arith.addf %2, %4 : vector<80x64xf32>
    %cst_5 = arith.constant 0.000000e+00 : f32
    %6 = vector.broadcast %cst_5 : f32 to vector<80x64xf32>
    %7 = arith.maximumf %5, %6 : vector<80x64xf32>
    %8 = arith.truncf %7 : vector<80x64xf32> to vector<80x64xbf16>
    %c0_6 = arith.constant 0 : index
    %c0_7 = arith.constant 0 : index
    %9 = vector.load %arg4[%c0_6, %c0_7] : memref<80x64xbf16, #tpu.memory_space<vmem>>, vector<80x64xbf16>
    tpu.vector_store %arg4[%c0_6, %c0_7], %8 {strides = array<i32>} : memref<80x64xbf16, #tpu.memory_space<vmem>>, vector<80x64xbf16>,
    return
  }
  func.func @transform_0(%arg0: i32) -> (i32, i32) {
    %c0_i32 = arith.constant 0 : i32
    %c0_i32_0 = arith.constant 0 : i32
    return %arg0, %c0_i32 : i32, i32
  }
  func.func @transform_1(%arg0: i32) -> (i32, i32) {
    %c0_i32 = arith.constant 0 : i32
    %c0_i32_0 = arith.constant 0 : i32
    %c0_i32_1 = arith.constant 0 : i32
    return %c0_i32, %c0_i32_0 : i32, i32
  }
  func.func @transform_2(%arg0: i32) -> (i32, i32) {
    %c0_i32 = arith.constant 0 : i32
    %c0_i32_0 = arith.constant 0 : i32
    %c0_i32_1 = arith.constant 0 : i32
    return %c0_i32, %c0_i32_0 : i32, i32
  }
  func.func @transform_3(%arg0: i32) -> (i32, i32) {
    %c0_i32 = arith.constant 0 : i32
    %c0_i32_0 = arith.constant 0 : i32
    return %arg0, %c0_i32 : i32, i32
  }
}

module attributes {stable_mosaic.version = 11 : i64} {
  func.func @_gemm_bias_act_kernel(%arg0: i32, %arg1: memref<32x576xbf16, #tpu.memory_space<vmem>>, %arg2: memref<576x64xbf16, #tpu.memory_space<vmem>>, %arg3: memref<1x64xf32, #tpu.memory_space<vmem>>, %arg4: memref<32x64xbf16, #tpu.memory_space<vmem>>) attributes {dimension_semantics = [#tpu.dimension_semantics<parallel>], iteration_bounds = array<i64: 1>, scalar_prefetch = 0 : i64, scratch_operands = 0 : i64, tpu.core_type = #tpu.core_type<tc>, window_params = [{transform_indices = @transform_0, window_bounds = array<i64: 32, 576>}, {pipeline_mode = #tpu.pipeline_mode<synchronous>, transform_indices = @transform_1, window_bounds = array<i64: 576, 64>}, {pipeline_mode = #tpu.pipeline_mode<synchronous>, transform_indices = @transform_2, window_bounds = array<i64: 1, 64>}, {transform_indices = @transform_3, window_bounds = array<i64: 32, 64>}]} {
    %c0 = arith.constant 0 : index
    %c0_0 = arith.constant 0 : index
    %0 = vector.load %arg1[%c0, %c0_0] : memref<32x576xbf16, #tpu.memory_space<vmem>>, vector<32x576xbf16>
    %c0_1 = arith.constant 0 : index
    %c0_2 = arith.constant 0 : index
    %1 = vector.load %arg2[%c0_1, %c0_2] : memref<576x64xbf16, #tpu.memory_space<vmem>>, vector<576x64xbf16>
    %cst = arith.constant dense<0.000000e+00> : vector<32x64xf32>
    %2 = tpu.matmul %0, %1, %cst {dimension_numbers = #tpu.dot_dimension_numbers<[1], [0], [0], [1], [0, 0, 1, 1], [], []>} : vector<32x576xbf16>, vector<576x64xbf16>, vector<32x64xf32> -> vector<32x64xf32>
    %c0_3 = arith.constant 0 : index
    %c0_4 = arith.constant 0 : index
    %3 = vector.load %arg3[%c0_3, %c0_4] : memref<1x64xf32, #tpu.memory_space<vmem>>, vector<1x64xf32>
    %4 = vector.broadcast %3 : vector<1x64xf32> to vector<32x64xf32>
    %5 = arith.addf %2, %4 : vector<32x64xf32>
    %cst_5 = arith.constant 0.000000e+00 : f32
    %6 = vector.broadcast %cst_5 : f32 to vector<32x64xf32>
    %7 = arith.maximumf %5, %6 : vector<32x64xf32>
    %8 = arith.truncf %7 : vector<32x64xf32> to vector<32x64xbf16>
    %c0_6 = arith.constant 0 : index
    %c0_7 = arith.constant 0 : index
    %9 = vector.load %arg4[%c0_6, %c0_7] : memref<32x64xbf16, #tpu.memory_space<vmem>>, vector<32x64xbf16>
    tpu.vector_store %arg4[%c0_6, %c0_7], %8 {strides = array<i32>} : memref<32x64xbf16, #tpu.memory_space<vmem>>, vector<32x64xbf16>,
    return
  }
  func.func @transform_0(%arg0: i32) -> (i32, i32) {
    %c0_i32 = arith.constant 0 : i32
    %c0_i32_0 = arith.constant 0 : i32
    return %arg0, %c0_i32 : i32, i32
  }
  func.func @transform_1(%arg0: i32) -> (i32, i32) {
    %c0_i32 = arith.constant 0 : i32
    %c0_i32_0 = arith.constant 0 : i32
    %c0_i32_1 = arith.constant 0 : i32
    return %c0_i32, %c0_i32_0 : i32, i32
  }
  func.func @transform_2(%arg0: i32) -> (i32, i32) {
    %c0_i32 = arith.constant 0 : i32
    %c0_i32_0 = arith.constant 0 : i32
    %c0_i32_1 = arith.constant 0 : i32
    return %c0_i32, %c0_i32_0 : i32, i32
  }
  func.func @transform_3(%arg0: i32) -> (i32, i32) {
    %c0_i32 = arith.constant 0 : i32
    %c0_i32_0 = arith.constant 0 : i32
    return %arg0, %c0_i32 : i32, i32
  }
}

module attributes {stable_mosaic.version = 11 : i64} {
  func.func @_fused_head_kernel(%arg0: i32, %arg1: memref<16x1024xbf16, #tpu.memory_space<vmem>>, %arg2: memref<1024x1024xbf16, #tpu.memory_space<vmem>>, %arg3: memref<1x1024xf32, #tpu.memory_space<vmem>>, %arg4: memref<512x128xbf16, #tpu.memory_space<vmem>>, %arg5: memref<1x128xf32, #tpu.memory_space<vmem>>, %arg6: memref<512x128xbf16, #tpu.memory_space<vmem>>, %arg7: memref<1x128xf32, #tpu.memory_space<vmem>>, %arg8: memref<16x128xf32, #tpu.memory_space<vmem>>, %arg9: memref<16x128xf32, #tpu.memory_space<vmem>>, %arg10: memref<16x128xf32, #tpu.memory_space<vmem>>) attributes {dimension_semantics = [#tpu.dimension_semantics<parallel>], iteration_bounds = array<i64: 1>, scalar_prefetch = 0 : i64, scratch_operands = 0 : i64, tpu.core_type = #tpu.core_type<tc>, window_params = [{transform_indices = @transform_0, window_bounds = array<i64: 16, 1024>}, {pipeline_mode = #tpu.pipeline_mode<synchronous>, transform_indices = @transform_1, window_bounds = array<i64: 1024, 1024>}, {pipeline_mode = #tpu.pipeline_mode<synchronous>, transform_indices = @transform_2, window_bounds = array<i64: 1, 1024>}, {pipeline_mode = #tpu.pipeline_mode<synchronous>, transform_indices = @transform_3, window_bounds = array<i64: 512, 128>}, {pipeline_mode = #tpu.pipeline_mode<synchronous>, transform_indices = @transform_4, window_bounds = array<i64: 1, 128>}, {pipeline_mode = #tpu.pipeline_mode<synchronous>, transform_indices = @transform_5, window_bounds = array<i64: 512, 128>}, {pipeline_mode = #tpu.pipeline_mode<synchronous>, transform_indices = @transform_6, window_bounds = array<i64: 1, 128>}, {transform_indices = @transform_7, window_bounds = array<i64: 16, 128>}, {transform_indices = @transform_8, window_bounds = array<i64: 16, 128>}, {transform_indices = @transform_9, window_bounds = array<i64: 16, 128>}]} {
    %c0 = arith.constant 0 : index
    %c0_0 = arith.constant 0 : index
    %0 = vector.load %arg1[%c0, %c0_0] : memref<16x1024xbf16, #tpu.memory_space<vmem>>, vector<16x1024xbf16>
    %c0_1 = arith.constant 0 : index
    %c0_2 = arith.constant 0 : index
    %1 = vector.load %arg2[%c0_1, %c0_2] : memref<1024x1024xbf16, #tpu.memory_space<vmem>>, vector<1024x1024xbf16>
    %cst = arith.constant dense<0.000000e+00> : vector<16x1024xf32>
    %2 = tpu.matmul %0, %1, %cst {dimension_numbers = #tpu.dot_dimension_numbers<[1], [0], [0], [1], [0, 0, 1, 1], [], []>} : vector<16x1024xbf16>, vector<1024x1024xbf16>, vector<16x1024xf32> -> vector<16x1024xf32>
    %c0_3 = arith.constant 0 : index
    %c0_4 = arith.constant 0 : index
    %3 = vector.load %arg3[%c0_3, %c0_4] : memref<1x1024xf32, #tpu.memory_space<vmem>>, vector<1x1024xf32>
    %4 = vector.broadcast %3 : vector<1x1024xf32> to vector<16x1024xf32>
    %5 = arith.addf %2, %4 : vector<16x1024xf32>
    %cst_5 = arith.constant 0.000000e+00 : f32
    %6 = vector.broadcast %cst_5 : f32 to vector<16x1024xf32>
    %7 = arith.maximumf %5, %6 : vector<16x1024xf32>
    %8 = arith.truncf %7 : vector<16x1024xf32> to vector<16x1024xbf16>
    %9 = vector.extract_strided_slice %8 {offsets = [0, 0], sizes = [16, 512], strides = [1, 1]} : vector<16x1024xbf16> to vector<16x512xbf16>
    %10 = vector.extract_strided_slice %8 {offsets = [0, 512], sizes = [16, 512], strides = [1, 1]} : vector<16x1024xbf16> to vector<16x512xbf16>
    %c0_6 = arith.constant 0 : index
    %c0_7 = arith.constant 0 : index
    %11 = vector.load %arg4[%c0_6, %c0_7] : memref<512x128xbf16, #tpu.memory_space<vmem>>, vector<512x128xbf16>
    %cst_8 = arith.constant dense<0.000000e+00> : vector<16x128xf32>
    %12 = tpu.matmul %9, %11, %cst_8 {dimension_numbers = #tpu.dot_dimension_numbers<[1], [0], [0], [1], [0, 0, 1, 1], [], []>} : vector<16x512xbf16>, vector<512x128xbf16>, vector<16x128xf32> -> vector<16x128xf32>
    %c0_9 = arith.constant 0 : index
    %c0_10 = arith.constant 0 : index
    %13 = vector.load %arg5[%c0_9, %c0_10] : memref<1x128xf32, #tpu.memory_space<vmem>>, vector<1x128xf32>
    %14 = vector.broadcast %13 : vector<1x128xf32> to vector<16x128xf32>
    %15 = arith.addf %12, %14 : vector<16x128xf32>
    %c0_11 = arith.constant 0 : index
    %c0_12 = arith.constant 0 : index
    %16 = vector.load %arg6[%c0_11, %c0_12] : memref<512x128xbf16, #tpu.memory_space<vmem>>, vector<512x128xbf16>
    %cst_13 = arith.constant dense<0.000000e+00> : vector<16x128xf32>
    %17 = tpu.matmul %10, %16, %cst_13 {dimension_numbers = #tpu.dot_dimension_numbers<[1], [0], [0], [1], [0, 0, 1, 1], [], []>} : vector<16x512xbf16>, vector<512x128xbf16>, vector<16x128xf32> -> vector<16x128xf32>
    %c0_14 = arith.constant 0 : index
    %c0_15 = arith.constant 0 : index
    %18 = vector.load %arg7[%c0_14, %c0_15] : memref<1x128xf32, #tpu.memory_space<vmem>>, vector<1x128xf32>
    %19 = vector.broadcast %18 : vector<1x128xf32> to vector<16x128xf32>
    %20 = arith.addf %17, %19 : vector<16x128xf32>
    %c0_16 = arith.constant 0 : index
    %c0_17 = arith.constant 0 : index
    %21 = vector.load %arg8[%c0_16, %c0_17] : memref<16x128xf32, #tpu.memory_space<vmem>>, vector<16x128xf32>
    tpu.vector_store %arg8[%c0_16, %c0_17], %15 {strides = array<i32>} : memref<16x128xf32, #tpu.memory_space<vmem>>, vector<16x128xf32>,
    %c0_18 = arith.constant 0 : index
    %c0_19 = arith.constant 0 : index
    %22 = vector.load %arg9[%c0_18, %c0_19] : memref<16x128xf32, #tpu.memory_space<vmem>>, vector<16x128xf32>
    tpu.vector_store %arg9[%c0_18, %c0_19], %20 {strides = array<i32>} : memref<16x128xf32, #tpu.memory_space<vmem>>, vector<16x128xf32>,
    %23 = tpu.iota {dimensions = array<i32: 1>} : vector<16x128xi32>
    %c15_i32 = arith.constant 15 : i32
    %24 = vector.broadcast %c15_i32 : i32 to vector<16x128xi32>
    %25 = arith.cmpi slt, %23, %24 : vector<16x128xi32>
    %cst_20 = arith.constant -3.40282347E+38 : f32
    %26 = vector.broadcast %cst_20 : f32 to vector<16x128xf32>
    %27 = arith.select %25, %20, %26 : vector<16x128xi1>, vector<16x128xf32>
    %cst_21 = arith.constant dense<0xFF800000> : vector<16xf32>
    %28 = vector.multi_reduction <maximumf>, %27, %cst_21 [1] : vector<16x128xf32> to vector<16xf32>
    %29 = vector.shape_cast %28 : vector<16xf32> to vector<16x1xf32>
    %30 = vector.broadcast %29 : vector<16x1xf32> to vector<16x128xf32>
    %31 = arith.subf %27, %30 : vector<16x128xf32>
    %32 = math.exp %31 : vector<16x128xf32>
    %cst_22 = arith.constant dense<0.000000e+00> : vector<16xf32>
    %33 = vector.multi_reduction <add>, %32, %cst_22 [1] : vector<16x128xf32> to vector<16xf32>
    %34 = vector.shape_cast %33 : vector<16xf32> to vector<16x1xf32>
    %35 = math.log %34 : vector<16x1xf32>
    %36 = arith.addf %29, %35 : vector<16x1xf32>
    %37 = vector.broadcast %36 : vector<16x1xf32> to vector<16x128xf32>
    %38 = arith.subf %20, %37 : vector<16x128xf32>
    %c0_23 = arith.constant 0 : index
    %c0_24 = arith.constant 0 : index
    %39 = vector.load %arg10[%c0_23, %c0_24] : memref<16x128xf32, #tpu.memory_space<vmem>>, vector<16x128xf32>
    tpu.vector_store %arg10[%c0_23, %c0_24], %38 {strides = array<i32>} : memref<16x128xf32, #tpu.memory_space<vmem>>, vector<16x128xf32>,
    return
  }
  func.func @transform_0(%arg0: i32) -> (i32, i32) {
    %c0_i32 = arith.constant 0 : i32
    %c0_i32_0 = arith.constant 0 : i32
    return %arg0, %c0_i32 : i32, i32
  }
  func.func @transform_1(%arg0: i32) -> (i32, i32) {
    %c0_i32 = arith.constant 0 : i32
    %c0_i32_0 = arith.constant 0 : i32
    %c0_i32_1 = arith.constant 0 : i32
    return %c0_i32, %c0_i32_0 : i32, i32
  }
  func.func @transform_2(%arg0: i32) -> (i32, i32) {
    %c0_i32 = arith.constant 0 : i32
    %c0_i32_0 = arith.constant 0 : i32
    %c0_i32_1 = arith.constant 0 : i32
    return %c0_i32, %c0_i32_0 : i32, i32
  }
  func.func @transform_3(%arg0: i32) -> (i32, i32) {
    %c0_i32 = arith.constant 0 : i32
    %c0_i32_0 = arith.constant 0 : i32
    %c0_i32_1 = arith.constant 0 : i32
    return %c0_i32, %c0_i32_0 : i32, i32
  }
  func.func @transform_4(%arg0: i32) -> (i32, i32) {
    %c0_i32 = arith.constant 0 : i32
    %c0_i32_0 = arith.constant 0 : i32
    %c0_i32_1 = arith.constant 0 : i32
    return %c0_i32, %c0_i32_0 : i32, i32
  }
  func.func @transform_5(%arg0: i32) -> (i32, i32) {
    %c0_i32 = arith.constant 0 : i32
    %c0_i32_0 = arith.constant 0 : i32
    %c0_i32_1 = arith.constant 0 : i32
    return %c0_i32, %c0_i32_0 : i32, i32
  }
  func.func @transform_6(%arg0: i32) -> (i32, i32) {
    %c0_i32 = arith.constant 0 : i32
    %c0_i32_0 = arith.constant 0 : i32
    %c0_i32_1 = arith.constant 0 : i32
    return %c0_i32, %c0_i32_0 : i32, i32
  }
  func.func @transform_7(%arg0: i32) -> (i32, i32) {
    %c0_i32 = arith.constant 0 : i32
    %c0_i32_0 = arith.constant 0 : i32
    return %arg0, %c0_i32 : i32, i32
  }
  func.func @transform_8(%arg0: i32) -> (i32, i32) {
    %c0_i32 = arith.constant 0 : i32
    %c0_i32_0 = arith.constant 0 : i32
    return %arg0, %c0_i32 : i32, i32
  }
  func.func @transform_9(%arg0: i32) -> (i32, i32) {
    %c0_i32 = arith.constant 0 : i32
    %c0_i32_0 = arith.constant 0 : i32
    return %arg0, %c0_i32 : i32, i32
  }
}

</mosaic_0001>

<llo_original>
// kernel: bcq_encoder_forward.4
$region0: #{bcq_encoder_forward.4}
  #allocation0 [shape = 'u32[]', space=smem, size = 0x4, offset = 0x4, fixed_abs, tag = 'smem constant byte address 0x4 - core index']
  #allocation1 [shape = 'u32[72,128]{1,0:T(1,128)}', space=vmem, size = 0x9000, scoped, tag = 'internal scratch']
  %s0 = inlined_call_operand.vmem [shape: bf16[480,256], index: 0, kind: input, shape index: {}]
  %s1 = inlined_call_operand.vmem [shape: bf16[256,32], index: 1, kind: input, shape index: {}]
  %s2 = inlined_call_operand.vmem [shape: f32[1,32], index: 2, kind: input, shape index: {}]
  %s3 = inlined_call_operand.vmem [shape: bf16[480,32], index: 3, kind: output, shape index: {}]
  %s4 = sld [smem:[#allocation0]]
  $region45: #{bcq_encoder_forward.4} parent=0
    _
  %s6 = ssub.s32 1, %s4
  %s7 = scalar_select 0, %s6, %s4
  loop: start=0, step=1, limit=4
  $region2: #{bcq_encoder_forward.4} parent=0 // loop_pre_header
    _
  $region3: #{bcq_encoder_forward.4} parent=0 // loop_header
    %s9 = sphi 0, %s13
    %p10 = scmp.ge.s32.totalorder %s9, 4
    %s19 = sphi 0, %s21
    %s22 = sphi 0, %s19
    %s23 = sphi 0, %s22
    %s39 = sphi 0, %s23
    %s43 = sphi 0, %s43
    %s45 = sphi 0, %s43
    %s46 = sphi 0, %s45
    %s60 = sphi 0, %s46
    %s64 = sphi 0, %s64
    %s66 = sphi 0, %s64
    %s67 = sphi 0, %s66
    %s81 = sphi 0, %s67
    %s87 = sphi 0, %s89
    %s90 = sphi 0, %s87
    %s91 = sphi 0, %s90
    %s107 = sphi 0, %s91
  $region4: #{bcq_encoder_forward.4} parent=0 // loop_header_branch
    %12 = sbr.rel (%p10) target = $region8
  $region5: #{bcq_encoder_forward.4} parent=0 // loop_body
    %s14 = ssub.s32 %s9, 1
    %s15 = ssub.s32 %s9, 2
    %s16 = sadd.s32 %s9, 1
    %s17 = ssub.s32 %s9, %s16
    %p18 = scmp.eq.s32.totalorder %s17, 0
    %s20 = sadd.s32 %s19, 1
    %s21 = scalar_select %p18, %s19, %s20
    %p24 = pneg %p18
    %p25 = scmp.eq.s32.totalorder %s9, 1
    %p26 = por %p24, %p25
    %p27 = scmp.ne.s32.totalorder %s19, %s22
    %p28 = scmp.eq.s32.totalorder %s9, 0
    %p29 = por %p27, %p28
    %p30 = scmp.ne.s32.totalorder %s19, %s22
    %p31 = scmp.eq.s32.totalorder %s14, 1
    %p32 = por %p30, %p31
    %p33 = scmp.ne.s32.totalorder %s22, %s23
    %p34 = scmp.eq.s32.totalorder %s14, 0
    %p35 = por %p33, %p34
    %p36 = scmp.ne.s32.totalorder %s22, %s23
    %p37 = scmp.eq.s32.totalorder %s15, 1
    %p38 = por %p36, %p37
    %p40 = scmp.ne.s32.totalorder %s23, %s39
    %p41 = scmp.eq.s32.totalorder %s15, 0
    %p42 = por %p40, %p41
    %s44 = sadd.s32 %s43, 1
    %p47 = scmp.eq.s32.totalorder %s9, 1
    %p48 = scmp.ne.s32.totalorder %s43, %s45
    %p49 = scmp.eq.s32.totalorder %s9, 0
    %p50 = por %p48, %p49
    %p51 = scmp.ne.s32.totalorder %s43, %s45
    %p52 = scmp.eq.s32.totalorder %s14, 1
    %p53 = por %p51, %p52
    %p54 = scmp.ne.s32.totalorder %s45, %s46
    %p55 = scmp.eq.s32.totalorder %s14, 0
    %p56 = por %p54, %p55
    %p57 = scmp.ne.s32.totalorder %s45, %s46
    %p58 = scmp.eq.s32.totalorder %s15, 1
    %p59 = por %p57, %p58
    %p61 = scmp.ne.s32.totalorder %s46, %s60
    %p62 = scmp.eq.s32.totalorder %s15, 0
    %p63 = por %p61, %p62
    %s65 = sadd.s32 %s64, 1
    %p68 = scmp.eq.s32.totalorder %s9, 1
    %p69 = scmp.ne.s32.totalorder %s64, %s66
    %p70 = scmp.eq.s32.totalorder %s9, 0
    %p71 = por %p69, %p70
    %p72 = scmp.ne.s32.totalorder %s64, %s66
    %p73 = scmp.eq.s32.totalorder %s14, 1
    %p74 = por %p72, %p73
    %p75 = scmp.ne.s32.totalorder %s66, %s67
    %p76 = scmp.eq.s32.totalorder %s14, 0
    %p77 = por %p75, %p76
    %p78 = scmp.ne.s32.totalorder %s66, %s67
    %p79 = scmp.eq.s32.totalorder %s15, 1
    %p80 = por %p78, %p79
    %p82 = scmp.ne.s32.totalorder %s67, %s81
    %p83 = scmp.eq.s32.totalorder %s15, 0
    %p84 = por %p82, %p83
    %s85 = ssub.s32 %s9, %s16
    %p86 = scmp.eq.s32.totalorder %s85, 0
    %s88 = sadd.s32 %s87, 1
    %s89 = scalar_select %p86, %s87, %s88
    %p92 = pneg %p86
    %p93 = scmp.eq.s32.totalorder %s9, 1
    %p94 = por %p92, %p93
    %p95 = scmp.ne.s32.totalorder %s87, %s90
    %p96 = scmp.eq.s32.totalorder %s9, 0
    %p97 = por %p95, %p96
    %p98 = scmp.ne.s32.totalorder %s87, %s90
    %p99 = scmp.eq.s32.totalorder %s14, 1
    %p100 = por %p98, %p99
    %p101 = scmp.ne.s32.totalorder %s90, %s91
    %p102 = scmp.eq.s32.totalorder %s14, 0
    %p103 = por %p101, %p102
    %p104 = scmp.ne.s32.totalorder %s90, %s91
    %p105 = scmp.eq.s32.totalorder %s15, 1
    %p106 = por %p104, %p105
    %p108 = scmp.ne.s32.totalorder %s91, %s107
    %p109 = scmp.eq.s32.totalorder %s15, 0
    %p110 = por %p108, %p109
    %p111 = scmp.le.s32.totalorder 1, %s9
    %p112 = scmp.lt.s32.totalorder %s9, 3
    %p113 = pnand %p111, %p112
    %p114 = pneg %p113
    // Predicated region
    $region9: #{bcq_encoder_forward.4} parent=5 // pred_check
      _
    $region10: #{bcq_encoder_forward.4} parent=5 // pred_check_branch
      %116 = sbr.rel (%p113) target = $region12
    $region11: #{bcq_encoder_forward.4} parent=5 // pred_region
      %s117 = ssub.s32 %s9, 1
      // Predicated region
      $region13: #{bcq_encoder_forward.4} parent=11 // pred_check
        %p118 = pneg %p56
      $region14: #{bcq_encoder_forward.4} parent=11 // pred_check_branch
        %120 = sbr.rel (%p118) target = $region16
      $region15: #{bcq_encoder_forward.4} parent=11 // pred_region
        _
      $region16: #{bcq_encoder_forward.4} parent=11 // pred_fallthru
        _
      // Predicated region
      $region17: #{bcq_encoder_forward.4} parent=11 // pred_check
        %p121 = pneg %p77
      $region18: #{bcq_encoder_forward.4} parent=11 // pred_check_branch
        %123 = sbr.rel (%p121) target = $region20
      $region19: #{bcq_encoder_forward.4} parent=11 // pred_region
        _
      $region20: #{bcq_encoder_forward.4} parent=11 // pred_fallthru
        _
    $region12: #{bcq_encoder_forward.4} parent=5 // pred_fallthru
      _
    %p124 = scmp.lt.s32.totalorder %s9, 2
    // Predicated region
    $region21: #{bcq_encoder_forward.4} parent=5 // pred_check
      %p125 = pneg %p124
    $region22: #{bcq_encoder_forward.4} parent=5 // pred_check_branch
      %127 = sbr.rel (%p125) target = $region24
    $region23: #{bcq_encoder_forward.4} parent=5 // pred_region
      // Predicated region
      $region25: #{bcq_encoder_forward.4} parent=23 // pred_check
        %p128 = pneg %p29
      $region26: #{bcq_encoder_forward.4} parent=23 // pred_check_branch
        %130 = sbr.rel (%p128) target = $region28
      $region27: #{bcq_encoder_forward.4} parent=23 // pred_region
        %s131 = smul.u32 30, %s9
        %p132 = scmp.lt.s32.totalorder %s131, 59
        %s133 = scalar_select %p132, %s131, 59
        %s134 = smul.addr %s133, 2
        %s135 = smul.addr %s134, 4
        %s136 = scalar_lea.vmem %s0, %s135
        %s137 = smul.u32 30, %s9
      $region28: #{bcq_encoder_forward.4} parent=23 // pred_fallthru
        _
    $region24: #{bcq_encoder_forward.4} parent=5 // pred_fallthru
      _
    %p138 = scmp.le.s32.totalorder 1, %s9
    %p139 = scmp.lt.s32.totalorder %s9, 3
    %p140 = pnand %p138, %p139
    %p141 = pneg %p140
    // Predicated region
    $region29: #{bcq_encoder_forward.4} parent=5 // pred_check
      _
    $region30: #{bcq_encoder_forward.4} parent=5 // pred_check_branch
      %143 = sbr.rel (%p140) target = $region32
    $region31: #{bcq_encoder_forward.4} parent=5 // pred_region
      %s144 = ssub.s32 %s9, 1
      %s145 = smul.u32 30, %s14
      %p146 = scmp.lt.s32.totalorder %s145, 59
      %s147 = scalar_select %p146, %s145, 59
      %s148 = smul.addr %s147, 2
      %s149 = smul.addr %s148, 4
      %s150 = scalar_lea.vmem %s0, %s149
      %p151 = pneg %p35
      %p152 = pneg %p32
      %p153 = pneg %p56
      %p154 = pneg %p53
      %p155 = pneg %p77
      %p156 = pneg %p74
      %p157 = pneg %p103
      %p158 = pneg %p100
      %s159 = smul.u32 30, %s14
      %p160 = scmp.lt.s32.totalorder %s159, 59
      %s161 = scalar_select %p160, %s159, 59
      %s162 = smul.addr %s161, 4
      %s163 = scalar_lea.vmem %s3, %s162
      %s164 = smul.u32 30, %s14
      %p165 = scmp.lt.s32.totalorder %s164, 59
      %s166 = scalar_select %p165, %s164, 59
      %s167 = smul.addr %s166, 2
      %s168 = smul.addr %s167, 4
      %s169 = scalar_lea.vmem %s0, %s168
      %s170 = smul.u32 30, %s14
      %s171 = smul.u32 30, %s14
      %p172 = scmp.lt.s32.totalorder %s171, 59
      %s173 = scalar_select %p172, %s171, 59
      %s174 = smul.addr %s173, 4
      %s175 = scalar_lea.vmem %s3, %s174
      %s176 = smul.u32 30, %s14
      %v177 = vld [vmem:[%s169] sm:$0xff]
      %v178 = vld [vmem:[%s169 + $0x8] sm:$0xff]
      %v179 = vld [vmem:[%s169 + $0x10] sm:$0xff]
      %v180 = vld [vmem:[%s169 + $0x18] sm:$0xff]
      %v181 = vld [vmem:[%s169 + $0x20] sm:$0xff]
      %v182 = vld [vmem:[%s169 + $0x28] sm:$0xff]
      %v183 = vld [vmem:[%s169 + $0x30] sm:$0xff]
      %v184 = vld [vmem:[%s169 + $0x38] sm:$0xff]
      %v185 = vld [vmem:[%s169 + $0x40] sm:$0xff]
      %v186 = vld [vmem:[%s169 + $0x48] sm:$0xff]
      %v187 = vld [vmem:[%s169 + $0x50] sm:$0xff]
      %v188 = vld [vmem:[%s169 + $0x58] sm:$0xff]
      %v189 = vld [vmem:[%s169 + $0x60] sm:$0xff]
      %v190 = vld [vmem:[%s169 + $0x68] sm:$0xff]
      %v191 = vld [vmem:[%s169 + $0x70] sm:$0xff]
      %v192 = vld [vmem:[%s169 + $0x78] sm:$0xff]
      %v193 = vld [vmem:[%s169 + $0x80] sm:$0xff]
      %v194 = vld [vmem:[%s169 + $0x88] sm:$0xff]
      %v195 = vld [vmem:[%s169 + $0x90] sm:$0xff]
      %v196 = vld [vmem:[%s169 + $0x98] sm:$0xff]
      %v197 = vld [vmem:[%s169 + $0xa0] sm:$0xff]
      %v198 = vld [vmem:[%s169 + $0xa8] sm:$0xff]
      %v199 = vld [vmem:[%s169 + $0xb0] sm:$0xff]
      %v200 = vld [vmem:[%s169 + $0xb8] sm:$0xff]
      %v201 = vld [vmem:[%s169 + $0xc0] sm:$0xff]
      %v202 = vld [vmem:[%s169 + $0xc8] sm:$0xff]
      %v203 = vld [vmem:[%s169 + $0xd0] sm:$0xff]
      %v204 = vld [vmem:[%s169 + $0xd8] sm:$0xff]
      %v205 = vld [vmem:[%s169 + $0xe0] sm:$0xff]
      %v206 = vld [vmem:[%s169 + $0xe8] sm:$0xff]
      %v207 = vld [vmem:[%s1] sm:$0xf]
      %v208 = vld [vmem:[%s1 + $0x4] sm:$0xf]
      %v209 = vld [vmem:[%s1 + $0x8] sm:$0xf]
      %v210 = vld [vmem:[%s1 + $0xc] sm:$0xf]
      %v211 = vld [vmem:[%s1 + $0x10] sm:$0xf]
      %v212 = vld [vmem:[%s1 + $0x14] sm:$0xf]
      %v213 = vld [vmem:[%s1 + $0x18] sm:$0xf]
      %v214 = vld [vmem:[%s1 + $0x1c] sm:$0xf]
      %v215 = vld [vmem:[%s1 + $0x20] sm:$0xf]
      %v216 = vld [vmem:[%s1 + $0x24] sm:$0xf]
      %v217 = vld [vmem:[%s1 + $0x28] sm:$0xf]
      %v218 = vld [vmem:[%s1 + $0x2c] sm:$0xf]
      %v219 = vld [vmem:[%s1 + $0x30] sm:$0xf]
      %v220 = vld [vmem:[%s1 + $0x34] sm:$0xf]
      %v221 = vld [vmem:[%s1 + $0x38] sm:$0xf]
      %v222 = vld [vmem:[%s1 + $0x3c] sm:$0xf]
      %v223 = vld [vmem:[%s1 + $0x40] sm:$0xf]
      %v224 = vld [vmem:[%s1 + $0x44] sm:$0xf]
      %v225 = vld [vmem:[%s1 + $0x48] sm:$0xf]
      %v226 = vld [vmem:[%s1 + $0x4c] sm:$0xf]
      %v227 = vld [vmem:[%s1 + $0x50] sm:$0xf]
      %v228 = vld [vmem:[%s1 + $0x54] sm:$0xf]
      %v229 = vld [vmem:[%s1 + $0x58] sm:$0xf]
      %v230 = vld [vmem:[%s1 + $0x5c] sm:$0xf]
      %v231 = vld [vmem:[%s1 + $0x60] sm:$0xf]
      %v232 = vld [vmem:[%s1 + $0x64] sm:$0xf]
      %v233 = vld [vmem:[%s1 + $0x68] sm:$0xf]
      %v234 = vld [vmem:[%s1 + $0x6c] sm:$0xf]
      %v235 = vld [vmem:[%s1 + $0x70] sm:$0xf]
      %v236 = vld [vmem:[%s1 + $0x74] sm:$0xf]
      %v237 = vld [vmem:[%s1 + $0x78] sm:$0xf]
      %v238 = vld [vmem:[%s1 + $0x7c] sm:$0xf]
      %v239 = vld [vmem:[%s2] sm:$0x1]
      %v241 = vperm.slane %v239, 0
      %v273 = vunpack.c.l.b16 %v177
      %v274 = vunpack.c.h.b16 %v177
      %v275 = vunpack.c.l.b16 %v178
      %v276 = vunpack.c.h.b16 %v178
      %v277 = vunpack.c.l.b16 %v179
      %v278 = vunpack.c.h.b16 %v179
      %v279 = vunpack.c.l.b16 %v180
      %v280 = vunpack.c.h.b16 %v180
      %v281 = vunpack.c.l.b16 %v181
      %v282 = vunpack.c.h.b16 %v181
      %v283 = vunpack.c.l.b16 %v182
      %v284 = vunpack.c.h.b16 %v182
      %v285 = vunpack.c.l.b16 %v183
      %v286 = vunpack.c.h.b16 %v183
      %v287 = vunpack.c.l.b16 %v184
      %v288 = vunpack.c.h.b16 %v184
      %v289 = vunpack.c.l.b16 %v185
      %v290 = vunpack.c.h.b16 %v185
      %v291 = vunpack.c.l.b16 %v186
      %v292 = vunpack.c.h.b16 %v186
      %v293 = vunpack.c.l.b16 %v187
      %v294 = vunpack.c.h.b16 %v187
      %v295 = vunpack.c.l.b16 %v188
      %v296 = vunpack.c.h.b16 %v188
      %v297 = vunpack.c.l.b16 %v189
      %v298 = vunpack.c.h.b16 %v189
      %v299 = vunpack.c.l.b16 %v190
      %v300 = vunpack.c.h.b16 %v190
      %v301 = vunpack.c.l.b16 %v191
      %v302 = vunpack.c.h.b16 %v191
      %v303 = vunpack.c.l.b16 %v192
      %v304 = vunpack.c.h.b16 %v192
      %v305 = vunpack.c.l.b16 %v193
      %v306 = vunpack.c.h.b16 %v193
      %v307 = vunpack.c.l.b16 %v194
      %v308 = vunpack.c.h.b16 %v194
      %v309 = vunpack.c.l.b16 %v195
      %v310 = vunpack.c.h.b16 %v195
      %v311 = vunpack.c.l.b16 %v196
      %v312 = vunpack.c.h.b16 %v196
      %v313 = vunpack.c.l.b16 %v197
      %v314 = vunpack.c.h.b16 %v197
      %v315 = vunpack.c.l.b16 %v198
      %v316 = vunpack.c.h.b16 %v198
      %v317 = vunpack.c.l.b16 %v199
      %v318 = vunpack.c.h.b16 %v199
      %v319 = vunpack.c.l.b16 %v200
      %v320 = vunpack.c.h.b16 %v200
      %v321 = vunpack.c.l.b16 %v201
      %v322 = vunpack.c.h.b16 %v201
      %v323 = vunpack.c.l.b16 %v202
      %v324 = vunpack.c.h.b16 %v202
      %v325 = vunpack.c.l.b16 %v203
      %v326 = vunpack.c.h.b16 %v203
      %v327 = vunpack.c.l.b16 %v204
      %v328 = vunpack.c.h.b16 %v204
      %v329 = vunpack.c.l.b16 %v205
      %v330 = vunpack.c.h.b16 %v205
      %v331 = vunpack.c.l.b16 %v206
      %v332 = vunpack.c.h.b16 %v206
      %v333 = vpack.c.b16 %v275, %v273
      %v334 = vpack.c.b16 %v276, %v274
      %v335 = vpack.c.b16 %v279, %v277
      %v336 = vpack.c.b16 %v280, %v278
      %v337 = vpack.c.b16 %v283, %v281
      %v338 = vpack.c.b16 %v284, %v282
      %v339 = vpack.c.b16 %v287, %v285
      %v340 = vpack.c.b16 %v288, %v286
      %v341 = vpack.c.b16 %v291, %v289
      %v342 = vpack.c.b16 %v292, %v290
      %v343 = vpack.c.b16 %v295, %v293
      %v344 = vpack.c.b16 %v296, %v294
      %v345 = vpack.c.b16 %v299, %v297
      %v346 = vpack.c.b16 %v300, %v298
      %v347 = vpack.c.b16 %v303, %v301
      %v348 = vpack.c.b16 %v304, %v302
      %v349 = vpack.c.b16 %v307, %v305
      %v350 = vpack.c.b16 %v308, %v306
      %v351 = vpack.c.b16 %v311, %v309
      %v352 = vpack.c.b16 %v312, %v310
      %v353 = vpack.c.b16 %v315, %v313
      %v354 = vpack.c.b16 %v316, %v314
      %v355 = vpack.c.b16 %v319, %v317
      %v356 = vpack.c.b16 %v320, %v318
      %v357 = vpack.c.b16 %v323, %v321
      %v358 = vpack.c.b16 %v324, %v322
      %v359 = vpack.c.b16 %v327, %v325
      %v360 = vpack.c.b16 %v328, %v326
      %v361 = vpack.c.b16 %v331, %v329
      %v362 = vpack.c.b16 %v332, %v330
      %v425 = vunpack.c.l.b16 %v207
      %v426 = vunpack.c.l.b16 %v208
      %v427 = vunpack.c.l.b16 %v209
      %v428 = vunpack.c.l.b16 %v210
      %v429 = vunpack.c.l.b16 %v211
      %v430 = vunpack.c.l.b16 %v212
      %v431 = vunpack.c.l.b16 %v213
      %v432 = vunpack.c.l.b16 %v214
      %v433 = vunpack.c.l.b16 %v215
      %v434 = vunpack.c.l.b16 %v216
      %v435 = vunpack.c.l.b16 %v217
      %v436 = vunpack.c.l.b16 %v218
      %v437 = vunpack.c.l.b16 %v219
      %v438 = vunpack.c.l.b16 %v220
      %v439 = vunpack.c.l.b16 %v221
      %v440 = vunpack.c.l.b16 %v222
      %v441 = vunpack.c.l.b16 %v223
      %v442 = vunpack.c.l.b16 %v224
      %v443 = vunpack.c.l.b16 %v225
      %v444 = vunpack.c.l.b16 %v226
      %v445 = vunpack.c.l.b16 %v227
      %v446 = vunpack.c.l.b16 %v228
      %v447 = vunpack.c.l.b16 %v229
      %v448 = vunpack.c.l.b16 %v230
      %v449 = vunpack.c.l.b16 %v231
      %v450 = vunpack.c.l.b16 %v232
      %v451 = vunpack.c.l.b16 %v233
      %v452 = vunpack.c.l.b16 %v234
      %v453 = vunpack.c.l.b16 %v235
      %v454 = vunpack.c.l.b16 %v236
      %v455 = vunpack.c.l.b16 %v237
      %v456 = vunpack.c.l.b16 %v238
      %v457 = vpack.c.b16 %v426, %v425
      %v458 = vpack.c.b16 %v428, %v427
      %v459 = vpack.c.b16 %v430, %v429
      %v460 = vpack.c.b16 %v432, %v431
      %v461 = vpack.c.b16 %v434, %v433
      %v462 = vpack.c.b16 %v436, %v435
      %v463 = vpack.c.b16 %v438, %v437
      %v464 = vpack.c.b16 %v440, %v439
      %v465 = vpack.c.b16 %v442, %v441
      %v466 = vpack.c.b16 %v444, %v443
      %v467 = vpack.c.b16 %v446, %v445
      %v468 = vpack.c.b16 %v448, %v447
      %v469 = vpack.c.b16 %v450, %v449
      %v470 = vpack.c.b16 %v452, %v451
      %v471 = vpack.c.b16 %v454, %v453
      %v472 = vpack.c.b16 %v456, %v455
      %489 = vmatpush.bf16.msra.mxu0 %v464
      %490 = vmatpush.bf16.msra.mxu0 %v463
      %491 = vmatpush.bf16.msra.mxu0 %v462
      %492 = vmatpush.bf16.msra.mxu0 %v461
      %493 = vmatpush.bf16.msra.mxu0 %v460
      %494 = vmatpush.bf16.msra.mxu0 %v459
      %495 = vmatpush.bf16.msra.mxu0 %v458
      %496 = vmatpush.bf16.msra.mxu0 %v457
      %497 = vmatmul.bf16.gmra.mxu0 %v333
      %v498 = vpop.f32.mrf.mxu0
      %v499 = vadd.f32 %v241, %v498
      %v500 = vpop.f32.mrf.mxu0
      %v501 = vadd.f32 %v241, %v500
      %502 = vmatmul.bf16.gmra.mxu0 %v335
      %v503 = vpop.f32.mrf.mxu0
      %v504 = vadd.f32 %v241, %v503
      %v505 = vpop.f32.mrf.mxu0
      %v506 = vadd.f32 %v241, %v505
      %507 = vmatmul.bf16.gmra.mxu0 %v337
      %v508 = vpop.f32.mrf.mxu0
      %v509 = vadd.f32 %v241, %v508
      %v510 = vpop.f32.mrf.mxu0
      %v511 = vadd.f32 %v241, %v510
      %512 = vmatmul.bf16.gmra.mxu0 %v339
      %v513 = vpop.f32.mrf.mxu0
      %v514 = vadd.f32 %v241, %v513
      %v515 = vpop.f32.mrf.mxu0
      %v516 = vadd.f32 %v241, %v515
      %517 = vmatmul.bf16.gmra.mxu0 %v341
      %v518 = vpop.f32.mrf.mxu0
      %v519 = vadd.f32 %v241, %v518
      %v520 = vpop.f32.mrf.mxu0
      %v521 = vadd.f32 %v241, %v520
      %522 = vmatmul.bf16.gmra.mxu0 %v343
      %v523 = vpop.f32.mrf.mxu0
      %v524 = vadd.f32 %v241, %v523
      %v525 = vpop.f32.mrf.mxu0
      %v526 = vadd.f32 %v241, %v525
      %527 = vmatmul.bf16.gmra.mxu0 %v345
      %v528 = vpop.f32.mrf.mxu0
      %v529 = vadd.f32 %v241, %v528
      %v530 = vpop.f32.mrf.mxu0
      %v531 = vadd.f32 %v241, %v530
      %532 = vmatmul.bf16.gmra.mxu0 %v347
      %v533 = vpop.f32.mrf.mxu0
      %v534 = vadd.f32 %v241, %v533
      %v535 = vpop.f32.mrf.mxu0
      %v536 = vadd.f32 %v241, %v535
      %537 = vmatmul.bf16.gmra.mxu0 %v349
      %v538 = vpop.f32.mrf.mxu0
      %v539 = vadd.f32 %v241, %v538
      %v540 = vpop.f32.mrf.mxu0
      %v541 = vadd.f32 %v241, %v540
      %542 = vmatmul.bf16.gmra.mxu0 %v351
      %v543 = vpop.f32.mrf.mxu0
      %v544 = vadd.f32 %v241, %v543
      %v545 = vpop.f32.mrf.mxu0
      %v546 = vadd.f32 %v241, %v545
      %547 = vmatmul.bf16.gmra.mxu0 %v353
      %v548 = vpop.f32.mrf.mxu0
      %v549 = vadd.f32 %v241, %v548
      %v550 = vpop.f32.mrf.mxu0
      %v551 = vadd.f32 %v241, %v550
      %552 = vmatmul.bf16.gmra.mxu0 %v355
      %v553 = vpop.f32.mrf.mxu0
      %v554 = vadd.f32 %v241, %v553
      %v555 = vpop.f32.mrf.mxu0
      %v556 = vadd.f32 %v241, %v555
      %557 = vmatmul.bf16.gmra.mxu0 %v357
      %v558 = vpop.f32.mrf.mxu0
      %v559 = vadd.f32 %v241, %v558
      %v560 = vpop.f32.mrf.mxu0
      %v561 = vadd.f32 %v241, %v560
      %562 = vmatmul.bf16.gmra.mxu0 %v359
      %v563 = vpop.f32.mrf.mxu0
      %v564 = vadd.f32 %v241, %v563
      %v565 = vpop.f32.mrf.mxu0
      %v566 = vadd.f32 %v241, %v565
      %567 = vmatmul.bf16.gmra.mxu0 %v361
      %v568 = vpop.f32.mrf.mxu0
      %v569 = vadd.f32 %v241, %v568
      %v570 = vpop.f32.mrf.mxu0
      %v571 = vadd.f32 %v241, %v570
      %572 = vdwg.mxu0
      %573 = vmatpush.bf16.msra.mxu0 %v472
      %574 = vmatpush.bf16.msra.mxu0 %v471
      %575 = vmatpush.bf16.msra.mxu0 %v470
      %576 = vmatpush.bf16.msra.mxu0 %v469
      %577 = vmatpush.bf16.msra.mxu0 %v468
      %578 = vmatpush.bf16.msra.mxu0 %v467
      %579 = vmatpush.bf16.msra.mxu0 %v466
      %580 = vmatpush.bf16.msra.mxu0 %v465
      %581 = vmatmul.bf16.gmra.mxu0 %v334
      %v582 = vpop.f32.mrf.mxu0
      %v583 = vadd.f32 %v499, %v582
      %v584 = vpop.f32.mrf.mxu0
      %v585 = vadd.f32 %v501, %v584
      %586 = vmatmul.bf16.gmra.mxu0 %v336
      %v587 = vpop.f32.mrf.mxu0
      %v588 = vadd.f32 %v504, %v587
      %v589 = vpop.f32.mrf.mxu0
      %v590 = vadd.f32 %v506, %v589
      %591 = vmatmul.bf16.gmra.mxu0 %v338
      %v592 = vpop.f32.mrf.mxu0
      %v593 = vadd.f32 %v509, %v592
      %v594 = vpop.f32.mrf.mxu0
      %v595 = vadd.f32 %v511, %v594
      %596 = vmatmul.bf16.gmra.mxu0 %v340
      %v597 = vpop.f32.mrf.mxu0
      %v598 = vadd.f32 %v514, %v597
      %v599 = vpop.f32.mrf.mxu0
      %v600 = vadd.f32 %v516, %v599
      %601 = vmatmul.bf16.gmra.mxu0 %v342
      %v602 = vpop.f32.mrf.mxu0
      %v603 = vadd.f32 %v519, %v602
      %v604 = vpop.f32.mrf.mxu0
      %v605 = vadd.f32 %v521, %v604
      %606 = vmatmul.bf16.gmra.mxu0 %v344
      %v607 = vpop.f32.mrf.mxu0
      %v608 = vadd.f32 %v524, %v607
      %v609 = vpop.f32.mrf.mxu0
      %v610 = vadd.f32 %v526, %v609
      %611 = vmatmul.bf16.gmra.mxu0 %v346
      %v612 = vpop.f32.mrf.mxu0
      %v613 = vadd.f32 %v529, %v612
      %v614 = vpop.f32.mrf.mxu0
      %v615 = vadd.f32 %v531, %v614
      %616 = vmatmul.bf16.gmra.mxu0 %v348
      %v617 = vpop.f32.mrf.mxu0
      %v618 = vadd.f32 %v534, %v617
      %v619 = vpop.f32.mrf.mxu0
      %v620 = vadd.f32 %v536, %v619
      %621 = vmatmul.bf16.gmra.mxu0 %v350
      %v622 = vpop.f32.mrf.mxu0
      %v623 = vadd.f32 %v539, %v622
      %v624 = vpop.f32.mrf.mxu0
      %v625 = vadd.f32 %v541, %v624
      %626 = vmatmul.bf16.gmra.mxu0 %v352
      %v627 = vpop.f32.mrf.mxu0
      %v628 = vadd.f32 %v544, %v627
      %v629 = vpop.f32.mrf.mxu0
      %v630 = vadd.f32 %v546, %v629
      %631 = vmatmul.bf16.gmra.mxu0 %v354
      %v632 = vpop.f32.mrf.mxu0
      %v633 = vadd.f32 %v549, %v632
      %v634 = vpop.f32.mrf.mxu0
      %v635 = vadd.f32 %v551, %v634
      %636 = vmatmul.bf16.gmra.mxu0 %v356
      %v637 = vpop.f32.mrf.mxu0
      %v638 = vadd.f32 %v554, %v637
      %v639 = vpop.f32.mrf.mxu0
      %v640 = vadd.f32 %v556, %v639
      %641 = vmatmul.bf16.gmra.mxu0 %v358
      %v642 = vpop.f32.mrf.mxu0
      %v643 = vadd.f32 %v559, %v642
      %v644 = vpop.f32.mrf.mxu0
      %v645 = vadd.f32 %v561, %v644
      %646 = vmatmul.bf16.gmra.mxu0 %v360
      %v647 = vpop.f32.mrf.mxu0
      %v648 = vadd.f32 %v564, %v647
      %v649 = vpop.f32.mrf.mxu0
      %v650 = vadd.f32 %v566, %v649
      %651 = vmatmul.bf16.gmra.mxu0 %v362
      %v652 = vpop.f32.mrf.mxu0
      %v653 = vadd.f32 %v569, %v652
      %v654 = vpop.f32.mrf.mxu0
      %v655 = vadd.f32 %v571, %v654
      %656 = vdwg.mxu0
      %v657 = vmax.f32 %v583, 0.0
      %v658 = vmax.f32 %v585, 0.0
      %v659 = vmax.f32 %v588, 0.0
      %v660 = vmax.f32 %v590, 0.0
      %v661 = vmax.f32 %v593, 0.0
      %v662 = vmax.f32 %v595, 0.0
      %v663 = vmax.f32 %v598, 0.0
      %v664 = vmax.f32 %v600, 0.0
      %v665 = vmax.f32 %v603, 0.0
      %v666 = vmax.f32 %v605, 0.0
      %v667 = vmax.f32 %v608, 0.0
      %v668 = vmax.f32 %v610, 0.0
      %v669 = vmax.f32 %v613, 0.0
      %v670 = vmax.f32 %v615, 0.0
      %v671 = vmax.f32 %v618, 0.0
      %v672 = vmax.f32 %v620, 0.0
      %v673 = vmax.f32 %v623, 0.0
      %v674 = vmax.f32 %v625, 0.0
      %v675 = vmax.f32 %v628, 0.0
      %v676 = vmax.f32 %v630, 0.0
      %v677 = vmax.f32 %v633, 0.0
      %v678 = vmax.f32 %v635, 0.0
      %v679 = vmax.f32 %v638, 0.0
      %v680 = vmax.f32 %v640, 0.0
      %v681 = vmax.f32 %v643, 0.0
      %v682 = vmax.f32 %v645, 0.0
      %v683 = vmax.f32 %v648, 0.0
      %v684 = vmax.f32 %v650, 0.0
      %v685 = vmax.f32 %v653, 0.0
      %v686 = vmax.f32 %v655, 0.0
      %v687 = vpack.c.bf16 %v657, %v657
      %v688 = vpack.c.bf16 %v658, %v658
      %v689 = vpack.c.bf16 %v659, %v659
      %v690 = vpack.c.bf16 %v660, %v660
      %v691 = vpack.c.bf16 %v661, %v661
      %v692 = vpack.c.bf16 %v662, %v662
      %v693 = vpack.c.bf16 %v663, %v663
      %v694 = vpack.c.bf16 %v664, %v664
      %v695 = vpack.c.bf16 %v665, %v665
      %v696 = vpack.c.bf16 %v666, %v666
      %v697 = vpack.c.bf16 %v667, %v667
      %v698 = vpack.c.bf16 %v668, %v668
      %v699 = vpack.c.bf16 %v669, %v669
      %v700 = vpack.c.bf16 %v670, %v670
      %v701 = vpack.c.bf16 %v671, %v671
      %v702 = vpack.c.bf16 %v672, %v672
      %v703 = vpack.c.bf16 %v673, %v673
      %v704 = vpack.c.bf16 %v674, %v674
      %v705 = vpack.c.bf16 %v675, %v675
      %v706 = vpack.c.bf16 %v676, %v676
      %v707 = vpack.c.bf16 %v677, %v677
      %v708 = vpack.c.bf16 %v678, %v678
      %v709 = vpack.c.bf16 %v679, %v679
      %v710 = vpack.c.bf16 %v680, %v680
      %v711 = vpack.c.bf16 %v681, %v681
      %v712 = vpack.c.bf16 %v682, %v682
      %v713 = vpack.c.bf16 %v683, %v683
      %v714 = vpack.c.bf16 %v684, %v684
      %v715 = vpack.c.bf16 %v685, %v685
      %v716 = vpack.c.bf16 %v686, %v686
      %vm717 = vcmask 257024
      %718 = vst.msk [vmem:[%s175] sm:$0xf] %vm717, %v687
      %719 = vst.msk [vmem:[%s175 + $0x4] sm:$0xf] %vm717, %v688
      %720 = vst.msk [vmem:[%s175 + $0x8] sm:$0xf] %vm717, %v689
      %721 = vst.msk [vmem:[%s175 + $0xc] sm:$0xf] %vm717, %v690
      %722 = vst.msk [vmem:[%s175 + $0x10] sm:$0xf] %vm717, %v691
      %723 = vst.msk [vmem:[%s175 + $0x14] sm:$0xf] %vm717, %v692
      %724 = vst.msk [vmem:[%s175 + $0x18] sm:$0xf] %vm717, %v693
      %725 = vst.msk [vmem:[%s175 + $0x1c] sm:$0xf] %vm717, %v694
      %726 = vst.msk [vmem:[%s175 + $0x20] sm:$0xf] %vm717, %v695
      %727 = vst.msk [vmem:[%s175 + $0x24] sm:$0xf] %vm717, %v696
      %728 = vst.msk [vmem:[%s175 + $0x28] sm:$0xf] %vm717, %v697
      %729 = vst.msk [vmem:[%s175 + $0x2c] sm:$0xf] %vm717, %v698
      %730 = vst.msk [vmem:[%s175 + $0x30] sm:$0xf] %vm717, %v699
      %731 = vst.msk [vmem:[%s175 + $0x34] sm:$0xf] %vm717, %v700
      %732 = vst.msk [vmem:[%s175 + $0x38] sm:$0xf] %vm717, %v701
      %733 = vst.msk [vmem:[%s175 + $0x3c] sm:$0xf] %vm717, %v702
      %734 = vst.msk [vmem:[%s175 + $0x40] sm:$0xf] %vm717, %v703
      %735 = vst.msk [vmem:[%s175 + $0x44] sm:$0xf] %vm717, %v704
      %736 = vst.msk [vmem:[%s175 + $0x48] sm:$0xf] %vm717, %v705
      %737 = vst.msk [vmem:[%s175 + $0x4c] sm:$0xf] %vm717, %v706
      %738 = vst.msk [vmem:[%s175 + $0x50] sm:$0xf] %vm717, %v707
      %739 = vst.msk [vmem:[%s175 + $0x54] sm:$0xf] %vm717, %v708
      %740 = vst.msk [vmem:[%s175 + $0x58] sm:$0xf] %vm717, %v709
      %741 = vst.msk [vmem:[%s175 + $0x5c] sm:$0xf] %vm717, %v710
      %742 = vst.msk [vmem:[%s175 + $0x60] sm:$0xf] %vm717, %v711
      %743 = vst.msk [vmem:[%s175 + $0x64] sm:$0xf] %vm717, %v712
      %744 = vst.msk [vmem:[%s175 + $0x68] sm:$0xf] %vm717, %v713
      %745 = vst.msk [vmem:[%s175 + $0x6c] sm:$0xf] %vm717, %v714
      %746 = vst.msk [vmem:[%s175 + $0x70] sm:$0xf] %vm717, %v715
      %747 = vst.msk [vmem:[%s175 + $0x74] sm:$0xf] %vm717, %v716
      %s748 = smul.u32 30, %s14
      %p749 = scmp.lt.s32.totalorder %s748, 59
      %s750 = scalar_select %p749, %s748, 59
      %s751 = smul.addr %s750, 4
      %s752 = scalar_lea.vmem %s3, %s751
      // Predicated region
      $region33: #{bcq_encoder_forward.4} parent=31 // pred_check
        %p753 = pneg %p100
      $region34: #{bcq_encoder_forward.4} parent=31 // pred_check_branch
        %755 = sbr.rel (%p753) target = $region36
      $region35: #{bcq_encoder_forward.4} parent=31 // pred_region
        %s756 = smul.u32 30, %s14
      $region36: #{bcq_encoder_forward.4} parent=31 // pred_fallthru
        _
    $region32: #{bcq_encoder_forward.4} parent=5 // pred_fallthru
      _
    %p757 = scmp.le.s32.totalorder 2, %s9
    // Predicated region
    $region37: #{bcq_encoder_forward.4} parent=5 // pred_check
      %p758 = pneg %p757
    $region38: #{bcq_encoder_forward.4} parent=5 // pred_check_branch
      %760 = sbr.rel (%p758) target = $region40
    $region39: #{bcq_encoder_forward.4} parent=5 // pred_region
      %s761 = ssub.s32 %s9, 2
      // Predicated region
      $region41: #{bcq_encoder_forward.4} parent=39 // pred_check
        %p762 = pneg %p106
      $region42: #{bcq_encoder_forward.4} parent=39 // pred_check_branch
        %764 = sbr.rel (%p762) target = $region44
      $region43: #{bcq_encoder_forward.4} parent=39 // pred_region
        %s765 = smul.u32 30, %s15
        %p766 = scmp.lt.s32.totalorder %s765, 59
        %s767 = scalar_select %p766, %s765, 59
        %s768 = smul.addr %s767, 4
        %s769 = scalar_lea.vmem %s3, %s768
      $region44: #{bcq_encoder_forward.4} parent=39 // pred_fallthru
        _
    $region40: #{bcq_encoder_forward.4} parent=5 // pred_fallthru
      _
  $region6: #{bcq_encoder_forward.4} parent=0 // loop_footer
    %s13 = sadd.s32 1, %s9
  $region7: #{bcq_encoder_forward.4} parent=0 // loop_footer_branch
    %8 = sbr.rel target = $region3
  $region8: #{bcq_encoder_forward.4} parent=0 // loop_exit
    _

// kernel: bcq_encoder_forward.5
$region0: #{bcq_encoder_forward.5}
  #allocation0 [shape = 'u32[]', space=smem, size = 0x4, offset = 0x4, fixed_abs, tag = 'smem constant byte address 0x4 - core index']
  #allocation1 [shape = 'u32[72,128]{1,0:T(1,128)}', space=vmem, size = 0x9000, scoped, tag = 'internal scratch']
  %s0 = inlined_call_operand.vmem [shape: bf16[80,512], index: 0, kind: input, shape index: {}]
  %s1 = inlined_call_operand.vmem [shape: bf16[512,64], index: 1, kind: input, shape index: {}]
  %s2 = inlined_call_operand.vmem [shape: f32[1,64], index: 2, kind: input, shape index: {}]
  %s3 = inlined_call_operand.vmem [shape: bf16[80,64], index: 3, kind: output, shape index: {}]
  %s4 = sld [smem:[#allocation0]]
  $region22: #{bcq_encoder_forward.5} parent=0
    _
  %s6 = ssub.s32 1, %s4
  %s7 = scalar_select 0, %s6, %s4
  // Predicated region
  $region2: #{bcq_encoder_forward.5} parent=0 // pred_check
    _
  $region3: #{bcq_encoder_forward.5} parent=0 // pred_check_branch
    %9 = sbr.rel (0) target = $region5
  $region4: #{bcq_encoder_forward.5} parent=0 // pred_region
    _
  $region5: #{bcq_encoder_forward.5} parent=0 // pred_fallthru
    _
  // Predicated region
  $region6: #{bcq_encoder_forward.5} parent=0 // pred_check
    _
  $region7: #{bcq_encoder_forward.5} parent=0 // pred_check_branch
    %11 = sbr.rel (0) target = $region9
  $region8: #{bcq_encoder_forward.5} parent=0 // pred_region
    _
  $region9: #{bcq_encoder_forward.5} parent=0 // pred_fallthru
    _
  // Predicated region
  $region10: #{bcq_encoder_forward.5} parent=0 // pred_check
    _
  $region11: #{bcq_encoder_forward.5} parent=0 // pred_check_branch
    %13 = sbr.rel (0) target = $region13
  $region12: #{bcq_encoder_forward.5} parent=0 // pred_region
    _
  $region13: #{bcq_encoder_forward.5} parent=0 // pred_fallthru
    _
  %v14 = vld [vmem:[%s0] sm:$0xff]
  %v15 = vld [vmem:[%s0 + $0x8] sm:$0xff]
  %v16 = vld [vmem:[%s0 + $0x10] sm:$0xff]
  %v17 = vld [vmem:[%s0 + $0x18] sm:$0xff]
  %v18 = vld [vmem:[%s0 + $0x20] sm:$0xff]
  %v19 = vld [vmem:[%s0 + $0x28] sm:$0xff]
  %v20 = vld [vmem:[%s0 + $0x30] sm:$0xff]
  %v21 = vld [vmem:[%s0 + $0x38] sm:$0xff]
  %v22 = vld [vmem:[%s0 + $0x40] sm:$0xff]
  %v23 = vld [vmem:[%s0 + $0x48] sm:$0xff]
  %v24 = vld [vmem:[%s0 + $0x50] sm:$0xff]
  %v25 = vld [vmem:[%s0 + $0x58] sm:$0xff]
  %v26 = vld [vmem:[%s0 + $0x60] sm:$0xff]
  %v27 = vld [vmem:[%s0 + $0x68] sm:$0xff]
  %v28 = vld [vmem:[%s0 + $0x70] sm:$0xff]
  %v29 = vld [vmem:[%s0 + $0x78] sm:$0xff]
  %v30 = vld [vmem:[%s0 + $0x80] sm:$0xff]
  %v31 = vld [vmem:[%s0 + $0x88] sm:$0xff]
  %v32 = vld [vmem:[%s0 + $0x90] sm:$0xff]
  %v33 = vld [vmem:[%s0 + $0x98] sm:$0xff]
  %v34 = vld [vmem:[%s1] sm:$0xf]
  %v35 = vld [vmem:[%s1 + $0x4] sm:$0xf]
  %v36 = vld [vmem:[%s1 + $0x8] sm:$0xf]
  %v37 = vld [vmem:[%s1 + $0xc] sm:$0xf]
  %v38 = vld [vmem:[%s1 + $0x10] sm:$0xf]
  %v39 = vld [vmem:[%s1 + $0x14] sm:$0xf]
  %v40 = vld [vmem:[%s1 + $0x18] sm:$0xf]
  %v41 = vld [vmem:[%s1 + $0x1c] sm:$0xf]
  %v42 = vld [vmem:[%s1 + $0x20] sm:$0xf]
  %v43 = vld [vmem:[%s1 + $0x24] sm:$0xf]
  %v44 = vld [vmem:[%s1 + $0x28] sm:$0xf]
  %v45 = vld [vmem:[%s1 + $0x2c] sm:$0xf]
  %v46 = vld [vmem:[%s1 + $0x30] sm:$0xf]
  %v47 = vld [vmem:[%s1 + $0x34] sm:$0xf]
  %v48 = vld [vmem:[%s1 + $0x38] sm:$0xf]
  %v49 = vld [vmem:[%s1 + $0x3c] sm:$0xf]
  %v50 = vld [vmem:[%s1 + $0x40] sm:$0xf]
  %v51 = vld [vmem:[%s1 + $0x44] sm:$0xf]
  %v52 = vld [vmem:[%s1 + $0x48] sm:$0xf]
  %v53 = vld [vmem:[%s1 + $0x4c] sm:$0xf]
  %v54 = vld [vmem:[%s1 + $0x50] sm:$0xf]
  %v55 = vld [vmem:[%s1 + $0x54] sm:$0xf]
  %v56 = vld [vmem:[%s1 + $0x58] sm:$0xf]
  %v57 = vld [vmem:[%s1 + $0x5c] sm:$0xf]
  %v58 = vld [vmem:[%s1 + $0x60] sm:$0xf]
  %v59 = vld [vmem:[%s1 + $0x64] sm:$0xf]
  %v60 = vld [vmem:[%s1 + $0x68] sm:$0xf]
  %v61 = vld [vmem:[%s1 + $0x6c] sm:$0xf]
  %v62 = vld [vmem:[%s1 + $0x70] sm:$0xf]
  %v63 = vld [vmem:[%s1 + $0x74] sm:$0xf]
  %v64 = vld [vmem:[%s1 + $0x78] sm:$0xf]
  %v65 = vld [vmem:[%s1 + $0x7c] sm:$0xf]
  %v66 = vld [vmem:[%s1 + $0x80] sm:$0xf]
  %v67 = vld [vmem:[%s1 + $0x84] sm:$0xf]
  %v68 = vld [vmem:[%s1 + $0x88] sm:$0xf]
  %v69 = vld [vmem:[%s1 + $0x8c] sm:$0xf]
  %v70 = vld [vmem:[%s1 + $0x90] sm:$0xf]
  %v71 = vld [vmem:[%s1 + $0x94] sm:$0xf]
  %v72 = vld [vmem:[%s1 + $0x98] sm:$0xf]
  %v73 = vld [vmem:[%s1 + $0x9c] sm:$0xf]
  %v74 = vld [vmem:[%s1 + $0xa0] sm:$0xf]
  %v75 = vld [vmem:[%s1 + $0xa4] sm:$0xf]
  %v76 = vld [vmem:[%s1 + $0xa8] sm:$0xf]
  %v77 = vld [vmem:[%s1 + $0xac] sm:$0xf]
  %v78 = vld [vmem:[%s1 + $0xb0] sm:$0xf]
  %v79 = vld [vmem:[%s1 + $0xb4] sm:$0xf]
  %v80 = vld [vmem:[%s1 + $0xb8] sm:$0xf]
  %v81 = vld [vmem:[%s1 + $0xbc] sm:$0xf]
  %v82 = vld [vmem:[%s1 + $0xc0] sm:$0xf]
  %v83 = vld [vmem:[%s1 + $0xc4] sm:$0xf]
  %v84 = vld [vmem:[%s1 + $0xc8] sm:$0xf]
  %v85 = vld [vmem:[%s1 + $0xcc] sm:$0xf]
  %v86 = vld [vmem:[%s1 + $0xd0] sm:$0xf]
  %v87 = vld [vmem:[%s1 + $0xd4] sm:$0xf]
  %v88 = vld [vmem:[%s1 + $0xd8] sm:$0xf]
  %v89 = vld [vmem:[%s1 + $0xdc] sm:$0xf]
  %v90 = vld [vmem:[%s1 + $0xe0] sm:$0xf]
  %v91 = vld [vmem:[%s1 + $0xe4] sm:$0xf]
  %v92 = vld [vmem:[%s1 + $0xe8] sm:$0xf]
  %v93 = vld [vmem:[%s1 + $0xec] sm:$0xf]
  %v94 = vld [vmem:[%s1 + $0xf0] sm:$0xf]
  %v95 = vld [vmem:[%s1 + $0xf4] sm:$0xf]
  %v96 = vld [vmem:[%s1 + $0xf8] sm:$0xf]
  %v97 = vld [vmem:[%s1 + $0xfc] sm:$0xf]
  %v98 = vld [vmem:[%s2] sm:$0x1]
  %v100 = vperm.slane %v98, 0
  %v122 = vunpack.c.l.b16 %v14
  %v123 = vunpack.c.h.b16 %v14
  %v124 = vunpack.c.l.b16 %v15
  %v125 = vunpack.c.h.b16 %v15
  %v126 = vunpack.c.l.b16 %v16
  %v127 = vunpack.c.h.b16 %v16
  %v128 = vunpack.c.l.b16 %v17
  %v129 = vunpack.c.h.b16 %v17
  %v130 = vunpack.c.l.b16 %v18
  %v131 = vunpack.c.h.b16 %v18
  %v132 = vunpack.c.l.b16 %v19
  %v133 = vunpack.c.h.b16 %v19
  %v134 = vunpack.c.l.b16 %v20
  %v135 = vunpack.c.h.b16 %v20
  %v136 = vunpack.c.l.b16 %v21
  %v137 = vunpack.c.h.b16 %v21
  %v138 = vunpack.c.l.b16 %v22
  %v139 = vunpack.c.h.b16 %v22
  %v140 = vunpack.c.l.b16 %v23
  %v141 = vunpack.c.h.b16 %v23
  %v142 = vunpack.c.l.b16 %v24
  %v143 = vunpack.c.h.b16 %v24
  %v144 = vunpack.c.l.b16 %v25
  %v145 = vunpack.c.h.b16 %v25
  %v146 = vunpack.c.l.b16 %v26
  %v147 = vunpack.c.h.b16 %v26
  %v148 = vunpack.c.l.b16 %v27
  %v149 = vunpack.c.h.b16 %v27
  %v150 = vunpack.c.l.b16 %v28
  %v151 = vunpack.c.h.b16 %v28
  %v152 = vunpack.c.l.b16 %v29
  %v153 = vunpack.c.h.b16 %v29
  %v154 = vunpack.c.l.b16 %v30
  %v155 = vunpack.c.h.b16 %v30
  %v156 = vunpack.c.l.b16 %v31
  %v157 = vunpack.c.h.b16 %v31
  %v158 = vunpack.c.l.b16 %v32
  %v159 = vunpack.c.h.b16 %v32
  %v160 = vunpack.c.l.b16 %v33
  %v161 = vunpack.c.h.b16 %v33
  %v162 = vpack.c.b16 %v126, %v122
  %v163 = vpack.c.b16 %v127, %v123
  %v164 = vpack.c.b16 %v128, %v124
  %v165 = vpack.c.b16 %v129, %v125
  %v166 = vpack.c.b16 %v134, %v130
  %v167 = vpack.c.b16 %v135, %v131
  %v168 = vpack.c.b16 %v136, %v132
  %v169 = vpack.c.b16 %v137, %v133
  %v170 = vpack.c.b16 %v142, %v138
  %v171 = vpack.c.b16 %v143, %v139
  %v172 = vpack.c.b16 %v144, %v140
  %v173 = vpack.c.b16 %v145, %v141
  %v174 = vpack.c.b16 %v150, %v146
  %v175 = vpack.c.b16 %v151, %v147
  %v176 = vpack.c.b16 %v152, %v148
  %v177 = vpack.c.b16 %v153, %v149
  %v178 = vpack.c.b16 %v158, %v154
  %v179 = vpack.c.b16 %v159, %v155
  %v180 = vpack.c.b16 %v160, %v156
  %v181 = vpack.c.b16 %v161, %v157
  %v266 = vunpack.c.l.b16 %v34
  %v267 = vunpack.c.l.b16 %v35
  %v268 = vunpack.c.l.b16 %v36
  %v269 = vunpack.c.l.b16 %v37
  %v270 = vunpack.c.l.b16 %v38
  %v271 = vunpack.c.l.b16 %v39
  %v272 = vunpack.c.l.b16 %v40
  %v273 = vunpack.c.l.b16 %v41
  %v274 = vunpack.c.l.b16 %v42
  %v275 = vunpack.c.l.b16 %v43
  %v276 = vunpack.c.l.b16 %v44
  %v277 = vunpack.c.l.b16 %v45
  %v278 = vunpack.c.l.b16 %v46
  %v279 = vunpack.c.l.b16 %v47
  %v280 = vunpack.c.l.b16 %v48
  %v281 = vunpack.c.l.b16 %v49
  %v282 = vunpack.c.l.b16 %v50
  %v283 = vunpack.c.l.b16 %v51
  %v284 = vunpack.c.l.b16 %v52
  %v285 = vunpack.c.l.b16 %v53
  %v286 = vunpack.c.l.b16 %v54
  %v287 = vunpack.c.l.b16 %v55
  %v288 = vunpack.c.l.b16 %v56
  %v289 = vunpack.c.l.b16 %v57
  %v290 = vunpack.c.l.b16 %v58
  %v291 = vunpack.c.l.b16 %v59
  %v292 = vunpack.c.l.b16 %v60
  %v293 = vunpack.c.l.b16 %v61
  %v294 = vunpack.c.l.b16 %v62
  %v295 = vunpack.c.l.b16 %v63
  %v296 = vunpack.c.l.b16 %v64
  %v297 = vunpack.c.l.b16 %v65
  %v298 = vunpack.c.l.b16 %v66
  %v299 = vunpack.c.l.b16 %v67
  %v300 = vunpack.c.l.b16 %v68
  %v301 = vunpack.c.l.b16 %v69
  %v302 = vunpack.c.l.b16 %v70
  %v303 = vunpack.c.l.b16 %v71
  %v304 = vunpack.c.l.b16 %v72
  %v305 = vunpack.c.l.b16 %v73
  %v306 = vunpack.c.l.b16 %v74
  %v307 = vunpack.c.l.b16 %v75
  %v308 = vunpack.c.l.b16 %v76
  %v309 = vunpack.c.l.b16 %v77
  %v310 = vunpack.c.l.b16 %v78
  %v311 = vunpack.c.l.b16 %v79
  %v312 = vunpack.c.l.b16 %v80
  %v313 = vunpack.c.l.b16 %v81
  %v314 = vunpack.c.l.b16 %v82
  %v315 = vunpack.c.l.b16 %v83
  %v316 = vunpack.c.l.b16 %v84
  %v317 = vunpack.c.l.b16 %v85
  %v318 = vunpack.c.l.b16 %v86
  %v319 = vunpack.c.l.b16 %v87
  %v320 = vunpack.c.l.b16 %v88
  %v321 = vunpack.c.l.b16 %v89
  %v322 = vunpack.c.l.b16 %v90
  %v323 = vunpack.c.l.b16 %v91
  %v324 = vunpack.c.l.b16 %v92
  %v325 = vunpack.c.l.b16 %v93
  %v326 = vunpack.c.l.b16 %v94
  %v327 = vunpack.c.l.b16 %v95
  %v328 = vunpack.c.l.b16 %v96
  %v329 = vunpack.c.l.b16 %v97
  %v330 = vpack.c.b16 %v267, %v266
  %v331 = vpack.c.b16 %v269, %v268
  %v332 = vpack.c.b16 %v271, %v270
  %v333 = vpack.c.b16 %v273, %v272
  %v334 = vpack.c.b16 %v275, %v274
  %v335 = vpack.c.b16 %v277, %v276
  %v336 = vpack.c.b16 %v279, %v278
  %v337 = vpack.c.b16 %v281, %v280
  %v338 = vpack.c.b16 %v283, %v282
  %v339 = vpack.c.b16 %v285, %v284
  %v340 = vpack.c.b16 %v287, %v286
  %v341 = vpack.c.b16 %v289, %v288
  %v342 = vpack.c.b16 %v291, %v290
  %v343 = vpack.c.b16 %v293, %v292
  %v344 = vpack.c.b16 %v295, %v294
  %v345 = vpack.c.b16 %v297, %v296
  %v346 = vpack.c.b16 %v299, %v298
  %v347 = vpack.c.b16 %v301, %v300
  %v348 = vpack.c.b16 %v303, %v302
  %v349 = vpack.c.b16 %v305, %v304
  %v350 = vpack.c.b16 %v307, %v306
  %v351 = vpack.c.b16 %v309, %v308
  %v352 = vpack.c.b16 %v311, %v310
  %v353 = vpack.c.b16 %v313, %v312
  %v354 = vpack.c.b16 %v315, %v314
  %v355 = vpack.c.b16 %v317, %v316
  %v356 = vpack.c.b16 %v319, %v318
  %v357 = vpack.c.b16 %v321, %v320
  %v358 = vpack.c.b16 %v323, %v322
  %v359 = vpack.c.b16 %v325, %v324
  %v360 = vpack.c.b16 %v327, %v326
  %v361 = vpack.c.b16 %v329, %v328
  %394 = vmatpush.bf16.msra.mxu0 %v337
  %395 = vmatpush.bf16.msra.mxu0 %v336
  %396 = vmatpush.bf16.msra.mxu0 %v335
  %397 = vmatpush.bf16.msra.mxu0 %v334
  %398 = vmatpush.bf16.msra.mxu0 %v333
  %399 = vmatpush.bf16.msra.mxu0 %v332
  %400 = vmatpush.bf16.msra.mxu0 %v331
  %401 = vmatpush.bf16.msra.mxu0 %v330
  %402 = vmatmul.bf16.gmra.mxu0 %v162
  %v403 = vpop.f32.mrf.mxu0
  %v404 = vadd.f32 %v100, %v403
  %v405 = vpop.f32.mrf.mxu0
  %v406 = vadd.f32 %v100, %v405
  %407 = vmatmul.bf16.gmra.mxu0 %v166
  %v408 = vpop.f32.mrf.mxu0
  %v409 = vadd.f32 %v100, %v408
  %v410 = vpop.f32.mrf.mxu0
  %v411 = vadd.f32 %v100, %v410
  %412 = vmatmul.bf16.gmra.mxu0 %v170
  %v413 = vpop.f32.mrf.mxu0
  %v414 = vadd.f32 %v100, %v413
  %v415 = vpop.f32.mrf.mxu0
  %v416 = vadd.f32 %v100, %v415
  %417 = vmatmul.bf16.gmra.mxu0 %v174
  %v418 = vpop.f32.mrf.mxu0
  %v419 = vadd.f32 %v100, %v418
  %v420 = vpop.f32.mrf.mxu0
  %v421 = vadd.f32 %v100, %v420
  %422 = vmatmul.bf16.gmra.mxu0 %v178
  %v423 = vpop.f32.mrf.mxu0
  %v424 = vadd.f32 %v100, %v423
  %v425 = vpop.f32.mrf.mxu0
  %v426 = vadd.f32 %v100, %v425
  %427 = vdwg.mxu0
  %428 = vmatpush.bf16.msra.mxu0 %v345
  %429 = vmatpush.bf16.msra.mxu0 %v344
  %430 = vmatpush.bf16.msra.mxu0 %v343
  %431 = vmatpush.bf16.msra.mxu0 %v342
  %432 = vmatpush.bf16.msra.mxu0 %v341
  %433 = vmatpush.bf16.msra.mxu0 %v340
  %434 = vmatpush.bf16.msra.mxu0 %v339
  %435 = vmatpush.bf16.msra.mxu0 %v338
  %436 = vmatmul.bf16.gmra.mxu0 %v163
  %v437 = vpop.f32.mrf.mxu0
  %v438 = vadd.f32 %v404, %v437
  %v439 = vpop.f32.mrf.mxu0
  %v440 = vadd.f32 %v406, %v439
  %441 = vmatmul.bf16.gmra.mxu0 %v167
  %v442 = vpop.f32.mrf.mxu0
  %v443 = vadd.f32 %v409, %v442
  %v444 = vpop.f32.mrf.mxu0
  %v445 = vadd.f32 %v411, %v444
  %446 = vmatmul.bf16.gmra.mxu0 %v171
  %v447 = vpop.f32.mrf.mxu0
  %v448 = vadd.f32 %v414, %v447
  %v449 = vpop.f32.mrf.mxu0
  %v450 = vadd.f32 %v416, %v449
  %451 = vmatmul.bf16.gmra.mxu0 %v175
  %v452 = vpop.f32.mrf.mxu0
  %v453 = vadd.f32 %v419, %v452
  %v454 = vpop.f32.mrf.mxu0
  %v455 = vadd.f32 %v421, %v454
  %456 = vmatmul.bf16.gmra.mxu0 %v179
  %v457 = vpop.f32.mrf.mxu0
  %v458 = vadd.f32 %v424, %v457
  %v459 = vpop.f32.mrf.mxu0
  %v460 = vadd.f32 %v426, %v459
  %461 = vdwg.mxu0
  %462 = vmatpush.bf16.msra.mxu0 %v353
  %463 = vmatpush.bf16.msra.mxu0 %v352
  %464 = vmatpush.bf16.msra.mxu0 %v351
  %465 = vmatpush.bf16.msra.mxu0 %v350
  %466 = vmatpush.bf16.msra.mxu0 %v349
  %467 = vmatpush.bf16.msra.mxu0 %v348
  %468 = vmatpush.bf16.msra.mxu0 %v347
  %469 = vmatpush.bf16.msra.mxu0 %v346
  %470 = vmatmul.bf16.gmra.mxu0 %v164
  %v471 = vpop.f32.mrf.mxu0
  %v472 = vadd.f32 %v438, %v471
  %v473 = vpop.f32.mrf.mxu0
  %v474 = vadd.f32 %v440, %v473
  %475 = vmatmul.bf16.gmra.mxu0 %v168
  %v476 = vpop.f32.mrf.mxu0
  %v477 = vadd.f32 %v443, %v476
  %v478 = vpop.f32.mrf.mxu0
  %v479 = vadd.f32 %v445, %v478
  %480 = vmatmul.bf16.gmra.mxu0 %v172
  %v481 = vpop.f32.mrf.mxu0
  %v482 = vadd.f32 %v448, %v481
  %v483 = vpop.f32.mrf.mxu0
  %v484 = vadd.f32 %v450, %v483
  %485 = vmatmul.bf16.gmra.mxu0 %v176
  %v486 = vpop.f32.mrf.mxu0
  %v487 = vadd.f32 %v453, %v486
  %v488 = vpop.f32.mrf.mxu0
  %v489 = vadd.f32 %v455, %v488
  %490 = vmatmul.bf16.gmra.mxu0 %v180
  %v491 = vpop.f32.mrf.mxu0
  %v492 = vadd.f32 %v458, %v491
  %v493 = vpop.f32.mrf.mxu0
  %v494 = vadd.f32 %v460, %v493
  %495 = vdwg.mxu0
  %496 = vmatpush.bf16.msra.mxu0 %v361
  %497 = vmatpush.bf16.msra.mxu0 %v360
  %498 = vmatpush.bf16.msra.mxu0 %v359
  %499 = vmatpush.bf16.msra.mxu0 %v358
  %500 = vmatpush.bf16.msra.mxu0 %v357
  %501 = vmatpush.bf16.msra.mxu0 %v356
  %502 = vmatpush.bf16.msra.mxu0 %v355
  %503 = vmatpush.bf16.msra.mxu0 %v354
  %504 = vmatmul.bf16.gmra.mxu0 %v165
  %v505 = vpop.f32.mrf.mxu0
  %v506 = vadd.f32 %v472, %v505
  %v507 = vpop.f32.mrf.mxu0
  %v508 = vadd.f32 %v474, %v507
  %509 = vmatmul.bf16.gmra.mxu0 %v169
  %v510 = vpop.f32.mrf.mxu0
  %v511 = vadd.f32 %v477, %v510
  %v512 = vpop.f32.mrf.mxu0
  %v513 = vadd.f32 %v479, %v512
  %514 = vmatmul.bf16.gmra.mxu0 %v173
  %v515 = vpop.f32.mrf.mxu0
  %v516 = vadd.f32 %v482, %v515
  %v517 = vpop.f32.mrf.mxu0
  %v518 = vadd.f32 %v484, %v517
  %519 = vmatmul.bf16.gmra.mxu0 %v177
  %v520 = vpop.f32.mrf.mxu0
  %v521 = vadd.f32 %v487, %v520
  %v522 = vpop.f32.mrf.mxu0
  %v523 = vadd.f32 %v489, %v522
  %524 = vmatmul.bf16.gmra.mxu0 %v181
  %v525 = vpop.f32.mrf.mxu0
  %v526 = vadd.f32 %v492, %v525
  %v527 = vpop.f32.mrf.mxu0
  %v528 = vadd.f32 %v494, %v527
  %529 = vdwg.mxu0
  %v530 = vmax.f32 %v506, 0.0
  %v531 = vmax.f32 %v508, 0.0
  %v532 = vmax.f32 %v511, 0.0
  %v533 = vmax.f32 %v513, 0.0
  %v534 = vmax.f32 %v516, 0.0
  %v535 = vmax.f32 %v518, 0.0
  %v536 = vmax.f32 %v521, 0.0
  %v537 = vmax.f32 %v523, 0.0
  %v538 = vmax.f32 %v526, 0.0
  %v539 = vmax.f32 %v528, 0.0
  %v540 = vpack.c.bf16 %v530, %v530
  %v541 = vpack.c.bf16 %v531, %v531
  %v542 = vpack.c.bf16 %v532, %v532
  %v543 = vpack.c.bf16 %v533, %v533
  %v544 = vpack.c.bf16 %v534, %v534
  %v545 = vpack.c.bf16 %v535, %v535
  %v546 = vpack.c.bf16 %v536, %v536
  %v547 = vpack.c.bf16 %v537, %v537
  %v548 = vpack.c.bf16 %v538, %v538
  %v549 = vpack.c.bf16 %v539, %v539
  %vm550 = vcmask 519168
  %551 = vst.msk [vmem:[%s3] sm:$0xf] %vm550, %v540
  %552 = vst.msk [vmem:[%s3 + $0x4] sm:$0xf] %vm550, %v541
  %553 = vst.msk [vmem:[%s3 + $0x8] sm:$0xf] %vm550, %v542
  %554 = vst.msk [vmem:[%s3 + $0xc] sm:$0xf] %vm550, %v543
  %555 = vst.msk [vmem:[%s3 + $0x10] sm:$0xf] %vm550, %v544
  %556 = vst.msk [vmem:[%s3 + $0x14] sm:$0xf] %vm550, %v545
  %557 = vst.msk [vmem:[%s3 + $0x18] sm:$0xf] %vm550, %v546
  %558 = vst.msk [vmem:[%s3 + $0x1c] sm:$0xf] %vm550, %v547
  %559 = vst.msk [vmem:[%s3 + $0x20] sm:$0xf] %vm550, %v548
  %560 = vst.msk [vmem:[%s3 + $0x24] sm:$0xf] %vm550, %v549
  // Predicated region
  $region14: #{bcq_encoder_forward.5} parent=0 // pred_check
    _
  $region15: #{bcq_encoder_forward.5} parent=0 // pred_check_branch
    %562 = sbr.rel (0) target = $region17
  $region16: #{bcq_encoder_forward.5} parent=0 // pred_region
    _
  $region17: #{bcq_encoder_forward.5} parent=0 // pred_fallthru
    _
  // Predicated region
  $region18: #{bcq_encoder_forward.5} parent=0 // pred_check
    _
  $region19: #{bcq_encoder_forward.5} parent=0 // pred_check_branch
    %564 = sbr.rel (0) target = $region21
  $region20: #{bcq_encoder_forward.5} parent=0 // pred_region
    _
  $region21: #{bcq_encoder_forward.5} parent=0 // pred_fallthru
    _

// kernel: bcq_encoder_forward.6
$region0: #{bcq_encoder_forward.6}
  #allocation0 [shape = 'u32[]', space=smem, size = 0x4, offset = 0x4, fixed_abs, tag = 'smem constant byte address 0x4 - core index']
  #allocation1 [shape = 'u32[72,128]{1,0:T(1,128)}', space=vmem, size = 0x9000, scoped, tag = 'internal scratch']
  %s0 = inlined_call_operand.vmem [shape: bf16[32,576], index: 0, kind: input, shape index: {}]
  %s1 = inlined_call_operand.vmem [shape: bf16[576,64], index: 1, kind: input, shape index: {}]
  %s2 = inlined_call_operand.vmem [shape: f32[1,64], index: 2, kind: input, shape index: {}]
  %s3 = inlined_call_operand.vmem [shape: bf16[32,64], index: 3, kind: output, shape index: {}]
  %s4 = sld [smem:[#allocation0]]
  $region22: #{bcq_encoder_forward.6} parent=0
    _
  %s6 = ssub.s32 1, %s4
  %s7 = scalar_select 0, %s6, %s4
  // Predicated region
  $region2: #{bcq_encoder_forward.6} parent=0 // pred_check
    _
  $region3: #{bcq_encoder_forward.6} parent=0 // pred_check_branch
    %9 = sbr.rel (0) target = $region5
  $region4: #{bcq_encoder_forward.6} parent=0 // pred_region
    _
  $region5: #{bcq_encoder_forward.6} parent=0 // pred_fallthru
    _
  // Predicated region
  $region6: #{bcq_encoder_forward.6} parent=0 // pred_check
    _
  $region7: #{bcq_encoder_forward.6} parent=0 // pred_check_branch
    %11 = sbr.rel (0) target = $region9
  $region8: #{bcq_encoder_forward.6} parent=0 // pred_region
    _
  $region9: #{bcq_encoder_forward.6} parent=0 // pred_fallthru
    _
  // Predicated region
  $region10: #{bcq_encoder_forward.6} parent=0 // pred_check
    _
  $region11: #{bcq_encoder_forward.6} parent=0 // pred_check_branch
    %13 = sbr.rel (0) target = $region13
  $region12: #{bcq_encoder_forward.6} parent=0 // pred_region
    _
  $region13: #{bcq_encoder_forward.6} parent=0 // pred_fallthru
    _
  %v15 = vld [vmem:[%s0] sm:$0xff]
  %v16 = vld [vmem:[%s0 + $0x8] sm:$0xff]
  %v17 = vld [vmem:[%s0 + $0x10] sm:$0xf]
  %v18 = vld [vmem:[%s0 + $0x14] sm:$0xff]
  %v19 = vld [vmem:[%s0 + $0x1c] sm:$0xff]
  %v20 = vld [vmem:[%s0 + $0x24] sm:$0xf]
  %v21 = vld [vmem:[%s0 + $0x28] sm:$0xff]
  %v22 = vld [vmem:[%s0 + $0x30] sm:$0xff]
  %v23 = vld [vmem:[%s0 + $0x38] sm:$0xf]
  %v24 = vld [vmem:[%s0 + $0x3c] sm:$0xff]
  %v25 = vld [vmem:[%s0 + $0x44] sm:$0xff]
  %v26 = vld [vmem:[%s0 + $0x4c] sm:$0xf]
  %v27 = vld [vmem:[%s1] sm:$0xf]
  %v28 = vld [vmem:[%s1 + $0x4] sm:$0xf]
  %v29 = vld [vmem:[%s1 + $0x8] sm:$0xf]
  %v30 = vld [vmem:[%s1 + $0xc] sm:$0xf]
  %v31 = vld [vmem:[%s1 + $0x10] sm:$0xf]
  %v32 = vld [vmem:[%s1 + $0x14] sm:$0xf]
  %v33 = vld [vmem:[%s1 + $0x18] sm:$0xf]
  %v34 = vld [vmem:[%s1 + $0x1c] sm:$0xf]
  %v35 = vld [vmem:[%s1 + $0x20] sm:$0xf]
  %v36 = vld [vmem:[%s1 + $0x24] sm:$0xf]
  %v37 = vld [vmem:[%s1 + $0x28] sm:$0xf]
  %v38 = vld [vmem:[%s1 + $0x2c] sm:$0xf]
  %v39 = vld [vmem:[%s1 + $0x30] sm:$0xf]
  %v40 = vld [vmem:[%s1 + $0x34] sm:$0xf]
  %v41 = vld [vmem:[%s1 + $0x38] sm:$0xf]
  %v42 = vld [vmem:[%s1 + $0x3c] sm:$0xf]
  %v43 = vld [vmem:[%s1 + $0x40] sm:$0xf]
  %v44 = vld [vmem:[%s1 + $0x44] sm:$0xf]
  %v45 = vld [vmem:[%s1 + $0x48] sm:$0xf]
  %v46 = vld [vmem:[%s1 + $0x4c] sm:$0xf]
  %v47 = vld [vmem:[%s1 + $0x50] sm:$0xf]
  %v48 = vld [vmem:[%s1 + $0x54] sm:$0xf]
  %v49 = vld [vmem:[%s1 + $0x58] sm:$0xf]
  %v50 = vld [vmem:[%s1 + $0x5c] sm:$0xf]
  %v51 = vld [vmem:[%s1 + $0x60] sm:$0xf]
  %v52 = vld [vmem:[%s1 + $0x64] sm:$0xf]
  %v53 = vld [vmem:[%s1 + $0x68] sm:$0xf]
  %v54 = vld [vmem:[%s1 + $0x6c] sm:$0xf]
  %v55 = vld [vmem:[%s1 + $0x70] sm:$0xf]
  %v56 = vld [vmem:[%s1 + $0x74] sm:$0xf]
  %v57 = vld [vmem:[%s1 + $0x78] sm:$0xf]
  %v58 = vld [vmem:[%s1 + $0x7c] sm:$0xf]
  %v59 = vld [vmem:[%s1 + $0x80] sm:$0xf]
  %v60 = vld [vmem:[%s1 + $0x84] sm:$0xf]
  %v61 = vld [vmem:[%s1 + $0x88] sm:$0xf]
  %v62 = vld [vmem:[%s1 + $0x8c] sm:$0xf]
  %v63 = vld [vmem:[%s1 + $0x90] sm:$0xf]
  %v64 = vld [vmem:[%s1 + $0x94] sm:$0xf]
  %v65 = vld [vmem:[%s1 + $0x98] sm:$0xf]
  %v66 = vld [vmem:[%s1 + $0x9c] sm:$0xf]
  %v67 = vld [vmem:[%s1 + $0xa0] sm:$0xf]
  %v68 = vld [vmem:[%s1 + $0xa4] sm:$0xf]
  %v69 = vld [vmem:[%s1 + $0xa8] sm:$0xf]
  %v70 = vld [vmem:[%s1 + $0xac] sm:$0xf]
  %v71 = vld [vmem:[%s1 + $0xb0] sm:$0xf]
  %v72 = vld [vmem:[%s1 + $0xb4] sm:$0xf]
  %v73 = vld [vmem:[%s1 + $0xb8] sm:$0xf]
  %v74 = vld [vmem:[%s1 + $0xbc] sm:$0xf]
  %v75 = vld [vmem:[%s1 + $0xc0] sm:$0xf]
  %v76 = vld [vmem:[%s1 + $0xc4] sm:$0xf]
  %v77 = vld [vmem:[%s1 + $0xc8] sm:$0xf]
  %v78 = vld [vmem:[%s1 + $0xcc] sm:$0xf]
  %v79 = vld [vmem:[%s1 + $0xd0] sm:$0xf]
  %v80 = vld [vmem:[%s1 + $0xd4] sm:$0xf]
  %v81 = vld [vmem:[%s1 + $0xd8] sm:$0xf]
  %v82 = vld [vmem:[%s1 + $0xdc] sm:$0xf]
  %v83 = vld [vmem:[%s1 + $0xe0] sm:$0xf]
  %v84 = vld [vmem:[%s1 + $0xe4] sm:$0xf]
  %v85 = vld [vmem:[%s1 + $0xe8] sm:$0xf]
  %v86 = vld [vmem:[%s1 + $0xec] sm:$0xf]
  %v87 = vld [vmem:[%s1 + $0xf0] sm:$0xf]
  %v88 = vld [vmem:[%s1 + $0xf4] sm:$0xf]
  %v89 = vld [vmem:[%s1 + $0xf8] sm:$0xf]
  %v90 = vld [vmem:[%s1 + $0xfc] sm:$0xf]
  %v91 = vld [vmem:[%s1 + $0x100] sm:$0xf]
  %v92 = vld [vmem:[%s1 + $0x104] sm:$0xf]
  %v93 = vld [vmem:[%s1 + $0x108] sm:$0xf]
  %v94 = vld [vmem:[%s1 + $0x10c] sm:$0xf]
  %v95 = vld [vmem:[%s1 + $0x110] sm:$0xf]
  %v96 = vld [vmem:[%s1 + $0x114] sm:$0xf]
  %v97 = vld [vmem:[%s1 + $0x118] sm:$0xf]
  %v98 = vld [vmem:[%s1 + $0x11c] sm:$0xf]
  %v99 = vld [vmem:[%s2] sm:$0x1]
  %v101 = vperm.slane %v99, 0
  %v115 = vunpack.c.l.b16 %v15
  %v116 = vunpack.c.h.b16 %v15
  %v117 = vunpack.c.l.b16 %v16
  %v118 = vunpack.c.h.b16 %v16
  %v119 = vunpack.c.l.b16 %v17
  %v120 = vunpack.c.l.b16 %v18
  %v121 = vunpack.c.h.b16 %v18
  %v122 = vunpack.c.l.b16 %v19
  %v123 = vunpack.c.h.b16 %v19
  %v124 = vunpack.c.l.b16 %v20
  %v125 = vunpack.c.l.b16 %v21
  %v126 = vunpack.c.h.b16 %v21
  %v127 = vunpack.c.l.b16 %v22
  %v128 = vunpack.c.h.b16 %v22
  %v129 = vunpack.c.l.b16 %v23
  %v130 = vunpack.c.l.b16 %v24
  %v131 = vunpack.c.h.b16 %v24
  %v132 = vunpack.c.l.b16 %v25
  %v133 = vunpack.c.h.b16 %v25
  %v134 = vunpack.c.l.b16 %v26
  %v135 = vpack.c.b16 %v120, %v115
  %v136 = vpack.c.b16 %v121, %v116
  %v137 = vpack.c.b16 %v122, %v117
  %v138 = vpack.c.b16 %v123, %v118
  %v139 = vpack.c.b16 %v124, %v119
  %v140 = vpack.c.b16 %v130, %v125
  %v141 = vpack.c.b16 %v131, %v126
  %v142 = vpack.c.b16 %v132, %v127
  %v143 = vpack.c.b16 %v133, %v128
  %v144 = vpack.c.b16 %v134, %v129
  %v225 = vunpack.c.l.b16 %v27
  %v226 = vunpack.c.l.b16 %v28
  %v227 = vunpack.c.l.b16 %v29
  %v228 = vunpack.c.l.b16 %v30
  %v229 = vunpack.c.l.b16 %v31
  %v230 = vunpack.c.l.b16 %v32
  %v231 = vunpack.c.l.b16 %v33
  %v232 = vunpack.c.l.b16 %v34
  %v233 = vunpack.c.l.b16 %v35
  %v234 = vunpack.c.l.b16 %v36
  %v235 = vunpack.c.l.b16 %v37
  %v236 = vunpack.c.l.b16 %v38
  %v237 = vunpack.c.l.b16 %v39
  %v238 = vunpack.c.l.b16 %v40
  %v239 = vunpack.c.l.b16 %v41
  %v240 = vunpack.c.l.b16 %v42
  %v241 = vunpack.c.l.b16 %v43
  %v242 = vunpack.c.l.b16 %v44
  %v243 = vunpack.c.l.b16 %v45
  %v244 = vunpack.c.l.b16 %v46
  %v245 = vunpack.c.l.b16 %v47
  %v246 = vunpack.c.l.b16 %v48
  %v247 = vunpack.c.l.b16 %v49
  %v248 = vunpack.c.l.b16 %v50
  %v249 = vunpack.c.l.b16 %v51
  %v250 = vunpack.c.l.b16 %v52
  %v251 = vunpack.c.l.b16 %v53
  %v252 = vunpack.c.l.b16 %v54
  %v253 = vunpack.c.l.b16 %v55
  %v254 = vunpack.c.l.b16 %v56
  %v255 = vunpack.c.l.b16 %v57
  %v256 = vunpack.c.l.b16 %v58
  %v257 = vunpack.c.l.b16 %v59
  %v258 = vunpack.c.l.b16 %v60
  %v259 = vunpack.c.l.b16 %v61
  %v260 = vunpack.c.l.b16 %v62
  %v261 = vunpack.c.l.b16 %v63
  %v262 = vunpack.c.l.b16 %v64
  %v263 = vunpack.c.l.b16 %v65
  %v264 = vunpack.c.l.b16 %v66
  %v265 = vunpack.c.l.b16 %v67
  %v266 = vunpack.c.l.b16 %v68
  %v267 = vunpack.c.l.b16 %v69
  %v268 = vunpack.c.l.b16 %v70
  %v269 = vunpack.c.l.b16 %v71
  %v270 = vunpack.c.l.b16 %v72
  %v271 = vunpack.c.l.b16 %v73
  %v272 = vunpack.c.l.b16 %v74
  %v273 = vunpack.c.l.b16 %v75
  %v274 = vunpack.c.l.b16 %v76
  %v275 = vunpack.c.l.b16 %v77
  %v276 = vunpack.c.l.b16 %v78
  %v277 = vunpack.c.l.b16 %v79
  %v278 = vunpack.c.l.b16 %v80
  %v279 = vunpack.c.l.b16 %v81
  %v280 = vunpack.c.l.b16 %v82
  %v281 = vunpack.c.l.b16 %v83
  %v282 = vunpack.c.l.b16 %v84
  %v283 = vunpack.c.l.b16 %v85
  %v284 = vunpack.c.l.b16 %v86
  %v285 = vunpack.c.l.b16 %v87
  %v286 = vunpack.c.l.b16 %v88
  %v287 = vunpack.c.l.b16 %v89
  %v288 = vunpack.c.l.b16 %v90
  %v289 = vunpack.c.l.b16 %v91
  %v290 = vunpack.c.l.b16 %v92
  %v291 = vunpack.c.l.b16 %v93
  %v292 = vunpack.c.l.b16 %v94
  %v293 = vunpack.c.l.b16 %v95
  %v294 = vunpack.c.l.b16 %v96
  %v295 = vunpack.c.l.b16 %v97
  %v296 = vunpack.c.l.b16 %v98
  %v297 = vpack.c.b16 %v226, %v225
  %v298 = vpack.c.b16 %v228, %v227
  %v299 = vpack.c.b16 %v230, %v229
  %v300 = vpack.c.b16 %v232, %v231
  %v301 = vpack.c.b16 %v234, %v233
  %v302 = vpack.c.b16 %v236, %v235
  %v303 = vpack.c.b16 %v238, %v237
  %v304 = vpack.c.b16 %v240, %v239
  %v305 = vpack.c.b16 %v242, %v241
  %v306 = vpack.c.b16 %v244, %v243
  %v307 = vpack.c.b16 %v246, %v245
  %v308 = vpack.c.b16 %v248, %v247
  %v309 = vpack.c.b16 %v250, %v249
  %v310 = vpack.c.b16 %v252, %v251
  %v311 = vpack.c.b16 %v254, %v253
  %v312 = vpack.c.b16 %v256, %v255
  %v313 = vpack.c.b16 %v258, %v257
  %v314 = vpack.c.b16 %v260, %v259
  %v315 = vpack.c.b16 %v262, %v261
  %v316 = vpack.c.b16 %v264, %v263
  %v317 = vpack.c.b16 %v266, %v265
  %v318 = vpack.c.b16 %v268, %v267
  %v319 = vpack.c.b16 %v270, %v269
  %v320 = vpack.c.b16 %v272, %v271
  %v321 = vpack.c.b16 %v274, %v273
  %v322 = vpack.c.b16 %v276, %v275
  %v323 = vpack.c.b16 %v278, %v277
  %v324 = vpack.c.b16 %v280, %v279
  %v325 = vpack.c.b16 %v282, %v281
  %v326 = vpack.c.b16 %v284, %v283
  %v327 = vpack.c.b16 %v286, %v285
  %v328 = vpack.c.b16 %v288, %v287
  %v329 = vpack.c.b16 %v290, %v289
  %v330 = vpack.c.b16 %v292, %v291
  %v331 = vpack.c.b16 %v294, %v293
  %v332 = vpack.c.b16 %v296, %v295
  %vm369 = vcmask 523264
  %v371 = vsel %vm369, %v139, 0
  %v374 = vsel %vm369, %v144, 0
  %376 = vmatpush.bf16.msra.mxu0 %v304
  %377 = vmatpush.bf16.msra.mxu0 %v303
  %378 = vmatpush.bf16.msra.mxu0 %v302
  %379 = vmatpush.bf16.msra.mxu0 %v301
  %380 = vmatpush.bf16.msra.mxu0 %v300
  %381 = vmatpush.bf16.msra.mxu0 %v299
  %382 = vmatpush.bf16.msra.mxu0 %v298
  %383 = vmatpush.bf16.msra.mxu0 %v297
  %384 = vmatmul.bf16.gmra.mxu0 %v135
  %v385 = vpop.f32.mrf.mxu0
  %v386 = vadd.f32 %v101, %v385
  %v387 = vpop.f32.mrf.mxu0
  %v388 = vadd.f32 %v101, %v387
  %389 = vmatmul.bf16.gmra.mxu0 %v140
  %v390 = vpop.f32.mrf.mxu0
  %v391 = vadd.f32 %v101, %v390
  %v392 = vpop.f32.mrf.mxu0
  %v393 = vadd.f32 %v101, %v392
  %394 = vdwg.mxu0
  %395 = vmatpush.bf16.msra.mxu0 %v312
  %396 = vmatpush.bf16.msra.mxu0 %v311
  %397 = vmatpush.bf16.msra.mxu0 %v310
  %398 = vmatpush.bf16.msra.mxu0 %v309
  %399 = vmatpush.bf16.msra.mxu0 %v308
  %400 = vmatpush.bf16.msra.mxu0 %v307
  %401 = vmatpush.bf16.msra.mxu0 %v306
  %402 = vmatpush.bf16.msra.mxu0 %v305
  %403 = vmatmul.bf16.gmra.mxu0 %v136
  %v404 = vpop.f32.mrf.mxu0
  %v405 = vadd.f32 %v386, %v404
  %v406 = vpop.f32.mrf.mxu0
  %v407 = vadd.f32 %v388, %v406
  %408 = vmatmul.bf16.gmra.mxu0 %v141
  %v409 = vpop.f32.mrf.mxu0
  %v410 = vadd.f32 %v391, %v409
  %v411 = vpop.f32.mrf.mxu0
  %v412 = vadd.f32 %v393, %v411
  %413 = vdwg.mxu0
  %414 = vmatpush.bf16.msra.mxu0 %v320
  %415 = vmatpush.bf16.msra.mxu0 %v319
  %416 = vmatpush.bf16.msra.mxu0 %v318
  %417 = vmatpush.bf16.msra.mxu0 %v317
  %418 = vmatpush.bf16.msra.mxu0 %v316
  %419 = vmatpush.bf16.msra.mxu0 %v315
  %420 = vmatpush.bf16.msra.mxu0 %v314
  %421 = vmatpush.bf16.msra.mxu0 %v313
  %422 = vmatmul.bf16.gmra.mxu0 %v137
  %v423 = vpop.f32.mrf.mxu0
  %v424 = vadd.f32 %v405, %v423
  %v425 = vpop.f32.mrf.mxu0
  %v426 = vadd.f32 %v407, %v425
  %427 = vmatmul.bf16.gmra.mxu0 %v142
  %v428 = vpop.f32.mrf.mxu0
  %v429 = vadd.f32 %v410, %v428
  %v430 = vpop.f32.mrf.mxu0
  %v431 = vadd.f32 %v412, %v430
  %432 = vdwg.mxu0
  %433 = vmatpush.bf16.msra.mxu0 %v328
  %434 = vmatpush.bf16.msra.mxu0 %v327
  %435 = vmatpush.bf16.msra.mxu0 %v326
  %436 = vmatpush.bf16.msra.mxu0 %v325
  %437 = vmatpush.bf16.msra.mxu0 %v324
  %438 = vmatpush.bf16.msra.mxu0 %v323
  %439 = vmatpush.bf16.msra.mxu0 %v322
  %440 = vmatpush.bf16.msra.mxu0 %v321
  %441 = vmatmul.bf16.gmra.mxu0 %v138
  %v442 = vpop.f32.mrf.mxu0
  %v443 = vadd.f32 %v424, %v442
  %v444 = vpop.f32.mrf.mxu0
  %v445 = vadd.f32 %v426, %v444
  %446 = vmatmul.bf16.gmra.mxu0 %v143
  %v447 = vpop.f32.mrf.mxu0
  %v448 = vadd.f32 %v429, %v447
  %v449 = vpop.f32.mrf.mxu0
  %v450 = vadd.f32 %v431, %v449
  %451 = vdwg.mxu0
  %452 = vmatpush.bf16.msra.mxu0 0
  %453 = vmatpush.bf16.msra.mxu0 0
  %454 = vmatpush.bf16.msra.mxu0 0
  %455 = vmatpush.bf16.msra.mxu0 0
  %456 = vmatpush.bf16.msra.mxu0 %v332
  %457 = vmatpush.bf16.msra.mxu0 %v331
  %458 = vmatpush.bf16.msra.mxu0 %v330
  %459 = vmatpush.bf16.msra.mxu0 %v329
  %460 = vmatmul.bf16.gmra.mxu0 %v371
  %v461 = vpop.f32.mrf.mxu0
  %v462 = vadd.f32 %v443, %v461
  %v463 = vpop.f32.mrf.mxu0
  %v464 = vadd.f32 %v445, %v463
  %465 = vmatmul.bf16.gmra.mxu0 %v374
  %v466 = vpop.f32.mrf.mxu0
  %v467 = vadd.f32 %v448, %v466
  %v468 = vpop.f32.mrf.mxu0
  %v469 = vadd.f32 %v450, %v468
  %470 = vdwg.mxu0
  %v471 = vmax.f32 %v462, 0.0
  %v472 = vmax.f32 %v464, 0.0
  %v473 = vmax.f32 %v467, 0.0
  %v474 = vmax.f32 %v469, 0.0
  %v475 = vpack.c.bf16 %v471, %v471
  %v476 = vpack.c.bf16 %v472, %v472
  %v477 = vpack.c.bf16 %v473, %v473
  %v478 = vpack.c.bf16 %v474, %v474
  %vm479 = vcmask 519168
  %480 = vst.msk [vmem:[%s3] sm:$0xf] %vm479, %v475
  %481 = vst.msk [vmem:[%s3 + $0x4] sm:$0xf] %vm479, %v476
  %482 = vst.msk [vmem:[%s3 + $0x8] sm:$0xf] %vm479, %v477
  %483 = vst.msk [vmem:[%s3 + $0xc] sm:$0xf] %vm479, %v478
  // Predicated region
  $region14: #{bcq_encoder_forward.6} parent=0 // pred_check
    _
  $region15: #{bcq_encoder_forward.6} parent=0 // pred_check_branch
    %485 = sbr.rel (0) target = $region17
  $region16: #{bcq_encoder_forward.6} parent=0 // pred_region
    _
  $region17: #{bcq_encoder_forward.6} parent=0 // pred_fallthru
    _
  // Predicated region
  $region18: #{bcq_encoder_forward.6} parent=0 // pred_check
    _
  $region19: #{bcq_encoder_forward.6} parent=0 // pred_check_branch
    %487 = sbr.rel (0) target = $region21
  $region20: #{bcq_encoder_forward.6} parent=0 // pred_region
    _
  $region21: #{bcq_encoder_forward.6} parent=0 // pred_fallthru
    _

// kernel: bcq_encoder_forward.7
$region0: #{bcq_encoder_forward.7}
  #allocation0 [shape = 'u32[]', space=smem, size = 0x4, offset = 0x4, fixed_abs, tag = 'smem constant byte address 0x4 - core index']
  #allocation1 [shape = 'u32[72,128]{1,0:T(1,128)}', space=vmem, size = 0x9000, scoped, tag = 'internal scratch']
  %s0 = inlined_call_operand.vmem [shape: bf16[16,1024], index: 0, kind: input, shape index: {}]
  %s1 = inlined_call_operand.vmem [shape: bf16[1024,1024], index: 1, kind: input, shape index: {}]
  %s2 = inlined_call_operand.vmem [shape: f32[1,1024], index: 2, kind: input, shape index: {}]
  %s3 = inlined_call_operand.vmem [shape: bf16[512,128], index: 3, kind: input, shape index: {}]
  %s4 = inlined_call_operand.vmem [shape: f32[1,128], index: 4, kind: input, shape index: {}]
  %s5 = inlined_call_operand.vmem [shape: bf16[512,128], index: 5, kind: input, shape index: {}]
  %s6 = inlined_call_operand.vmem [shape: f32[1,128], index: 6, kind: input, shape index: {}]
  %s7 = inlined_call_operand.vmem [shape: f32[16,128], index: 7, kind: output, shape index: {0}]
  %s8 = inlined_call_operand.vmem [shape: f32[16,128], index: 8, kind: output, shape index: {1}]
  %s9 = inlined_call_operand.vmem [shape: f32[16,128], index: 9, kind: output, shape index: {2}]
  %10 = xla_tuple %s7, %s8, %s9
  %s11 = sld [smem:[#allocation0]]
  $region54: #{bcq_encoder_forward.7} parent=0
    _
  %s13 = ssub.s32 1, %s11
  %s14 = scalar_select 0, %s13, %s11
  // Predicated region
  $region2: #{bcq_encoder_forward.7} parent=0 // pred_check
    _
  $region3: #{bcq_encoder_forward.7} parent=0 // pred_check_branch
    %16 = sbr.rel (0) target = $region5
  $region4: #{bcq_encoder_forward.7} parent=0 // pred_region
    _
  $region5: #{bcq_encoder_forward.7} parent=0 // pred_fallthru
    _
  // Predicated region
  $region6: #{bcq_encoder_forward.7} parent=0 // pred_check
    _
  $region7: #{bcq_encoder_forward.7} parent=0 // pred_check_branch
    %18 = sbr.rel (0) target = $region9
  $region8: #{bcq_encoder_forward.7} parent=0 // pred_region
    _
  $region9: #{bcq_encoder_forward.7} parent=0 // pred_fallthru
    _
  // Predicated region
  $region10: #{bcq_encoder_forward.7} parent=0 // pred_check
    _
  $region11: #{bcq_encoder_forward.7} parent=0 // pred_check_branch
    %20 = sbr.rel (0) target = $region13
  $region12: #{bcq_encoder_forward.7} parent=0 // pred_region
    _
  $region13: #{bcq_encoder_forward.7} parent=0 // pred_fallthru
    _
  // Predicated region
  $region14: #{bcq_encoder_forward.7} parent=0 // pred_check
    _
  $region15: #{bcq_encoder_forward.7} parent=0 // pred_check_branch
    %22 = sbr.rel (0) target = $region17
  $region16: #{bcq_encoder_forward.7} parent=0 // pred_region
    _
  $region17: #{bcq_encoder_forward.7} parent=0 // pred_fallthru
    _
  // Predicated region
  $region18: #{bcq_encoder_forward.7} parent=0 // pred_check
    _
  $region19: #{bcq_encoder_forward.7} parent=0 // pred_check_branch
    %24 = sbr.rel (0) target = $region21
  $region20: #{bcq_encoder_forward.7} parent=0 // pred_region
    _
  $region21: #{bcq_encoder_forward.7} parent=0 // pred_fallthru
    _
  // Predicated region
  $region22: #{bcq_encoder_forward.7} parent=0 // pred_check
    _
  $region23: #{bcq_encoder_forward.7} parent=0 // pred_check_branch
    %26 = sbr.rel (0) target = $region25
  $region24: #{bcq_encoder_forward.7} parent=0 // pred_region
    _
  $region25: #{bcq_encoder_forward.7} parent=0 // pred_fallthru
    _
  // Predicated region
  $region26: #{bcq_encoder_forward.7} parent=0 // pred_check
    _
  $region27: #{bcq_encoder_forward.7} parent=0 // pred_check_branch
    %28 = sbr.rel (0) target = $region29
  $region28: #{bcq_encoder_forward.7} parent=0 // pred_region
    _
  $region29: #{bcq_encoder_forward.7} parent=0 // pred_fallthru
    _
  %v29 = vld [vmem:[%s0] sm:$0xff]
  %v30 = vld [vmem:[%s0 + $0x8] sm:$0xff]
  %v31 = vld [vmem:[%s0 + $0x10] sm:$0xff]
  %v32 = vld [vmem:[%s0 + $0x18] sm:$0xff]
  %v33 = vld [vmem:[%s0 + $0x20] sm:$0xff]
  %v34 = vld [vmem:[%s0 + $0x28] sm:$0xff]
  %v35 = vld [vmem:[%s0 + $0x30] sm:$0xff]
  %v36 = vld [vmem:[%s0 + $0x38] sm:$0xff]
  %v37 = vld [vmem:[%s1] sm:$0xff]
  %v38 = vld [vmem:[%s1 + $0x8] sm:$0xff]
  %v39 = vld [vmem:[%s1 + $0x10] sm:$0xff]
  %v40 = vld [vmem:[%s1 + $0x18] sm:$0xff]
  %v41 = vld [vmem:[%s1 + $0x20] sm:$0xff]
  %v42 = vld [vmem:[%s1 + $0x28] sm:$0xff]
  %v43 = vld [vmem:[%s1 + $0x30] sm:$0xff]
  %v44 = vld [vmem:[%s1 + $0x38] sm:$0xff]
  %v45 = vld [vmem:[%s1 + $0x40] sm:$0xff]
  %v46 = vld [vmem:[%s1 + $0x48] sm:$0xff]
  %v47 = vld [vmem:[%s1 + $0x50] sm:$0xff]
  %v48 = vld [vmem:[%s1 + $0x58] sm:$0xff]
  %v49 = vld [vmem:[%s1 + $0x60] sm:$0xff]
  %v50 = vld [vmem:[%s1 + $0x68] sm:$0xff]
  %v51 = vld [vmem:[%s1 + $0x70] sm:$0xff]
  %v52 = vld [vmem:[%s1 + $0x78] sm:$0xff]
  %v53 = vld [vmem:[%s1 + $0x80] sm:$0xff]
  %v54 = vld [vmem:[%s1 + $0x88] sm:$0xff]
  %v55 = vld [vmem:[%s1 + $0x90] sm:$0xff]
  %v56 = vld [vmem:[%s1 + $0x98] sm:$0xff]
  %v57 = vld [vmem:[%s1 + $0xa0] sm:$0xff]
  %v58 = vld [vmem:[%s1 + $0xa8] sm:$0xff]
  %v59 = vld [vmem:[%s1 + $0xb0] sm:$0xff]
  %v60 = vld [vmem:[%s1 + $0xb8] sm:$0xff]
  %v61 = vld [vmem:[%s1 + $0xc0] sm:$0xff]
  %v62 = vld [vmem:[%s1 + $0xc8] sm:$0xff]
  %v63 = vld [vmem:[%s1 + $0xd0] sm:$0xff]
  %v64 = vld [vmem:[%s1 + $0xd8] sm:$0xff]
  %v65 = vld [vmem:[%s1 + $0xe0] sm:$0xff]
  %v66 = vld [vmem:[%s1 + $0xe8] sm:$0xff]
  %v67 = vld [vmem:[%s1 + $0xf0] sm:$0xff]
  %v68 = vld [vmem:[%s1 + $0xf8] sm:$0xff]
  %v69 = vld [vmem:[%s1 + $0x100] sm:$0xff]
  %v70 = vld [vmem:[%s1 + $0x108] sm:$0xff]
  %v71 = vld [vmem:[%s1 + $0x110] sm:$0xff]
  %v72 = vld [vmem:[%s1 + $0x118] sm:$0xff]
  %v73 = vld [vmem:[%s1 + $0x120] sm:$0xff]
  %v74 = vld [vmem:[%s1 + $0x128] sm:$0xff]
  %v75 = vld [vmem:[%s1 + $0x130] sm:$0xff]
  %v76 = vld [vmem:[%s1 + $0x138] sm:$0xff]
  %v77 = vld [vmem:[%s1 + $0x140] sm:$0xff]
  %v78 = vld [vmem:[%s1 + $0x148] sm:$0xff]
  %v79 = vld [vmem:[%s1 + $0x150] sm:$0xff]
  %v80 = vld [vmem:[%s1 + $0x158] sm:$0xff]
  %v81 = vld [vmem:[%s1 + $0x160] sm:$0xff]
  %v82 = vld [vmem:[%s1 + $0x168] sm:$0xff]
  %v83 = vld [vmem:[%s1 + $0x170] sm:$0xff]
  %v84 = vld [vmem:[%s1 + $0x178] sm:$0xff]
  %v85 = vld [vmem:[%s1 + $0x180] sm:$0xff]
  %v86 = vld [vmem:[%s1 + $0x188] sm:$0xff]
  %v87 = vld [vmem:[%s1 + $0x190] sm:$0xff]
  %v88 = vld [vmem:[%s1 + $0x198] sm:$0xff]
  %v89 = vld [vmem:[%s1 + $0x1a0] sm:$0xff]
  %v90 = vld [vmem:[%s1 + $0x1a8] sm:$0xff]
  %v91 = vld [vmem:[%s1 + $0x1b0] sm:$0xff]
  %v92 = vld [vmem:[%s1 + $0x1b8] sm:$0xff]
  %v93 = vld [vmem:[%s1 + $0x1c0] sm:$0xff]
  %v94 = vld [vmem:[%s1 + $0x1c8] sm:$0xff]
  %v95 = vld [vmem:[%s1 + $0x1d0] sm:$0xff]
  %v96 = vld [vmem:[%s1 + $0x1d8] sm:$0xff]
  %v97 = vld [vmem:[%s1 + $0x1e0] sm:$0xff]
  %v98 = vld [vmem:[%s1 + $0x1e8] sm:$0xff]
  %v99 = vld [vmem:[%s1 + $0x1f0] sm:$0xff]
  %v100 = vld [vmem:[%s1 + $0x1f8] sm:$0xff]
  %v101 = vld [vmem:[%s1 + $0x200] sm:$0xff]
  %v102 = vld [vmem:[%s1 + $0x208] sm:$0xff]
  %v103 = vld [vmem:[%s1 + $0x210] sm:$0xff]
  %v104 = vld [vmem:[%s1 + $0x218] sm:$0xff]
  %v105 = vld [vmem:[%s1 + $0x220] sm:$0xff]
  %v106 = vld [vmem:[%s1 + $0x228] sm:$0xff]
  %v107 = vld [vmem:[%s1 + $0x230] sm:$0xff]
  %v108 = vld [vmem:[%s1 + $0x238] sm:$0xff]
  %v109 = vld [vmem:[%s1 + $0x240] sm:$0xff]
  %v110 = vld [vmem:[%s1 + $0x248] sm:$0xff]
  %v111 = vld [vmem:[%s1 + $0x250] sm:$0xff]
  %v112 = vld [vmem:[%s1 + $0x258] sm:$0xff]
  %v113 = vld [vmem:[%s1 + $0x260] sm:$0xff]
  %v114 = vld [vmem:[%s1 + $0x268] sm:$0xff]
  %v115 = vld [vmem:[%s1 + $0x270] sm:$0xff]
  %v116 = vld [vmem:[%s1 + $0x278] sm:$0xff]
  %v117 = vld [vmem:[%s1 + $0x280] sm:$0xff]
  %v118 = vld [vmem:[%s1 + $0x288] sm:$0xff]
  %v119 = vld [vmem:[%s1 + $0x290] sm:$0xff]
  %v120 = vld [vmem:[%s1 + $0x298] sm:$0xff]
  %v121 = vld [vmem:[%s1 + $0x2a0] sm:$0xff]
  %v122 = vld [vmem:[%s1 + $0x2a8] sm:$0xff]
  %v123 = vld [vmem:[%s1 + $0x2b0] sm:$0xff]
  %v124 = vld [vmem:[%s1 + $0x2b8] sm:$0xff]
  %v125 = vld [vmem:[%s1 + $0x2c0] sm:$0xff]
  %v126 = vld [vmem:[%s1 + $0x2c8] sm:$0xff]
  %v127 = vld [vmem:[%s1 + $0x2d0] sm:$0xff]
  %v128 = vld [vmem:[%s1 + $0x2d8] sm:$0xff]
  %v129 = vld [vmem:[%s1 + $0x2e0] sm:$0xff]
  %v130 = vld [vmem:[%s1 + $0x2e8] sm:$0xff]
  %v131 = vld [vmem:[%s1 + $0x2f0] sm:$0xff]
  %v132 = vld [vmem:[%s1 + $0x2f8] sm:$0xff]
  %v133 = vld [vmem:[%s1 + $0x300] sm:$0xff]
  %v134 = vld [vmem:[%s1 + $0x308] sm:$0xff]
  %v135 = vld [vmem:[%s1 + $0x310] sm:$0xff]
  %v136 = vld [vmem:[%s1 + $0x318] sm:$0xff]
  %v137 = vld [vmem:[%s1 + $0x320] sm:$0xff]
  %v138 = vld [vmem:[%s1 + $0x328] sm:$0xff]
  %v139 = vld [vmem:[%s1 + $0x330] sm:$0xff]
  %v140 = vld [vmem:[%s1 + $0x338] sm:$0xff]
  %v141 = vld [vmem:[%s1 + $0x340] sm:$0xff]
  %v142 = vld [vmem:[%s1 + $0x348] sm:$0xff]
  %v143 = vld [vmem:[%s1 + $0x350] sm:$0xff]
  %v144 = vld [vmem:[%s1 + $0x358] sm:$0xff]
  %v145 = vld [vmem:[%s1 + $0x360] sm:$0xff]
  %v146 = vld [vmem:[%s1 + $0x368] sm:$0xff]
  %v147 = vld [vmem:[%s1 + $0x370] sm:$0xff]
  %v148 = vld [vmem:[%s1 + $0x378] sm:$0xff]
  %v149 = vld [vmem:[%s1 + $0x380] sm:$0xff]
  %v150 = vld [vmem:[%s1 + $0x388] sm:$0xff]
  %v151 = vld [vmem:[%s1 + $0x390] sm:$0xff]
  %v152 = vld [vmem:[%s1 + $0x398] sm:$0xff]
  %v153 = vld [vmem:[%s1 + $0x3a0] sm:$0xff]
  %v154 = vld [vmem:[%s1 + $0x3a8] sm:$0xff]
  %v155 = vld [vmem:[%s1 + $0x3b0] sm:$0xff]
  %v156 = vld [vmem:[%s1 + $0x3b8] sm:$0xff]
  %v157 = vld [vmem:[%s1 + $0x3c0] sm:$0xff]
  %v158 = vld [vmem:[%s1 + $0x3c8] sm:$0xff]
  %v159 = vld [vmem:[%s1 + $0x3d0] sm:$0xff]
  %v160 = vld [vmem:[%s1 + $0x3d8] sm:$0xff]
  %v161 = vld [vmem:[%s1 + $0x3e0] sm:$0xff]
  %v162 = vld [vmem:[%s1 + $0x3e8] sm:$0xff]
  %v163 = vld [vmem:[%s1 + $0x3f0] sm:$0xff]
  %v164 = vld [vmem:[%s1 + $0x3f8] sm:$0xff]
  %v165 = vld [vmem:[%s1 + $0x400] sm:$0xff]
  %v166 = vld [vmem:[%s1 + $0x408] sm:$0xff]
  %v167 = vld [vmem:[%s1 + $0x410] sm:$0xff]
  %v168 = vld [vmem:[%s1 + $0x418] sm:$0xff]
  %v169 = vld [vmem:[%s1 + $0x420] sm:$0xff]
  %v170 = vld [vmem:[%s1 + $0x428] sm:$0xff]
  %v171 = vld [vmem:[%s1 + $0x430] sm:$0xff]
  %v172 = vld [vmem:[%s1 + $0x438] sm:$0xff]
  %v173 = vld [vmem:[%s1 + $0x440] sm:$0xff]
  %v174 = vld [vmem:[%s1 + $0x448] sm:$0xff]
  %v175 = vld [vmem:[%s1 + $0x450] sm:$0xff]
  %v176 = vld [vmem:[%s1 + $0x458] sm:$0xff]
  %v177 = vld [vmem:[%s1 + $0x460] sm:$0xff]
  %v178 = vld [vmem:[%s1 + $0x468] sm:$0xff]
  %v179 = vld [vmem:[%s1 + $0x470] sm:$0xff]
  %v180 = vld [vmem:[%s1 + $0x478] sm:$0xff]
  %v181 = vld [vmem:[%s1 + $0x480] sm:$0xff]
  %v182 = vld [vmem:[%s1 + $0x488] sm:$0xff]
  %v183 = vld [vmem:[%s1 + $0x490] sm:$0xff]
  %v184 = vld [vmem:[%s1 + $0x498] sm:$0xff]
  %v185 = vld [vmem:[%s1 + $0x4a0] sm:$0xff]
  %v186 = vld [vmem:[%s1 + $0x4a8] sm:$0xff]
  %v187 = vld [vmem:[%s1 + $0x4b0] sm:$0xff]
  %v188 = vld [vmem:[%s1 + $0x4b8] sm:$0xff]
  %v189 = vld [vmem:[%s1 + $0x4c0] sm:$0xff]
  %v190 = vld [vmem:[%s1 + $0x4c8] sm:$0xff]
  %v191 = vld [vmem:[%s1 + $0x4d0] sm:$0xff]
  %v192 = vld [vmem:[%s1 + $0x4d8] sm:$0xff]
  %v193 = vld [vmem:[%s1 + $0x4e0] sm:$0xff]
  %v194 = vld [vmem:[%s1 + $0x4e8] sm:$0xff]
  %v195 = vld [vmem:[%s1 + $0x4f0] sm:$0xff]
  %v196 = vld [vmem:[%s1 + $0x4f8] sm:$0xff]
  %v197 = vld [vmem:[%s1 + $0x500] sm:$0xff]
  %v198 = vld [vmem:[%s1 + $0x508] sm:$0xff]
  %v199 = vld [vmem:[%s1 + $0x510] sm:$0xff]
  %v200 = vld [vmem:[%s1 + $0x518] sm:$0xff]
  %v201 = vld [vmem:[%s1 + $0x520] sm:$0xff]
  %v202 = vld [vmem:[%s1 + $0x528] sm:$0xff]
  %v203 = vld [vmem:[%s1 + $0x530] sm:$0xff]
  %v204 = vld [vmem:[%s1 + $0x538] sm:$0xff]
  %v205 = vld [vmem:[%s1 + $0x540] sm:$0xff]
  %v206 = vld [vmem:[%s1 + $0x548] sm:$0xff]
  %v207 = vld [vmem:[%s1 + $0x550] sm:$0xff]
  %v208 = vld [vmem:[%s1 + $0x558] sm:$0xff]
  %v209 = vld [vmem:[%s1 + $0x560] sm:$0xff]
  %v210 = vld [vmem:[%s1 + $0x568] sm:$0xff]
  %v211 = vld [vmem:[%s1 + $0x570] sm:$0xff]
  %v212 = vld [vmem:[%s1 + $0x578] sm:$0xff]
  %v213 = vld [vmem:[%s1 + $0x580] sm:$0xff]
  %v214 = vld [vmem:[%s1 + $0x588] sm:$0xff]
  %v215 = vld [vmem:[%s1 + $0x590] sm:$0xff]
  %v216 = vld [vmem:[%s1 + $0x598] sm:$0xff]
  %v217 = vld [vmem:[%s1 + $0x5a0] sm:$0xff]
  %v218 = vld [vmem:[%s1 + $0x5a8] sm:$0xff]
  %v219 = vld [vmem:[%s1 + $0x5b0] sm:$0xff]
  %v220 = vld [vmem:[%s1 + $0x5b8] sm:$0xff]
  %v221 = vld [vmem:[%s1 + $0x5c0] sm:$0xff]
  %v222 = vld [vmem:[%s1 + $0x5c8] sm:$0xff]
  %v223 = vld [vmem:[%s1 + $0x5d0] sm:$0xff]
  %v224 = vld [vmem:[%s1 + $0x5d8] sm:$0xff]
  %v225 = vld [vmem:[%s1 + $0x5e0] sm:$0xff]
  %v226 = vld [vmem:[%s1 + $0x5e8] sm:$0xff]
  %v227 = vld [vmem:[%s1 + $0x5f0] sm:$0xff]
  %v228 = vld [vmem:[%s1 + $0x5f8] sm:$0xff]
  %v229 = vld [vmem:[%s1 + $0x600] sm:$0xff]
  %v230 = vld [vmem:[%s1 + $0x608] sm:$0xff]
  %v231 = vld [vmem:[%s1 + $0x610] sm:$0xff]
  %v232 = vld [vmem:[%s1 + $0x618] sm:$0xff]
  %v233 = vld [vmem:[%s1 + $0x620] sm:$0xff]
  %v234 = vld [vmem:[%s1 + $0x628] sm:$0xff]
  %v235 = vld [vmem:[%s1 + $0x630] sm:$0xff]
  %v236 = vld [vmem:[%s1 + $0x638] sm:$0xff]
  %v237 = vld [vmem:[%s1 + $0x640] sm:$0xff]
  %v238 = vld [vmem:[%s1 + $0x648] sm:$0xff]
  %v239 = vld [vmem:[%s1 + $0x650] sm:$0xff]
  %v240 = vld [vmem:[%s1 + $0x658] sm:$0xff]
  %v241 = vld [vmem:[%s1 + $0x660] sm:$0xff]
  %v242 = vld [vmem:[%s1 + $0x668] sm:$0xff]
  %v243 = vld [vmem:[%s1 + $0x670] sm:$0xff]
  %v244 = vld [vmem:[%s1 + $0x678] sm:$0xff]
  %v245 = vld [vmem:[%s1 + $0x680] sm:$0xff]
  %v246 = vld [vmem:[%s1 + $0x688] sm:$0xff]
  %v247 = vld [vmem:[%s1 + $0x690] sm:$0xff]
  %v248 = vld [vmem:[%s1 + $0x698] sm:$0xff]
  %v249 = vld [vmem:[%s1 + $0x6a0] sm:$0xff]
  %v250 = vld [vmem:[%s1 + $0x6a8] sm:$0xff]
  %v251 = vld [vmem:[%s1 + $0x6b0] sm:$0xff]
  %v252 = vld [vmem:[%s1 + $0x6b8] sm:$0xff]
  %v253 = vld [vmem:[%s1 + $0x6c0] sm:$0xff]
  %v254 = vld [vmem:[%s1 + $0x6c8] sm:$0xff]
  %v255 = vld [vmem:[%s1 + $0x6d0] sm:$0xff]
  %v256 = vld [vmem:[%s1 + $0x6d8] sm:$0xff]
  %v257 = vld [vmem:[%s1 + $0x6e0] sm:$0xff]
  %v258 = vld [vmem:[%s1 + $0x6e8] sm:$0xff]
  %v259 = vld [vmem:[%s1 + $0x6f0] sm:$0xff]
  %v260 = vld [vmem:[%s1 + $0x6f8] sm:$0xff]
  %v261 = vld [vmem:[%s1 + $0x700] sm:$0xff]
  %v262 = vld [vmem:[%s1 + $0x708] sm:$0xff]
  %v263 = vld [vmem:[%s1 + $0x710] sm:$0xff]
  %v264 = vld [vmem:[%s1 + $0x718] sm:$0xff]
  %v265 = vld [vmem:[%s1 + $0x720] sm:$0xff]
  %v266 = vld [vmem:[%s1 + $0x728] sm:$0xff]
  %v267 = vld [vmem:[%s1 + $0x730] sm:$0xff]
  %v268 = vld [vmem:[%s1 + $0x738] sm:$0xff]
  %v269 = vld [vmem:[%s1 + $0x740] sm:$0xff]
  %v270 = vld [vmem:[%s1 + $0x748] sm:$0xff]
  %v271 = vld [vmem:[%s1 + $0x750] sm:$0xff]
  %v272 = vld [vmem:[%s1 + $0x758] sm:$0xff]
  %v273 = vld [vmem:[%s1 + $0x760] sm:$0xff]
  %v274 = vld [vmem:[%s1 + $0x768] sm:$0xff]
  %v275 = vld [vmem:[%s1 + $0x770] sm:$0xff]
  %v276 = vld [vmem:[%s1 + $0x778] sm:$0xff]
  %v277 = vld [vmem:[%s1 + $0x780] sm:$0xff]
  %v278 = vld [vmem:[%s1 + $0x788] sm:$0xff]
  %v279 = vld [vmem:[%s1 + $0x790] sm:$0xff]
  %v280 = vld [vmem:[%s1 + $0x798] sm:$0xff]
  %v281 = vld [vmem:[%s1 + $0x7a0] sm:$0xff]
  %v282 = vld [vmem:[%s1 + $0x7a8] sm:$0xff]
  %v283 = vld [vmem:[%s1 + $0x7b0] sm:$0xff]
  %v284 = vld [vmem:[%s1 + $0x7b8] sm:$0xff]
  %v285 = vld [vmem:[%s1 + $0x7c0] sm:$0xff]
  %v286 = vld [vmem:[%s1 + $0x7c8] sm:$0xff]
  %v287 = vld [vmem:[%s1 + $0x7d0] sm:$0xff]
  %v288 = vld [vmem:[%s1 + $0x7d8] sm:$0xff]
  %v289 = vld [vmem:[%s1 + $0x7e0] sm:$0xff]
  %v290 = vld [vmem:[%s1 + $0x7e8] sm:$0xff]
  %v291 = vld [vmem:[%s1 + $0x7f0] sm:$0xff]
  %v292 = vld [vmem:[%s1 + $0x7f8] sm:$0xff]
  %v293 = vld [vmem:[%s1 + $0x800] sm:$0xff]
  %v294 = vld [vmem:[%s1 + $0x808] sm:$0xff]
  %v295 = vld [vmem:[%s1 + $0x810] sm:$0xff]
  %v296 = vld [vmem:[%s1 + $0x818] sm:$0xff]
  %v297 = vld [vmem:[%s1 + $0x820] sm:$0xff]
  %v298 = vld [vmem:[%s1 + $0x828] sm:$0xff]
  %v299 = vld [vmem:[%s1 + $0x830] sm:$0xff]
  %v300 = vld [vmem:[%s1 + $0x838] sm:$0xff]
  %v301 = vld [vmem:[%s1 + $0x840] sm:$0xff]
  %v302 = vld [vmem:[%s1 + $0x848] sm:$0xff]
  %v303 = vld [vmem:[%s1 + $0x850] sm:$0xff]
  %v304 = vld [vmem:[%s1 + $0x858] sm:$0xff]
  %v305 = vld [vmem:[%s1 + $0x860] sm:$0xff]
  %v306 = vld [vmem:[%s1 + $0x868] sm:$0xff]
  %v307 = vld [vmem:[%s1 + $0x870] sm:$0xff]
  %v308 = vld [vmem:[%s1 + $0x878] sm:$0xff]
  %v309 = vld [vmem:[%s1 + $0x880] sm:$0xff]
  %v310 = vld [vmem:[%s1 + $0x888] sm:$0xff]
  %v311 = vld [vmem:[%s1 + $0x890] sm:$0xff]
  %v312 = vld [vmem:[%s1 + $0x898] sm:$0xff]
  %v313 = vld [vmem:[%s1 + $0x8a0] sm:$0xff]
  %v314 = vld [vmem:[%s1 + $0x8a8] sm:$0xff]
  %v315 = vld [vmem:[%s1 + $0x8b0] sm:$0xff]
  %v316 = vld [vmem:[%s1 + $0x8b8] sm:$0xff]
  %v317 = vld [vmem:[%s1 + $0x8c0] sm:$0xff]
  %v318 = vld [vmem:[%s1 + $0x8c8] sm:$0xff]
  %v319 = vld [vmem:[%s1 + $0x8d0] sm:$0xff]
  %v320 = vld [vmem:[%s1 + $0x8d8] sm:$0xff]
  %v321 = vld [vmem:[%s1 + $0x8e0] sm:$0xff]
  %v322 = vld [vmem:[%s1 + $0x8e8] sm:$0xff]
  %v323 = vld [vmem:[%s1 + $0x8f0] sm:$0xff]
  %v324 = vld [vmem:[%s1 + $0x8f8] sm:$0xff]
  %v325 = vld [vmem:[%s1 + $0x900] sm:$0xff]
  %v326 = vld [vmem:[%s1 + $0x908] sm:$0xff]
  %v327 = vld [vmem:[%s1 + $0x910] sm:$0xff]
  %v328 = vld [vmem:[%s1 + $0x918] sm:$0xff]
  %v329 = vld [vmem:[%s1 + $0x920] sm:$0xff]
  %v330 = vld [vmem:[%s1 + $0x928] sm:$0xff]
  %v331 = vld [vmem:[%s1 + $0x930] sm:$0xff]
  %v332 = vld [vmem:[%s1 + $0x938] sm:$0xff]
  %v333 = vld [vmem:[%s1 + $0x940] sm:$0xff]
  %v334 = vld [vmem:[%s1 + $0x948] sm:$0xff]
  %v335 = vld [vmem:[%s1 + $0x950] sm:$0xff]
  %v336 = vld [vmem:[%s1 + $0x958] sm:$0xff]
  %v337 = vld [vmem:[%s1 + $0x960] sm:$0xff]
  %v338 = vld [vmem:[%s1 + $0x968] sm:$0xff]
  %v339 = vld [vmem:[%s1 + $0x970] sm:$0xff]
  %v340 = vld [vmem:[%s1 + $0x978] sm:$0xff]
  %v341 = vld [vmem:[%s1 + $0x980] sm:$0xff]
  %v342 = vld [vmem:[%s1 + $0x988] sm:$0xff]
  %v343 = vld [vmem:[%s1 + $0x990] sm:$0xff]
  %v344 = vld [vmem:[%s1 + $0x998] sm:$0xff]
  %v345 = vld [vmem:[%s1 + $0x9a0] sm:$0xff]
  %v346 = vld [vmem:[%s1 + $0x9a8] sm:$0xff]
  %v347 = vld [vmem:[%s1 + $0x9b0] sm:$0xff]
  %v348 = vld [vmem:[%s1 + $0x9b8] sm:$0xff]
  %v349 = vld [vmem:[%s1 + $0x9c0] sm:$0xff]
  %v350 = vld [vmem:[%s1 + $0x9c8] sm:$0xff]
  %v351 = vld [vmem:[%s1 + $0x9d0] sm:$0xff]
  %v352 = vld [vmem:[%s1 + $0x9d8] sm:$0xff]
  %v353 = vld [vmem:[%s1 + $0x9e0] sm:$0xff]
  %v354 = vld [vmem:[%s1 + $0x9e8] sm:$0xff]
  %v355 = vld [vmem:[%s1 + $0x9f0] sm:$0xff]
  %v356 = vld [vmem:[%s1 + $0x9f8] sm:$0xff]
  %v357 = vld [vmem:[%s1 + $0xa00] sm:$0xff]
  %v358 = vld [vmem:[%s1 + $0xa08] sm:$0xff]
  %v359 = vld [vmem:[%s1 + $0xa10] sm:$0xff]
  %v360 = vld [vmem:[%s1 + $0xa18] sm:$0xff]
  %v361 = vld [vmem:[%s1 + $0xa20] sm:$0xff]
  %v362 = vld [vmem:[%s1 + $0xa28] sm:$0xff]
  %v363 = vld [vmem:[%s1 + $0xa30] sm:$0xff]
  %v364 = vld [vmem:[%s1 + $0xa38] sm:$0xff]
  %v365 = vld [vmem:[%s1 + $0xa40] sm:$0xff]
  %v366 = vld [vmem:[%s1 + $0xa48] sm:$0xff]
  %v367 = vld [vmem:[%s1 + $0xa50] sm:$0xff]
  %v368 = vld [vmem:[%s1 + $0xa58] sm:$0xff]
  %v369 = vld [vmem:[%s1 + $0xa60] sm:$0xff]
  %v370 = vld [vmem:[%s1 + $0xa68] sm:$0xff]
  %v371 = vld [vmem:[%s1 + $0xa70] sm:$0xff]
  %v372 = vld [vmem:[%s1 + $0xa78] sm:$0xff]
  %v373 = vld [vmem:[%s1 + $0xa80] sm:$0xff]
  %v374 = vld [vmem:[%s1 + $0xa88] sm:$0xff]
  %v375 = vld [vmem:[%s1 + $0xa90] sm:$0xff]
  %v376 = vld [vmem:[%s1 + $0xa98] sm:$0xff]
  %v377 = vld [vmem:[%s1 + $0xaa0] sm:$0xff]
  %v378 = vld [vmem:[%s1 + $0xaa8] sm:$0xff]
  %v379 = vld [vmem:[%s1 + $0xab0] sm:$0xff]
  %v380 = vld [vmem:[%s1 + $0xab8] sm:$0xff]
  %v381 = vld [vmem:[%s1 + $0xac0] sm:$0xff]
  %v382 = vld [vmem:[%s1 + $0xac8] sm:$0xff]
  %v383 = vld [vmem:[%s1 + $0xad0] sm:$0xff]
  %v384 = vld [vmem:[%s1 + $0xad8] sm:$0xff]
  %v385 = vld [vmem:[%s1 + $0xae0] sm:$0xff]
  %v386 = vld [vmem:[%s1 + $0xae8] sm:$0xff]
  %v387 = vld [vmem:[%s1 + $0xaf0] sm:$0xff]
  %v388 = vld [vmem:[%s1 + $0xaf8] sm:$0xff]
  %v389 = vld [vmem:[%s1 + $0xb00] sm:$0xff]
  %v390 = vld [vmem:[%s1 + $0xb08] sm:$0xff]
  %v391 = vld [vmem:[%s1 + $0xb10] sm:$0xff]
  %v392 = vld [vmem:[%s1 + $0xb18] sm:$0xff]
  %v393 = vld [vmem:[%s1 + $0xb20] sm:$0xff]
  %v394 = vld [vmem:[%s1 + $0xb28] sm:$0xff]
  %v395 = vld [vmem:[%s1 + $0xb30] sm:$0xff]
  %v396 = vld [vmem:[%s1 + $0xb38] sm:$0xff]
  %v397 = vld [vmem:[%s1 + $0xb40] sm:$0xff]
  %v398 = vld [vmem:[%s1 + $0xb48] sm:$0xff]
  %v399 = vld [vmem:[%s1 + $0xb50] sm:$0xff]
  %v400 = vld [vmem:[%s1 + $0xb58] sm:$0xff]
  %v401 = vld [vmem:[%s1 + $0xb60] sm:$0xff]
  %v402 = vld [vmem:[%s1 + $0xb68] sm:$0xff]
  %v403 = vld [vmem:[%s1 + $0xb70] sm:$0xff]
  %v404 = vld [vmem:[%s1 + $0xb78] sm:$0xff]
  %v405 = vld [vmem:[%s1 + $0xb80] sm:$0xff]
  %v406 = vld [vmem:[%s1 + $0xb88] sm:$0xff]
  %v407 = vld [vmem:[%s1 + $0xb90] sm:$0xff]
  %v408 = vld [vmem:[%s1 + $0xb98] sm:$0xff]
  %v409 = vld [vmem:[%s1 + $0xba0] sm:$0xff]
  %v410 = vld [vmem:[%s1 + $0xba8] sm:$0xff]
  %v411 = vld [vmem:[%s1 + $0xbb0] sm:$0xff]
  %v412 = vld [vmem:[%s1 + $0xbb8] sm:$0xff]
  %v413 = vld [vmem:[%s1 + $0xbc0] sm:$0xff]
  %v414 = vld [vmem:[%s1 + $0xbc8] sm:$0xff]
  %v415 = vld [vmem:[%s1 + $0xbd0] sm:$0xff]
  %v416 = vld [vmem:[%s1 + $0xbd8] sm:$0xff]
  %v417 = vld [vmem:[%s1 + $0xbe0] sm:$0xff]
  %v418 = vld [vmem:[%s1 + $0xbe8] sm:$0xff]
  %v419 = vld [vmem:[%s1 + $0xbf0] sm:$0xff]
  %v420 = vld [vmem:[%s1 + $0xbf8] sm:$0xff]
  %v421 = vld [vmem:[%s1 + $0xc00] sm:$0xff]
  %v422 = vld [vmem:[%s1 + $0xc08] sm:$0xff]
  %v423 = vld [vmem:[%s1 + $0xc10] sm:$0xff]
  %v424 = vld [vmem:[%s1 + $0xc18] sm:$0xff]
  %v425 = vld [vmem:[%s1 + $0xc20] sm:$0xff]
  %v426 = vld [vmem:[%s1 + $0xc28] sm:$0xff]
  %v427 = vld [vmem:[%s1 + $0xc30] sm:$0xff]
  %v428 = vld [vmem:[%s1 + $0xc38] sm:$0xff]
  %v429 = vld [vmem:[%s1 + $0xc40] sm:$0xff]
  %v430 = vld [vmem:[%s1 + $0xc48] sm:$0xff]
  %v431 = vld [vmem:[%s1 + $0xc50] sm:$0xff]
  %v432 = vld [vmem:[%s1 + $0xc58] sm:$0xff]
  %v433 = vld [vmem:[%s1 + $0xc60] sm:$0xff]
  %v434 = vld [vmem:[%s1 + $0xc68] sm:$0xff]
  %v435 = vld [vmem:[%s1 + $0xc70] sm:$0xff]
  %v436 = vld [vmem:[%s1 + $0xc78] sm:$0xff]
  %v437 = vld [vmem:[%s1 + $0xc80] sm:$0xff]
  %v438 = vld [vmem:[%s1 + $0xc88] sm:$0xff]
  %v439 = vld [vmem:[%s1 + $0xc90] sm:$0xff]
  %v440 = vld [vmem:[%s1 + $0xc98] sm:$0xff]
  %v441 = vld [vmem:[%s1 + $0xca0] sm:$0xff]
  %v442 = vld [vmem:[%s1 + $0xca8] sm:$0xff]
  %v443 = vld [vmem:[%s1 + $0xcb0] sm:$0xff]
  %v444 = vld [vmem:[%s1 + $0xcb8] sm:$0xff]
  %v445 = vld [vmem:[%s1 + $0xcc0] sm:$0xff]
  %v446 = vld [vmem:[%s1 + $0xcc8] sm:$0xff]
  %v447 = vld [vmem:[%s1 + $0xcd0] sm:$0xff]
  %v448 = vld [vmem:[%s1 + $0xcd8] sm:$0xff]
  %v449 = vld [vmem:[%s1 + $0xce0] sm:$0xff]
  %v450 = vld [vmem:[%s1 + $0xce8] sm:$0xff]
  %v451 = vld [vmem:[%s1 + $0xcf0] sm:$0xff]
  %v452 = vld [vmem:[%s1 + $0xcf8] sm:$0xff]
  %v453 = vld [vmem:[%s1 + $0xd00] sm:$0xff]
  %v454 = vld [vmem:[%s1 + $0xd08] sm:$0xff]
  %v455 = vld [vmem:[%s1 + $0xd10] sm:$0xff]
  %v456 = vld [vmem:[%s1 + $0xd18] sm:$0xff]
  %v457 = vld [vmem:[%s1 + $0xd20] sm:$0xff]
  %v458 = vld [vmem:[%s1 + $0xd28] sm:$0xff]
  %v459 = vld [vmem:[%s1 + $0xd30] sm:$0xff]
  %v460 = vld [vmem:[%s1 + $0xd38] sm:$0xff]
  %v461 = vld [vmem:[%s1 + $0xd40] sm:$0xff]
  %v462 = vld [vmem:[%s1 + $0xd48] sm:$0xff]
  %v463 = vld [vmem:[%s1 + $0xd50] sm:$0xff]
  %v464 = vld [vmem:[%s1 + $0xd58] sm:$0xff]
  %v465 = vld [vmem:[%s1 + $0xd60] sm:$0xff]
  %v466 = vld [vmem:[%s1 + $0xd68] sm:$0xff]
  %v467 = vld [vmem:[%s1 + $0xd70] sm:$0xff]
  %v468 = vld [vmem:[%s1 + $0xd78] sm:$0xff]
  %v469 = vld [vmem:[%s1 + $0xd80] sm:$0xff]
  %v470 = vld [vmem:[%s1 + $0xd88] sm:$0xff]
  %v471 = vld [vmem:[%s1 + $0xd90] sm:$0xff]
  %v472 = vld [vmem:[%s1 + $0xd98] sm:$0xff]
  %v473 = vld [vmem:[%s1 + $0xda0] sm:$0xff]
  %v474 = vld [vmem:[%s1 + $0xda8] sm:$0xff]
  %v475 = vld [vmem:[%s1 + $0xdb0] sm:$0xff]
  %v476 = vld [vmem:[%s1 + $0xdb8] sm:$0xff]
  %v477 = vld [vmem:[%s1 + $0xdc0] sm:$0xff]
  %v478 = vld [vmem:[%s1 + $0xdc8] sm:$0xff]
  %v479 = vld [vmem:[%s1 + $0xdd0] sm:$0xff]
  %v480 = vld [vmem:[%s1 + $0xdd8] sm:$0xff]
  %v481 = vld [vmem:[%s1 + $0xde0] sm:$0xff]
  %v482 = vld [vmem:[%s1 + $0xde8] sm:$0xff]
  %v483 = vld [vmem:[%s1 + $0xdf0] sm:$0xff]
  %v484 = vld [vmem:[%s1 + $0xdf8] sm:$0xff]
  %v485 = vld [vmem:[%s1 + $0xe00] sm:$0xff]
  %v486 = vld [vmem:[%s1 + $0xe08] sm:$0xff]
  %v487 = vld [vmem:[%s1 + $0xe10] sm:$0xff]
  %v488 = vld [vmem:[%s1 + $0xe18] sm:$0xff]
  %v489 = vld [vmem:[%s1 + $0xe20] sm:$0xff]
  %v490 = vld [vmem:[%s1 + $0xe28] sm:$0xff]
  %v491 = vld [vmem:[%s1 + $0xe30] sm:$0xff]
  %v492 = vld [vmem:[%s1 + $0xe38] sm:$0xff]
  %v493 = vld [vmem:[%s1 + $0xe40] sm:$0xff]
  %v494 = vld [vmem:[%s1 + $0xe48] sm:$0xff]
  %v495 = vld [vmem:[%s1 + $0xe50] sm:$0xff]
  %v496 = vld [vmem:[%s1 + $0xe58] sm:$0xff]
  %v497 = vld [vmem:[%s1 + $0xe60] sm:$0xff]
  %v498 = vld [vmem:[%s1 + $0xe68] sm:$0xff]
  %v499 = vld [vmem:[%s1 + $0xe70] sm:$0xff]
  %v500 = vld [vmem:[%s1 + $0xe78] sm:$0xff]
  %v501 = vld [vmem:[%s1 + $0xe80] sm:$0xff]
  %v502 = vld [vmem:[%s1 + $0xe88] sm:$0xff]
  %v503 = vld [vmem:[%s1 + $0xe90] sm:$0xff]
  %v504 = vld [vmem:[%s1 + $0xe98] sm:$0xff]
  %v505 = vld [vmem:[%s1 + $0xea0] sm:$0xff]
  %v506 = vld [vmem:[%s1 + $0xea8] sm:$0xff]
  %v507 = vld [vmem:[%s1 + $0xeb0] sm:$0xff]
  %v508 = vld [vmem:[%s1 + $0xeb8] sm:$0xff]
  %v509 = vld [vmem:[%s1 + $0xec0] sm:$0xff]
  %v510 = vld [vmem:[%s1 + $0xec8] sm:$0xff]
  %v511 = vld [vmem:[%s1 + $0xed0] sm:$0xff]
  %v512 = vld [vmem:[%s1 + $0xed8] sm:$0xff]
  %v513 = vld [vmem:[%s1 + $0xee0] sm:$0xff]
  %v514 = vld [vmem:[%s1 + $0xee8] sm:$0xff]
  %v515 = vld [vmem:[%s1 + $0xef0] sm:$0xff]
  %v516 = vld [vmem:[%s1 + $0xef8] sm:$0xff]
  %v517 = vld [vmem:[%s1 + $0xf00] sm:$0xff]
  %v518 = vld [vmem:[%s1 + $0xf08] sm:$0xff]
  %v519 = vld [vmem:[%s1 + $0xf10] sm:$0xff]
  %v520 = vld [vmem:[%s1 + $0xf18] sm:$0xff]
  %v521 = vld [vmem:[%s1 + $0xf20] sm:$0xff]
  %v522 = vld [vmem:[%s1 + $0xf28] sm:$0xff]
  %v523 = vld [vmem:[%s1 + $0xf30] sm:$0xff]
  %v524 = vld [vmem:[%s1 + $0xf38] sm:$0xff]
  %v525 = vld [vmem:[%s1 + $0xf40] sm:$0xff]
  %v526 = vld [vmem:[%s1 + $0xf48] sm:$0xff]
  %v527 = vld [vmem:[%s1 + $0xf50] sm:$0xff]
  %v528 = vld [vmem:[%s1 + $0xf58] sm:$0xff]
  %v529 = vld [vmem:[%s1 + $0xf60] sm:$0xff]
  %v530 = vld [vmem:[%s1 + $0xf68] sm:$0xff]
  %v531 = vld [vmem:[%s1 + $0xf70] sm:$0xff]
  %v532 = vld [vmem:[%s1 + $0xf78] sm:$0xff]
  %v533 = vld [vmem:[%s1 + $0xf80] sm:$0xff]
  %v534 = vld [vmem:[%s1 + $0xf88] sm:$0xff]
  %v535 = vld [vmem:[%s1 + $0xf90] sm:$0xff]
  %v536 = vld [vmem:[%s1 + $0xf98] sm:$0xff]
  %v537 = vld [vmem:[%s1 + $0xfa0] sm:$0xff]
  %v538 = vld [vmem:[%s1 + $0xfa8] sm:$0xff]
  %v539 = vld [vmem:[%s1 + $0xfb0] sm:$0xff]
  %v540 = vld [vmem:[%s1 + $0xfb8] sm:$0xff]
  %v541 = vld [vmem:[%s1 + $0xfc0] sm:$0xff]
  %v542 = vld [vmem:[%s1 + $0xfc8] sm:$0xff]
  %v543 = vld [vmem:[%s1 + $0xfd0] sm:$0xff]
  %v544 = vld [vmem:[%s1 + $0xfd8] sm:$0xff]
  %v545 = vld [vmem:[%s1 + $0xfe0] sm:$0xff]
  %v546 = vld [vmem:[%s1 + $0xfe8] sm:$0xff]
  %v547 = vld [vmem:[%s1 + $0xff0] sm:$0xff]
  %v548 = vld [vmem:[%s1 + $0xff8] sm:$0xff]
  %v549 = vld [vmem:[%s2] sm:$0xff]
  %v551 = vperm.slane %v549, 0
  %v552 = vperm.slane %v549, 1
  %v553 = vperm.slane %v549, 2
  %v554 = vperm.slane %v549, 3
  %v555 = vperm.slane %v549, 4
  %v556 = vperm.slane %v549, 5
  %v557 = vperm.slane %v549, 6
  %v558 = vperm.slane %v549, 7
  %v575 = vunpack.c.l.b16 %v29
  %v576 = vunpack.c.h.b16 %v29
  %v577 = vunpack.c.l.b16 %v30
  %v578 = vunpack.c.h.b16 %v30
  %v579 = vunpack.c.l.b16 %v31
  %v580 = vunpack.c.h.b16 %v31
  %v581 = vunpack.c.l.b16 %v32
  %v582 = vunpack.c.h.b16 %v32
  %v583 = vunpack.c.l.b16 %v33
  %v584 = vunpack.c.h.b16 %v33
  %v585 = vunpack.c.l.b16 %v34
  %v586 = vunpack.c.h.b16 %v34
  %v587 = vunpack.c.l.b16 %v35
  %v588 = vunpack.c.h.b16 %v35
  %v589 = vunpack.c.l.b16 %v36
  %v590 = vunpack.c.h.b16 %v36
  %v591 = vpack.c.b16 %v583, %v575
  %v592 = vpack.c.b16 %v584, %v576
  %v593 = vpack.c.b16 %v585, %v577
  %v594 = vpack.c.b16 %v586, %v578
  %v595 = vpack.c.b16 %v587, %v579
  %v596 = vpack.c.b16 %v588, %v580
  %v597 = vpack.c.b16 %v589, %v581
  %v598 = vpack.c.b16 %v590, %v582
  %v1119 = vunpack.c.l.b16 %v37
  %v1120 = vunpack.c.h.b16 %v37
  %v1121 = vunpack.c.l.b16 %v38
  %v1122 = vunpack.c.h.b16 %v38
  %v1123 = vunpack.c.l.b16 %v39
  %v1124 = vunpack.c.h.b16 %v39
  %v1125 = vunpack.c.l.b16 %v40
  %v1126 = vunpack.c.h.b16 %v40
  %v1127 = vunpack.c.l.b16 %v41
  %v1128 = vunpack.c.h.b16 %v41
  %v1129 = vunpack.c.l.b16 %v42
  %v1130 = vunpack.c.h.b16 %v42
  %v1131 = vunpack.c.l.b16 %v43
  %v1132 = vunpack.c.h.b16 %v43
  %v1133 = vunpack.c.l.b16 %v44
  %v1134 = vunpack.c.h.b16 %v44
  %v1135 = vunpack.c.l.b16 %v45
  %v1136 = vunpack.c.h.b16 %v45
  %v1137 = vunpack.c.l.b16 %v46
  %v1138 = vunpack.c.h.b16 %v46
  %v1139 = vunpack.c.l.b16 %v47
  %v1140 = vunpack.c.h.b16 %v47
  %v1141 = vunpack.c.l.b16 %v48
  %v1142 = vunpack.c.h.b16 %v48
  %v1143 = vunpack.c.l.b16 %v49
  %v1144 = vunpack.c.h.b16 %v49
  %v1145 = vunpack.c.l.b16 %v50
  %v1146 = vunpack.c.h.b16 %v50
  %v1147 = vunpack.c.l.b16 %v51
  %v1148 = vunpack.c.h.b16 %v51
  %v1149 = vunpack.c.l.b16 %v52
  %v1150 = vunpack.c.h.b16 %v52
  %v1151 = vunpack.c.l.b16 %v53
  %v1152 = vunpack.c.h.b16 %v53
  %v1153 = vunpack.c.l.b16 %v54
  %v1154 = vunpack.c.h.b16 %v54
  %v1155 = vunpack.c.l.b16 %v55
  %v1156 = vunpack.c.h.b16 %v55
  %v1157 = vunpack.c.l.b16 %v56
  %v1158 = vunpack.c.h.b16 %v56
  %v1159 = vunpack.c.l.b16 %v57
  %v1160 = vunpack.c.h.b16 %v57
  %v1161 = vunpack.c.l.b16 %v58
  %v1162 = vunpack.c.h.b16 %v58
  %v1163 = vunpack.c.l.b16 %v59
  %v1164 = vunpack.c.h.b16 %v59
  %v1165 = vunpack.c.l.b16 %v60
  %v1166 = vunpack.c.h.b16 %v60
  %v1167 = vunpack.c.l.b16 %v61
  %v1168 = vunpack.c.h.b16 %v61
  %v1169 = vunpack.c.l.b16 %v62
  %v1170 = vunpack.c.h.b16 %v62
  %v1171 = vunpack.c.l.b16 %v63
  %v1172 = vunpack.c.h.b16 %v63
  %v1173 = vunpack.c.l.b16 %v64
  %v1174 = vunpack.c.h.b16 %v64
  %v1175 = vunpack.c.l.b16 %v65
  %v1176 = vunpack.c.h.b16 %v65
  %v1177 = vunpack.c.l.b16 %v66
  %v1178 = vunpack.c.h.b16 %v66
  %v1179 = vunpack.c.l.b16 %v67
  %v1180 = vunpack.c.h.b16 %v67
  %v1181 = vunpack.c.l.b16 %v68
  %v1182 = vunpack.c.h.b16 %v68
  %v1183 = vunpack.c.l.b16 %v69
  %v1184 = vunpack.c.h.b16 %v69
  %v1185 = vunpack.c.l.b16 %v70
  %v1186 = vunpack.c.h.b16 %v70
  %v1187 = vunpack.c.l.b16 %v71
  %v1188 = vunpack.c.h.b16 %v71
  %v1189 = vunpack.c.l.b16 %v72
  %v1190 = vunpack.c.h.b16 %v72
  %v1191 = vunpack.c.l.b16 %v73
  %v1192 = vunpack.c.h.b16 %v73
  %v1193 = vunpack.c.l.b16 %v74
  %v1194 = vunpack.c.h.b16 %v74
  %v1195 = vunpack.c.l.b16 %v75
  %v1196 = vunpack.c.h.b16 %v75
  %v1197 = vunpack.c.l.b16 %v76
  %v1198 = vunpack.c.h.b16 %v76
  %v1199 = vunpack.c.l.b16 %v77
  %v1200 = vunpack.c.h.b16 %v77
  %v1201 = vunpack.c.l.b16 %v78
  %v1202 = vunpack.c.h.b16 %v78
  %v1203 = vunpack.c.l.b16 %v79
  %v1204 = vunpack.c.h.b16 %v79
  %v1205 = vunpack.c.l.b16 %v80
  %v1206 = vunpack.c.h.b16 %v80
  %v1207 = vunpack.c.l.b16 %v81
  %v1208 = vunpack.c.h.b16 %v81
  %v1209 = vunpack.c.l.b16 %v82
  %v1210 = vunpack.c.h.b16 %v82
  %v1211 = vunpack.c.l.b16 %v83
  %v1212 = vunpack.c.h.b16 %v83
  %v1213 = vunpack.c.l.b16 %v84
  %v1214 = vunpack.c.h.b16 %v84
  %v1215 = vunpack.c.l.b16 %v85
  %v1216 = vunpack.c.h.b16 %v85
  %v1217 = vunpack.c.l.b16 %v86
  %v1218 = vunpack.c.h.b16 %v86
  %v1219 = vunpack.c.l.b16 %v87
  %v1220 = vunpack.c.h.b16 %v87
  %v1221 = vunpack.c.l.b16 %v88
  %v1222 = vunpack.c.h.b16 %v88
  %v1223 = vunpack.c.l.b16 %v89
  %v1224 = vunpack.c.h.b16 %v89
  %v1225 = vunpack.c.l.b16 %v90
  %v1226 = vunpack.c.h.b16 %v90
  %v1227 = vunpack.c.l.b16 %v91
  %v1228 = vunpack.c.h.b16 %v91
  %v1229 = vunpack.c.l.b16 %v92
  %v1230 = vunpack.c.h.b16 %v92
  %v1231 = vunpack.c.l.b16 %v93
  %v1232 = vunpack.c.h.b16 %v93
  %v1233 = vunpack.c.l.b16 %v94
  %v1234 = vunpack.c.h.b16 %v94
  %v1235 = vunpack.c.l.b16 %v95
  %v1236 = vunpack.c.h.b16 %v95
  %v1237 = vunpack.c.l.b16 %v96
  %v1238 = vunpack.c.h.b16 %v96
  %v1239 = vunpack.c.l.b16 %v97
  %v1240 = vunpack.c.h.b16 %v97
  %v1241 = vunpack.c.l.b16 %v98
  %v1242 = vunpack.c.h.b16 %v98
  %v1243 = vunpack.c.l.b16 %v99
  %v1244 = vunpack.c.h.b16 %v99
  %v1245 = vunpack.c.l.b16 %v100
  %v1246 = vunpack.c.h.b16 %v100
  %v1247 = vunpack.c.l.b16 %v101
  %v1248 = vunpack.c.h.b16 %v101
  %v1249 = vunpack.c.l.b16 %v102
  %v1250 = vunpack.c.h.b16 %v102
  %v1251 = vunpack.c.l.b16 %v103
  %v1252 = vunpack.c.h.b16 %v103
  %v1253 = vunpack.c.l.b16 %v104
  %v1254 = vunpack.c.h.b16 %v104
  %v1255 = vunpack.c.l.b16 %v105
  %v1256 = vunpack.c.h.b16 %v105
  %v1257 = vunpack.c.l.b16 %v106
  %v1258 = vunpack.c.h.b16 %v106
  %v1259 = vunpack.c.l.b16 %v107
  %v1260 = vunpack.c.h.b16 %v107
  %v1261 = vunpack.c.l.b16 %v108
  %v1262 = vunpack.c.h.b16 %v108
  %v1263 = vunpack.c.l.b16 %v109
  %v1264 = vunpack.c.h.b16 %v109
  %v1265 = vunpack.c.l.b16 %v110
  %v1266 = vunpack.c.h.b16 %v110
  %v1267 = vunpack.c.l.b16 %v111
  %v1268 = vunpack.c.h.b16 %v111
  %v1269 = vunpack.c.l.b16 %v112
  %v1270 = vunpack.c.h.b16 %v112
  %v1271 = vunpack.c.l.b16 %v113
  %v1272 = vunpack.c.h.b16 %v113
  %v1273 = vunpack.c.l.b16 %v114
  %v1274 = vunpack.c.h.b16 %v114
  %v1275 = vunpack.c.l.b16 %v115
  %v1276 = vunpack.c.h.b16 %v115
  %v1277 = vunpack.c.l.b16 %v116
  %v1278 = vunpack.c.h.b16 %v116
  %v1279 = vunpack.c.l.b16 %v117
  %v1280 = vunpack.c.h.b16 %v117
  %v1281 = vunpack.c.l.b16 %v118
  %v1282 = vunpack.c.h.b16 %v118
  %v1283 = vunpack.c.l.b16 %v119
  %v1284 = vunpack.c.h.b16 %v119
  %v1285 = vunpack.c.l.b16 %v120
  %v1286 = vunpack.c.h.b16 %v120
  %v1287 = vunpack.c.l.b16 %v121
  %v1288 = vunpack.c.h.b16 %v121
  %v1289 = vunpack.c.l.b16 %v122
  %v1290 = vunpack.c.h.b16 %v122
  %v1291 = vunpack.c.l.b16 %v123
  %v1292 = vunpack.c.h.b16 %v123
  %v1293 = vunpack.c.l.b16 %v124
  %v1294 = vunpack.c.h.b16 %v124
  %v1295 = vunpack.c.l.b16 %v125
  %v1296 = vunpack.c.h.b16 %v125
  %v1297 = vunpack.c.l.b16 %v126
  %v1298 = vunpack.c.h.b16 %v126
  %v1299 = vunpack.c.l.b16 %v127
  %v1300 = vunpack.c.h.b16 %v127
  %v1301 = vunpack.c.l.b16 %v128
  %v1302 = vunpack.c.h.b16 %v128
  %v1303 = vunpack.c.l.b16 %v129
  %v1304 = vunpack.c.h.b16 %v129
  %v1305 = vunpack.c.l.b16 %v130
  %v1306 = vunpack.c.h.b16 %v130
  %v1307 = vunpack.c.l.b16 %v131
  %v1308 = vunpack.c.h.b16 %v131
  %v1309 = vunpack.c.l.b16 %v132
  %v1310 = vunpack.c.h.b16 %v132
  %v1311 = vunpack.c.l.b16 %v133
  %v1312 = vunpack.c.h.b16 %v133
  %v1313 = vunpack.c.l.b16 %v134
  %v1314 = vunpack.c.h.b16 %v134
  %v1315 = vunpack.c.l.b16 %v135
  %v1316 = vunpack.c.h.b16 %v135
  %v1317 = vunpack.c.l.b16 %v136
  %v1318 = vunpack.c.h.b16 %v136
  %v1319 = vunpack.c.l.b16 %v137
  %v1320 = vunpack.c.h.b16 %v137
  %v1321 = vunpack.c.l.b16 %v138
  %v1322 = vunpack.c.h.b16 %v138
  %v1323 = vunpack.c.l.b16 %v139
  %v1324 = vunpack.c.h.b16 %v139
  %v1325 = vunpack.c.l.b16 %v140
  %v1326 = vunpack.c.h.b16 %v140
  %v1327 = vunpack.c.l.b16 %v141
  %v1328 = vunpack.c.h.b16 %v141
  %v1329 = vunpack.c.l.b16 %v142
  %v1330 = vunpack.c.h.b16 %v142
  %v1331 = vunpack.c.l.b16 %v143
  %v1332 = vunpack.c.h.b16 %v143
  %v1333 = vunpack.c.l.b16 %v144
  %v1334 = vunpack.c.h.b16 %v144
  %v1335 = vunpack.c.l.b16 %v145
  %v1336 = vunpack.c.h.b16 %v145
  %v1337 = vunpack.c.l.b16 %v146
  %v1338 = vunpack.c.h.b16 %v146
  %v1339 = vunpack.c.l.b16 %v147
  %v1340 = vunpack.c.h.b16 %v147
  %v1341 = vunpack.c.l.b16 %v148
  %v1342 = vunpack.c.h.b16 %v148
  %v1343 = vunpack.c.l.b16 %v149
  %v1344 = vunpack.c.h.b16 %v149
  %v1345 = vunpack.c.l.b16 %v150
  %v1346 = vunpack.c.h.b16 %v150
  %v1347 = vunpack.c.l.b16 %v151
  %v1348 = vunpack.c.h.b16 %v151
  %v1349 = vunpack.c.l.b16 %v152
  %v1350 = vunpack.c.h.b16 %v152
  %v1351 = vunpack.c.l.b16 %v153
  %v1352 = vunpack.c.h.b16 %v153
  %v1353 = vunpack.c.l.b16 %v154
  %v1354 = vunpack.c.h.b16 %v154
  %v1355 = vunpack.c.l.b16 %v155
  %v1356 = vunpack.c.h.b16 %v155
  %v1357 = vunpack.c.l.b16 %v156
  %v1358 = vunpack.c.h.b16 %v156
  %v1359 = vunpack.c.l.b16 %v157
  %v1360 = vunpack.c.h.b16 %v157
  %v1361 = vunpack.c.l.b16 %v158
  %v1362 = vunpack.c.h.b16 %v158
  %v1363 = vunpack.c.l.b16 %v159
  %v1364 = vunpack.c.h.b16 %v159
  %v1365 = vunpack.c.l.b16 %v160
  %v1366 = vunpack.c.h.b16 %v160
  %v1367 = vunpack.c.l.b16 %v161
  %v1368 = vunpack.c.h.b16 %v161
  %v1369 = vunpack.c.l.b16 %v162
  %v1370 = vunpack.c.h.b16 %v162
  %v1371 = vunpack.c.l.b16 %v163
  %v1372 = vunpack.c.h.b16 %v163
  %v1373 = vunpack.c.l.b16 %v164
  %v1374 = vunpack.c.h.b16 %v164
  %v1375 = vunpack.c.l.b16 %v165
  %v1376 = vunpack.c.h.b16 %v165
  %v1377 = vunpack.c.l.b16 %v166
  %v1378 = vunpack.c.h.b16 %v166
  %v1379 = vunpack.c.l.b16 %v167
  %v1380 = vunpack.c.h.b16 %v167
  %v1381 = vunpack.c.l.b16 %v168
  %v1382 = vunpack.c.h.b16 %v168
  %v1383 = vunpack.c.l.b16 %v169
  %v1384 = vunpack.c.h.b16 %v169
  %v1385 = vunpack.c.l.b16 %v170
  %v1386 = vunpack.c.h.b16 %v170
  %v1387 = vunpack.c.l.b16 %v171
  %v1388 = vunpack.c.h.b16 %v171
  %v1389 = vunpack.c.l.b16 %v172
  %v1390 = vunpack.c.h.b16 %v172
  %v1391 = vunpack.c.l.b16 %v173
  %v1392 = vunpack.c.h.b16 %v173
  %v1393 = vunpack.c.l.b16 %v174
  %v1394 = vunpack.c.h.b16 %v174
  %v1395 = vunpack.c.l.b16 %v175
  %v1396 = vunpack.c.h.b16 %v175
  %v1397 = vunpack.c.l.b16 %v176
  %v1398 = vunpack.c.h.b16 %v176
  %v1399 = vunpack.c.l.b16 %v177
  %v1400 = vunpack.c.h.b16 %v177
  %v1401 = vunpack.c.l.b16 %v178
  %v1402 = vunpack.c.h.b16 %v178
  %v1403 = vunpack.c.l.b16 %v179
  %v1404 = vunpack.c.h.b16 %v179
  %v1405 = vunpack.c.l.b16 %v180
  %v1406 = vunpack.c.h.b16 %v180
  %v1407 = vunpack.c.l.b16 %v181
  %v1408 = vunpack.c.h.b16 %v181
  %v1409 = vunpack.c.l.b16 %v182
  %v1410 = vunpack.c.h.b16 %v182
  %v1411 = vunpack.c.l.b16 %v183
  %v1412 = vunpack.c.h.b16 %v183
  %v1413 = vunpack.c.l.b16 %v184
  %v1414 = vunpack.c.h.b16 %v184
  %v1415 = vunpack.c.l.b16 %v185
  %v1416 = vunpack.c.h.b16 %v185
  %v1417 = vunpack.c.l.b16 %v186
  %v1418 = vunpack.c.h.b16 %v186
  %v1419 = vunpack.c.l.b16 %v187
  %v1420 = vunpack.c.h.b16 %v187
  %v1421 = vunpack.c.l.b16 %v188
  %v1422 = vunpack.c.h.b16 %v188
  %v1423 = vunpack.c.l.b16 %v189
  %v1424 = vunpack.c.h.b16 %v189
  %v1425 = vunpack.c.l.b16 %v190
  %v1426 = vunpack.c.h.b16 %v190
  %v1427 = vunpack.c.l.b16 %v191
  %v1428 = vunpack.c.h.b16 %v191
  %v1429 = vunpack.c.l.b16 %v192
  %v1430 = vunpack.c.h.b16 %v192
  %v1431 = vunpack.c.l.b16 %v193
  %v1432 = vunpack.c.h.b16 %v193
  %v1433 = vunpack.c.l.b16 %v194
  %v1434 = vunpack.c.h.b16 %v194
  %v1435 = vunpack.c.l.b16 %v195
  %v1436 = vunpack.c.h.b16 %v195
  %v1437 = vunpack.c.l.b16 %v196
  %v1438 = vunpack.c.h.b16 %v196
  %v1439 = vunpack.c.l.b16 %v197
  %v1440 = vunpack.c.h.b16 %v197
  %v1441 = vunpack.c.l.b16 %v198
  %v1442 = vunpack.c.h.b16 %v198
  %v1443 = vunpack.c.l.b16 %v199
  %v1444 = vunpack.c.h.b16 %v199
  %v1445 = vunpack.c.l.b16 %v200
  %v1446 = vunpack.c.h.b16 %v200
  %v1447 = vunpack.c.l.b16 %v201
  %v1448 = vunpack.c.h.b16 %v201
  %v1449 = vunpack.c.l.b16 %v202
  %v1450 = vunpack.c.h.b16 %v202
  %v1451 = vunpack.c.l.b16 %v203
  %v1452 = vunpack.c.h.b16 %v203
  %v1453 = vunpack.c.l.b16 %v204
  %v1454 = vunpack.c.h.b16 %v204
  %v1455 = vunpack.c.l.b16 %v205
  %v1456 = vunpack.c.h.b16 %v205
  %v1457 = vunpack.c.l.b16 %v206
  %v1458 = vunpack.c.h.b16 %v206
  %v1459 = vunpack.c.l.b16 %v207
  %v1460 = vunpack.c.h.b16 %v207
  %v1461 = vunpack.c.l.b16 %v208
  %v1462 = vunpack.c.h.b16 %v208
  %v1463 = vunpack.c.l.b16 %v209
  %v1464 = vunpack.c.h.b16 %v209
  %v1465 = vunpack.c.l.b16 %v210
  %v1466 = vunpack.c.h.b16 %v210
  %v1467 = vunpack.c.l.b16 %v211
  %v1468 = vunpack.c.h.b16 %v211
  %v1469 = vunpack.c.l.b16 %v212
  %v1470 = vunpack.c.h.b16 %v212
  %v1471 = vunpack.c.l.b16 %v213
  %v1472 = vunpack.c.h.b16 %v213
  %v1473 = vunpack.c.l.b16 %v214
  %v1474 = vunpack.c.h.b16 %v214
  %v1475 = vunpack.c.l.b16 %v215
  %v1476 = vunpack.c.h.b16 %v215
  %v1477 = vunpack.c.l.b16 %v216
  %v1478 = vunpack.c.h.b16 %v216
  %v1479 = vunpack.c.l.b16 %v217
  %v1480 = vunpack.c.h.b16 %v217
  %v1481 = vunpack.c.l.b16 %v218
  %v1482 = vunpack.c.h.b16 %v218
  %v1483 = vunpack.c.l.b16 %v219
  %v1484 = vunpack.c.h.b16 %v219
  %v1485 = vunpack.c.l.b16 %v220
  %v1486 = vunpack.c.h.b16 %v220
  %v1487 = vunpack.c.l.b16 %v221
  %v1488 = vunpack.c.h.b16 %v221
  %v1489 = vunpack.c.l.b16 %v222
  %v1490 = vunpack.c.h.b16 %v222
  %v1491 = vunpack.c.l.b16 %v223
  %v1492 = vunpack.c.h.b16 %v223
  %v1493 = vunpack.c.l.b16 %v224
  %v1494 = vunpack.c.h.b16 %v224
  %v1495 = vunpack.c.l.b16 %v225
  %v1496 = vunpack.c.h.b16 %v225
  %v1497 = vunpack.c.l.b16 %v226
  %v1498 = vunpack.c.h.b16 %v226
  %v1499 = vunpack.c.l.b16 %v227
  %v1500 = vunpack.c.h.b16 %v227
  %v1501 = vunpack.c.l.b16 %v228
  %v1502 = vunpack.c.h.b16 %v228
  %v1503 = vunpack.c.l.b16 %v229
  %v1504 = vunpack.c.h.b16 %v229
  %v1505 = vunpack.c.l.b16 %v230
  %v1506 = vunpack.c.h.b16 %v230
  %v1507 = vunpack.c.l.b16 %v231
  %v1508 = vunpack.c.h.b16 %v231
  %v1509 = vunpack.c.l.b16 %v232
  %v1510 = vunpack.c.h.b16 %v232
  %v1511 = vunpack.c.l.b16 %v233
  %v1512 = vunpack.c.h.b16 %v233
  %v1513 = vunpack.c.l.b16 %v234
  %v1514 = vunpack.c.h.b16 %v234
  %v1515 = vunpack.c.l.b16 %v235
  %v1516 = vunpack.c.h.b16 %v235
  %v1517 = vunpack.c.l.b16 %v236
  %v1518 = vunpack.c.h.b16 %v236
  %v1519 = vunpack.c.l.b16 %v237
  %v1520 = vunpack.c.h.b16 %v237
  %v1521 = vunpack.c.l.b16 %v238
  %v1522 = vunpack.c.h.b16 %v238
  %v1523 = vunpack.c.l.b16 %v239
  %v1524 = vunpack.c.h.b16 %v239
  %v1525 = vunpack.c.l.b16 %v240
  %v1526 = vunpack.c.h.b16 %v240
  %v1527 = vunpack.c.l.b16 %v241
  %v1528 = vunpack.c.h.b16 %v241
  %v1529 = vunpack.c.l.b16 %v242
  %v1530 = vunpack.c.h.b16 %v242
  %v1531 = vunpack.c.l.b16 %v243
  %v1532 = vunpack.c.h.b16 %v243
  %v1533 = vunpack.c.l.b16 %v244
  %v1534 = vunpack.c.h.b16 %v244
  %v1535 = vunpack.c.l.b16 %v245
  %v1536 = vunpack.c.h.b16 %v245
  %v1537 = vunpack.c.l.b16 %v246
  %v1538 = vunpack.c.h.b16 %v246
  %v1539 = vunpack.c.l.b16 %v247
  %v1540 = vunpack.c.h.b16 %v247
  %v1541 = vunpack.c.l.b16 %v248
  %v1542 = vunpack.c.h.b16 %v248
  %v1543 = vunpack.c.l.b16 %v249
  %v1544 = vunpack.c.h.b16 %v249
  %v1545 = vunpack.c.l.b16 %v250
  %v1546 = vunpack.c.h.b16 %v250
  %v1547 = vunpack.c.l.b16 %v251
  %v1548 = vunpack.c.h.b16 %v251
  %v1549 = vunpack.c.l.b16 %v252
  %v1550 = vunpack.c.h.b16 %v252
  %v1551 = vunpack.c.l.b16 %v253
  %v1552 = vunpack.c.h.b16 %v253
  %v1553 = vunpack.c.l.b16 %v254
  %v1554 = vunpack.c.h.b16 %v254
  %v1555 = vunpack.c.l.b16 %v255
  %v1556 = vunpack.c.h.b16 %v255
  %v1557 = vunpack.c.l.b16 %v256
  %v1558 = vunpack.c.h.b16 %v256
  %v1559 = vunpack.c.l.b16 %v257
  %v1560 = vunpack.c.h.b16 %v257
  %v1561 = vunpack.c.l.b16 %v258
  %v1562 = vunpack.c.h.b16 %v258
  %v1563 = vunpack.c.l.b16 %v259
  %v1564 = vunpack.c.h.b16 %v259
  %v1565 = vunpack.c.l.b16 %v260
  %v1566 = vunpack.c.h.b16 %v260
  %v1567 = vunpack.c.l.b16 %v261
  %v1568 = vunpack.c.h.b16 %v261
  %v1569 = vunpack.c.l.b16 %v262
  %v1570 = vunpack.c.h.b16 %v262
  %v1571 = vunpack.c.l.b16 %v263
  %v1572 = vunpack.c.h.b16 %v263
  %v1573 = vunpack.c.l.b16 %v264
  %v1574 = vunpack.c.h.b16 %v264
  %v1575 = vunpack.c.l.b16 %v265
  %v1576 = vunpack.c.h.b16 %v265
  %v1577 = vunpack.c.l.b16 %v266
  %v1578 = vunpack.c.h.b16 %v266
  %v1579 = vunpack.c.l.b16 %v267
  %v1580 = vunpack.c.h.b16 %v267
  %v1581 = vunpack.c.l.b16 %v268
  %v1582 = vunpack.c.h.b16 %v268
  %v1583 = vunpack.c.l.b16 %v269
  %v1584 = vunpack.c.h.b16 %v269
  %v1585 = vunpack.c.l.b16 %v270
  %v1586 = vunpack.c.h.b16 %v270
  %v1587 = vunpack.c.l.b16 %v271
  %v1588 = vunpack.c.h.b16 %v271
  %v1589 = vunpack.c.l.b16 %v272
  %v1590 = vunpack.c.h.b16 %v272
  %v1591 = vunpack.c.l.b16 %v273
  %v1592 = vunpack.c.h.b16 %v273
  %v1593 = vunpack.c.l.b16 %v274
  %v1594 = vunpack.c.h.b16 %v274
  %v1595 = vunpack.c.l.b16 %v275
  %v1596 = vunpack.c.h.b16 %v275
  %v1597 = vunpack.c.l.b16 %v276
  %v1598 = vunpack.c.h.b16 %v276
  %v1599 = vunpack.c.l.b16 %v277
  %v1600 = vunpack.c.h.b16 %v277
  %v1601 = vunpack.c.l.b16 %v278
  %v1602 = vunpack.c.h.b16 %v278
  %v1603 = vunpack.c.l.b16 %v279
  %v1604 = vunpack.c.h.b16 %v279
  %v1605 = vunpack.c.l.b16 %v280
  %v1606 = vunpack.c.h.b16 %v280
  %v1607 = vunpack.c.l.b16 %v281
  %v1608 = vunpack.c.h.b16 %v281
  %v1609 = vunpack.c.l.b16 %v282
  %v1610 = vunpack.c.h.b16 %v282
  %v1611 = vunpack.c.l.b16 %v283
  %v1612 = vunpack.c.h.b16 %v283
  %v1613 = vunpack.c.l.b16 %v284
  %v1614 = vunpack.c.h.b16 %v284
  %v1615 = vunpack.c.l.b16 %v285
  %v1616 = vunpack.c.h.b16 %v285
  %v1617 = vunpack.c.l.b16 %v286
  %v1618 = vunpack.c.h.b16 %v286
  %v1619 = vunpack.c.l.b16 %v287
  %v1620 = vunpack.c.h.b16 %v287
  %v1621 = vunpack.c.l.b16 %v288
  %v1622 = vunpack.c.h.b16 %v288
  %v1623 = vunpack.c.l.b16 %v289
  %v1624 = vunpack.c.h.b16 %v289
  %v1625 = vunpack.c.l.b16 %v290
  %v1626 = vunpack.c.h.b16 %v290
  %v1627 = vunpack.c.l.b16 %v291
  %v1628 = vunpack.c.h.b16 %v291
  %v1629 = vunpack.c.l.b16 %v292
  %v1630 = vunpack.c.h.b16 %v292
  %v1631 = vunpack.c.l.b16 %v293
  %v1632 = vunpack.c.h.b16 %v293
  %v1633 = vunpack.c.l.b16 %v294
  %v1634 = vunpack.c.h.b16 %v294
  %v1635 = vunpack.c.l.b16 %v295
  %v1636 = vunpack.c.h.b16 %v295
  %v1637 = vunpack.c.l.b16 %v296
  %v1638 = vunpack.c.h.b16 %v296
  %v1639 = vunpack.c.l.b16 %v297
  %v1640 = vunpack.c.h.b16 %v297
  %v1641 = vunpack.c.l.b16 %v298
  %v1642 = vunpack.c.h.b16 %v298
  %v1643 = vunpack.c.l.b16 %v299
  %v1644 = vunpack.c.h.b16 %v299
  %v1645 = vunpack.c.l.b16 %v300
  %v1646 = vunpack.c.h.b16 %v300
  %v1647 = vunpack.c.l.b16 %v301
  %v1648 = vunpack.c.h.b16 %v301
  %v1649 = vunpack.c.l.b16 %v302
  %v1650 = vunpack.c.h.b16 %v302
  %v1651 = vunpack.c.l.b16 %v303
  %v1652 = vunpack.c.h.b16 %v303
  %v1653 = vunpack.c.l.b16 %v304
  %v1654 = vunpack.c.h.b16 %v304
  %v1655 = vunpack.c.l.b16 %v305
  %v1656 = vunpack.c.h.b16 %v305
  %v1657 = vunpack.c.l.b16 %v306
  %v1658 = vunpack.c.h.b16 %v306
  %v1659 = vunpack.c.l.b16 %v307
  %v1660 = vunpack.c.h.b16 %v307
  %v1661 = vunpack.c.l.b16 %v308
  %v1662 = vunpack.c.h.b16 %v308
  %v1663 = vunpack.c.l.b16 %v309
  %v1664 = vunpack.c.h.b16 %v309
  %v1665 = vunpack.c.l.b16 %v310
  %v1666 = vunpack.c.h.b16 %v310
  %v1667 = vunpack.c.l.b16 %v311
  %v1668 = vunpack.c.h.b16 %v311
  %v1669 = vunpack.c.l.b16 %v312
  %v1670 = vunpack.c.h.b16 %v312
  %v1671 = vunpack.c.l.b16 %v313
  %v1672 = vunpack.c.h.b16 %v313
  %v1673 = vunpack.c.l.b16 %v314
  %v1674 = vunpack.c.h.b16 %v314
  %v1675 = vunpack.c.l.b16 %v315
  %v1676 = vunpack.c.h.b16 %v315
  %v1677 = vunpack.c.l.b16 %v316
  %v1678 = vunpack.c.h.b16 %v316
  %v1679 = vunpack.c.l.b16 %v317
  %v1680 = vunpack.c.h.b16 %v317
  %v1681 = vunpack.c.l.b16 %v318
  %v1682 = vunpack.c.h.b16 %v318
  %v1683 = vunpack.c.l.b16 %v319
  %v1684 = vunpack.c.h.b16 %v319
  %v1685 = vunpack.c.l.b16 %v320
  %v1686 = vunpack.c.h.b16 %v320
  %v1687 = vunpack.c.l.b16 %v321
  %v1688 = vunpack.c.h.b16 %v321
  %v1689 = vunpack.c.l.b16 %v322
  %v1690 = vunpack.c.h.b16 %v322
  %v1691 = vunpack.c.l.b16 %v323
  %v1692 = vunpack.c.h.b16 %v323
  %v1693 = vunpack.c.l.b16 %v324
  %v1694 = vunpack.c.h.b16 %v324
  %v1695 = vunpack.c.l.b16 %v325
  %v1696 = vunpack.c.h.b16 %v325
  %v1697 = vunpack.c.l.b16 %v326
  %v1698 = vunpack.c.h.b16 %v326
  %v1699 = vunpack.c.l.b16 %v327
  %v1700 = vunpack.c.h.b16 %v327
  %v1701 = vunpack.c.l.b16 %v328
  %v1702 = vunpack.c.h.b16 %v328
  %v1703 = vunpack.c.l.b16 %v329
  %v1704 = vunpack.c.h.b16 %v329
  %v1705 = vunpack.c.l.b16 %v330
  %v1706 = vunpack.c.h.b16 %v330
  %v1707 = vunpack.c.l.b16 %v331
  %v1708 = vunpack.c.h.b16 %v331
  %v1709 = vunpack.c.l.b16 %v332
  %v1710 = vunpack.c.h.b16 %v332
  %v1711 = vunpack.c.l.b16 %v333
  %v1712 = vunpack.c.h.b16 %v333
  %v1713 = vunpack.c.l.b16 %v334
  %v1714 = vunpack.c.h.b16 %v334
  %v1715 = vunpack.c.l.b16 %v335
  %v1716 = vunpack.c.h.b16 %v335
  %v1717 = vunpack.c.l.b16 %v336
  %v1718 = vunpack.c.h.b16 %v336
  %v1719 = vunpack.c.l.b16 %v337
  %v1720 = vunpack.c.h.b16 %v337
  %v1721 = vunpack.c.l.b16 %v338
  %v1722 = vunpack.c.h.b16 %v338
  %v1723 = vunpack.c.l.b16 %v339
  %v1724 = vunpack.c.h.b16 %v339
  %v1725 = vunpack.c.l.b16 %v340
  %v1726 = vunpack.c.h.b16 %v340
  %v1727 = vunpack.c.l.b16 %v341
  %v1728 = vunpack.c.h.b16 %v341
  %v1729 = vunpack.c.l.b16 %v342
  %v1730 = vunpack.c.h.b16 %v342
  %v1731 = vunpack.c.l.b16 %v343
  %v1732 = vunpack.c.h.b16 %v343
  %v1733 = vunpack.c.l.b16 %v344
  %v1734 = vunpack.c.h.b16 %v344
  %v1735 = vunpack.c.l.b16 %v345
  %v1736 = vunpack.c.h.b16 %v345
  %v1737 = vunpack.c.l.b16 %v346
  %v1738 = vunpack.c.h.b16 %v346
  %v1739 = vunpack.c.l.b16 %v347
  %v1740 = vunpack.c.h.b16 %v347
  %v1741 = vunpack.c.l.b16 %v348
  %v1742 = vunpack.c.h.b16 %v348
  %v1743 = vunpack.c.l.b16 %v349
  %v1744 = vunpack.c.h.b16 %v349
  %v1745 = vunpack.c.l.b16 %v350
  %v1746 = vunpack.c.h.b16 %v350
  %v1747 = vunpack.c.l.b16 %v351
  %v1748 = vunpack.c.h.b16 %v351
  %v1749 = vunpack.c.l.b16 %v352
  %v1750 = vunpack.c.h.b16 %v352
  %v1751 = vunpack.c.l.b16 %v353
  %v1752 = vunpack.c.h.b16 %v353
  %v1753 = vunpack.c.l.b16 %v354
  %v1754 = vunpack.c.h.b16 %v354
  %v1755 = vunpack.c.l.b16 %v355
  %v1756 = vunpack.c.h.b16 %v355
  %v1757 = vunpack.c.l.b16 %v356
  %v1758 = vunpack.c.h.b16 %v356
  %v1759 = vunpack.c.l.b16 %v357
  %v1760 = vunpack.c.h.b16 %v357
  %v1761 = vunpack.c.l.b16 %v358
  %v1762 = vunpack.c.h.b16 %v358
  %v1763 = vunpack.c.l.b16 %v359
  %v1764 = vunpack.c.h.b16 %v359
  %v1765 = vunpack.c.l.b16 %v360
  %v1766 = vunpack.c.h.b16 %v360
  %v1767 = vunpack.c.l.b16 %v361
  %v1768 = vunpack.c.h.b16 %v361
  %v1769 = vunpack.c.l.b16 %v362
  %v1770 = vunpack.c.h.b16 %v362
  %v1771 = vunpack.c.l.b16 %v363
  %v1772 = vunpack.c.h.b16 %v363
  %v1773 = vunpack.c.l.b16 %v364
  %v1774 = vunpack.c.h.b16 %v364
  %v1775 = vunpack.c.l.b16 %v365
  %v1776 = vunpack.c.h.b16 %v365
  %v1777 = vunpack.c.l.b16 %v366
  %v1778 = vunpack.c.h.b16 %v366
  %v1779 = vunpack.c.l.b16 %v367
  %v1780 = vunpack.c.h.b16 %v367
  %v1781 = vunpack.c.l.b16 %v368
  %v1782 = vunpack.c.h.b16 %v368
  %v1783 = vunpack.c.l.b16 %v369
  %v1784 = vunpack.c.h.b16 %v369
  %v1785 = vunpack.c.l.b16 %v370
  %v1786 = vunpack.c.h.b16 %v370
  %v1787 = vunpack.c.l.b16 %v371
  %v1788 = vunpack.c.h.b16 %v371
  %v1789 = vunpack.c.l.b16 %v372
  %v1790 = vunpack.c.h.b16 %v372
  %v1791 = vunpack.c.l.b16 %v373
  %v1792 = vunpack.c.h.b16 %v373
  %v1793 = vunpack.c.l.b16 %v374
  %v1794 = vunpack.c.h.b16 %v374
  %v1795 = vunpack.c.l.b16 %v375
  %v1796 = vunpack.c.h.b16 %v375
  %v1797 = vunpack.c.l.b16 %v376
  %v1798 = vunpack.c.h.b16 %v376
  %v1799 = vunpack.c.l.b16 %v377
  %v1800 = vunpack.c.h.b16 %v377
  %v1801 = vunpack.c.l.b16 %v378
  %v1802 = vunpack.c.h.b16 %v378
  %v1803 = vunpack.c.l.b16 %v379
  %v1804 = vunpack.c.h.b16 %v379
  %v1805 = vunpack.c.l.b16 %v380
  %v1806 = vunpack.c.h.b16 %v380
  %v1807 = vunpack.c.l.b16 %v381
  %v1808 = vunpack.c.h.b16 %v381
  %v1809 = vunpack.c.l.b16 %v382
  %v1810 = vunpack.c.h.b16 %v382
  %v1811 = vunpack.c.l.b16 %v383
  %v1812 = vunpack.c.h.b16 %v383
  %v1813 = vunpack.c.l.b16 %v384
  %v1814 = vunpack.c.h.b16 %v384
  %v1815 = vunpack.c.l.b16 %v385
  %v1816 = vunpack.c.h.b16 %v385
  %v1817 = vunpack.c.l.b16 %v386
  %v1818 = vunpack.c.h.b16 %v386
  %v1819 = vunpack.c.l.b16 %v387
  %v1820 = vunpack.c.h.b16 %v387
  %v1821 = vunpack.c.l.b16 %v388
  %v1822 = vunpack.c.h.b16 %v388
  %v1823 = vunpack.c.l.b16 %v389
  %v1824 = vunpack.c.h.b16 %v389
  %v1825 = vunpack.c.l.b16 %v390
  %v1826 = vunpack.c.h.b16 %v390
  %v1827 = vunpack.c.l.b16 %v391
  %v1828 = vunpack.c.h.b16 %v391
  %v1829 = vunpack.c.l.b16 %v392
  %v1830 = vunpack.c.h.b16 %v392
  %v1831 = vunpack.c.l.b16 %v393
  %v1832 = vunpack.c.h.b16 %v393
  %v1833 = vunpack.c.l.b16 %v394
  %v1834 = vunpack.c.h.b16 %v394
  %v1835 = vunpack.c.l.b16 %v395
  %v1836 = vunpack.c.h.b16 %v395
  %v1837 = vunpack.c.l.b16 %v396
  %v1838 = vunpack.c.h.b16 %v396
  %v1839 = vunpack.c.l.b16 %v397
  %v1840 = vunpack.c.h.b16 %v397
  %v1841 = vunpack.c.l.b16 %v398
  %v1842 = vunpack.c.h.b16 %v398
  %v1843 = vunpack.c.l.b16 %v399
  %v1844 = vunpack.c.h.b16 %v399
  %v1845 = vunpack.c.l.b16 %v400
  %v1846 = vunpack.c.h.b16 %v400
  %v1847 = vunpack.c.l.b16 %v401
  %v1848 = vunpack.c.h.b16 %v401
  %v1849 = vunpack.c.l.b16 %v402
  %v1850 = vunpack.c.h.b16 %v402
  %v1851 = vunpack.c.l.b16 %v403
  %v1852 = vunpack.c.h.b16 %v403
  %v1853 = vunpack.c.l.b16 %v404
  %v1854 = vunpack.c.h.b16 %v404
  %v1855 = vunpack.c.l.b16 %v405
  %v1856 = vunpack.c.h.b16 %v405
  %v1857 = vunpack.c.l.b16 %v406
  %v1858 = vunpack.c.h.b16 %v406
  %v1859 = vunpack.c.l.b16 %v407
  %v1860 = vunpack.c.h.b16 %v407
  %v1861 = vunpack.c.l.b16 %v408
  %v1862 = vunpack.c.h.b16 %v408
  %v1863 = vunpack.c.l.b16 %v409
  %v1864 = vunpack.c.h.b16 %v409
  %v1865 = vunpack.c.l.b16 %v410
  %v1866 = vunpack.c.h.b16 %v410
  %v1867 = vunpack.c.l.b16 %v411
  %v1868 = vunpack.c.h.b16 %v411
  %v1869 = vunpack.c.l.b16 %v412
  %v1870 = vunpack.c.h.b16 %v412
  %v1871 = vunpack.c.l.b16 %v413
  %v1872 = vunpack.c.h.b16 %v413
  %v1873 = vunpack.c.l.b16 %v414
  %v1874 = vunpack.c.h.b16 %v414
  %v1875 = vunpack.c.l.b16 %v415
  %v1876 = vunpack.c.h.b16 %v415
  %v1877 = vunpack.c.l.b16 %v416
  %v1878 = vunpack.c.h.b16 %v416
  %v1879 = vunpack.c.l.b16 %v417
  %v1880 = vunpack.c.h.b16 %v417
  %v1881 = vunpack.c.l.b16 %v418
  %v1882 = vunpack.c.h.b16 %v418
  %v1883 = vunpack.c.l.b16 %v419
  %v1884 = vunpack.c.h.b16 %v419
  %v1885 = vunpack.c.l.b16 %v420
  %v1886 = vunpack.c.h.b16 %v420
  %v1887 = vunpack.c.l.b16 %v421
  %v1888 = vunpack.c.h.b16 %v421
  %v1889 = vunpack.c.l.b16 %v422
  %v1890 = vunpack.c.h.b16 %v422
  %v1891 = vunpack.c.l.b16 %v423
  %v1892 = vunpack.c.h.b16 %v423
  %v1893 = vunpack.c.l.b16 %v424
  %v1894 = vunpack.c.h.b16 %v424
  %v1895 = vunpack.c.l.b16 %v425
  %v1896 = vunpack.c.h.b16 %v425
  %v1897 = vunpack.c.l.b16 %v426
  %v1898 = vunpack.c.h.b16 %v426
  %v1899 = vunpack.c.l.b16 %v427
  %v1900 = vunpack.c.h.b16 %v427
  %v1901 = vunpack.c.l.b16 %v428
  %v1902 = vunpack.c.h.b16 %v428
  %v1903 = vunpack.c.l.b16 %v429
  %v1904 = vunpack.c.h.b16 %v429
  %v1905 = vunpack.c.l.b16 %v430
  %v1906 = vunpack.c.h.b16 %v430
  %v1907 = vunpack.c.l.b16 %v431
  %v1908 = vunpack.c.h.b16 %v431
  %v1909 = vunpack.c.l.b16 %v432
  %v1910 = vunpack.c.h.b16 %v432
  %v1911 = vunpack.c.l.b16 %v433
  %v1912 = vunpack.c.h.b16 %v433
  %v1913 = vunpack.c.l.b16 %v434
  %v1914 = vunpack.c.h.b16 %v434
  %v1915 = vunpack.c.l.b16 %v435
  %v1916 = vunpack.c.h.b16 %v435
  %v1917 = vunpack.c.l.b16 %v436
  %v1918 = vunpack.c.h.b16 %v436
  %v1919 = vunpack.c.l.b16 %v437
  %v1920 = vunpack.c.h.b16 %v437
  %v1921 = vunpack.c.l.b16 %v438
  %v1922 = vunpack.c.h.b16 %v438
  %v1923 = vunpack.c.l.b16 %v439
  %v1924 = vunpack.c.h.b16 %v439
  %v1925 = vunpack.c.l.b16 %v440
  %v1926 = vunpack.c.h.b16 %v440
  %v1927 = vunpack.c.l.b16 %v441
  %v1928 = vunpack.c.h.b16 %v441
  %v1929 = vunpack.c.l.b16 %v442
  %v1930 = vunpack.c.h.b16 %v442
  %v1931 = vunpack.c.l.b16 %v443
  %v1932 = vunpack.c.h.b16 %v443
  %v1933 = vunpack.c.l.b16 %v444
  %v1934 = vunpack.c.h.b16 %v444
  %v1935 = vunpack.c.l.b16 %v445
  %v1936 = vunpack.c.h.b16 %v445
  %v1937 = vunpack.c.l.b16 %v446
  %v1938 = vunpack.c.h.b16 %v446
  %v1939 = vunpack.c.l.b16 %v447
  %v1940 = vunpack.c.h.b16 %v447
  %v1941 = vunpack.c.l.b16 %v448
  %v1942 = vunpack.c.h.b16 %v448
  %v1943 = vunpack.c.l.b16 %v449
  %v1944 = vunpack.c.h.b16 %v449
  %v1945 = vunpack.c.l.b16 %v450
  %v1946 = vunpack.c.h.b16 %v450
  %v1947 = vunpack.c.l.b16 %v451
  %v1948 = vunpack.c.h.b16 %v451
  %v1949 = vunpack.c.l.b16 %v452
  %v1950 = vunpack.c.h.b16 %v452
  %v1951 = vunpack.c.l.b16 %v453
  %v1952 = vunpack.c.h.b16 %v453
  %v1953 = vunpack.c.l.b16 %v454
  %v1954 = vunpack.c.h.b16 %v454
  %v1955 = vunpack.c.l.b16 %v455
  %v1956 = vunpack.c.h.b16 %v455
  %v1957 = vunpack.c.l.b16 %v456
  %v1958 = vunpack.c.h.b16 %v456
  %v1959 = vunpack.c.l.b16 %v457
  %v1960 = vunpack.c.h.b16 %v457
  %v1961 = vunpack.c.l.b16 %v458
  %v1962 = vunpack.c.h.b16 %v458
  %v1963 = vunpack.c.l.b16 %v459
  %v1964 = vunpack.c.h.b16 %v459
  %v1965 = vunpack.c.l.b16 %v460
  %v1966 = vunpack.c.h.b16 %v460
  %v1967 = vunpack.c.l.b16 %v461
  %v1968 = vunpack.c.h.b16 %v461
  %v1969 = vunpack.c.l.b16 %v462
  %v1970 = vunpack.c.h.b16 %v462
  %v1971 = vunpack.c.l.b16 %v463
  %v1972 = vunpack.c.h.b16 %v463
  %v1973 = vunpack.c.l.b16 %v464
  %v1974 = vunpack.c.h.b16 %v464
  %v1975 = vunpack.c.l.b16 %v465
  %v1976 = vunpack.c.h.b16 %v465
  %v1977 = vunpack.c.l.b16 %v466
  %v1978 = vunpack.c.h.b16 %v466
  %v1979 = vunpack.c.l.b16 %v467
  %v1980 = vunpack.c.h.b16 %v467
  %v1981 = vunpack.c.l.b16 %v468
  %v1982 = vunpack.c.h.b16 %v468
  %v1983 = vunpack.c.l.b16 %v469
  %v1984 = vunpack.c.h.b16 %v469
  %v1985 = vunpack.c.l.b16 %v470
  %v1986 = vunpack.c.h.b16 %v470
  %v1987 = vunpack.c.l.b16 %v471
  %v1988 = vunpack.c.h.b16 %v471
  %v1989 = vunpack.c.l.b16 %v472
  %v1990 = vunpack.c.h.b16 %v472
  %v1991 = vunpack.c.l.b16 %v473
  %v1992 = vunpack.c.h.b16 %v473
  %v1993 = vunpack.c.l.b16 %v474
  %v1994 = vunpack.c.h.b16 %v474
  %v1995 = vunpack.c.l.b16 %v475
  %v1996 = vunpack.c.h.b16 %v475
  %v1997 = vunpack.c.l.b16 %v476
  %v1998 = vunpack.c.h.b16 %v476
  %v1999 = vunpack.c.l.b16 %v477
  %v2000 = vunpack.c.h.b16 %v477
  %v2001 = vunpack.c.l.b16 %v478
  %v2002 = vunpack.c.h.b16 %v478
  %v2003 = vunpack.c.l.b16 %v479
  %v2004 = vunpack.c.h.b16 %v479
  %v2005 = vunpack.c.l.b16 %v480
  %v2006 = vunpack.c.h.b16 %v480
  %v2007 = vunpack.c.l.b16 %v481
  %v2008 = vunpack.c.h.b16 %v481
  %v2009 = vunpack.c.l.b16 %v482
  %v2010 = vunpack.c.h.b16 %v482
  %v2011 = vunpack.c.l.b16 %v483
  %v2012 = vunpack.c.h.b16 %v483
  %v2013 = vunpack.c.l.b16 %v484
  %v2014 = vunpack.c.h.b16 %v484
  %v2015 = vunpack.c.l.b16 %v485
  %v2016 = vunpack.c.h.b16 %v485
  %v2017 = vunpack.c.l.b16 %v486
  %v2018 = vunpack.c.h.b16 %v486
  %v2019 = vunpack.c.l.b16 %v487
  %v2020 = vunpack.c.h.b16 %v487
  %v2021 = vunpack.c.l.b16 %v488
  %v2022 = vunpack.c.h.b16 %v488
  %v2023 = vunpack.c.l.b16 %v489
  %v2024 = vunpack.c.h.b16 %v489
  %v2025 = vunpack.c.l.b16 %v490
  %v2026 = vunpack.c.h.b16 %v490
  %v2027 = vunpack.c.l.b16 %v491
  %v2028 = vunpack.c.h.b16 %v491
  %v2029 = vunpack.c.l.b16 %v492
  %v2030 = vunpack.c.h.b16 %v492
  %v2031 = vunpack.c.l.b16 %v493
  %v2032 = vunpack.c.h.b16 %v493
  %v2033 = vunpack.c.l.b16 %v494
  %v2034 = vunpack.c.h.b16 %v494
  %v2035 = vunpack.c.l.b16 %v495
  %v2036 = vunpack.c.h.b16 %v495
  %v2037 = vunpack.c.l.b16 %v496
  %v2038 = vunpack.c.h.b16 %v496
  %v2039 = vunpack.c.l.b16 %v497
  %v2040 = vunpack.c.h.b16 %v497
  %v2041 = vunpack.c.l.b16 %v498
  %v2042 = vunpack.c.h.b16 %v498
  %v2043 = vunpack.c.l.b16 %v499
  %v2044 = vunpack.c.h.b16 %v499
  %v2045 = vunpack.c.l.b16 %v500
  %v2046 = vunpack.c.h.b16 %v500
  %v2047 = vunpack.c.l.b16 %v501
  %v2048 = vunpack.c.h.b16 %v501
  %v2049 = vunpack.c.l.b16 %v502
  %v2050 = vunpack.c.h.b16 %v502
  %v2051 = vunpack.c.l.b16 %v503
  %v2052 = vunpack.c.h.b16 %v503
  %v2053 = vunpack.c.l.b16 %v504
  %v2054 = vunpack.c.h.b16 %v504
  %v2055 = vunpack.c.l.b16 %v505
  %v2056 = vunpack.c.h.b16 %v505
  %v2057 = vunpack.c.l.b16 %v506
  %v2058 = vunpack.c.h.b16 %v506
  %v2059 = vunpack.c.l.b16 %v507
  %v2060 = vunpack.c.h.b16 %v507
  %v2061 = vunpack.c.l.b16 %v508
  %v2062 = vunpack.c.h.b16 %v508
  %v2063 = vunpack.c.l.b16 %v509
  %v2064 = vunpack.c.h.b16 %v509
  %v2065 = vunpack.c.l.b16 %v510
  %v2066 = vunpack.c.h.b16 %v510
  %v2067 = vunpack.c.l.b16 %v511
  %v2068 = vunpack.c.h.b16 %v511
  %v2069 = vunpack.c.l.b16 %v512
  %v2070 = vunpack.c.h.b16 %v512
  %v2071 = vunpack.c.l.b16 %v513
  %v2072 = vunpack.c.h.b16 %v513
  %v2073 = vunpack.c.l.b16 %v514
  %v2074 = vunpack.c.h.b16 %v514
  %v2075 = vunpack.c.l.b16 %v515
  %v2076 = vunpack.c.h.b16 %v515
  %v2077 = vunpack.c.l.b16 %v516
  %v2078 = vunpack.c.h.b16 %v516
  %v2079 = vunpack.c.l.b16 %v517
  %v2080 = vunpack.c.h.b16 %v517
  %v2081 = vunpack.c.l.b16 %v518
  %v2082 = vunpack.c.h.b16 %v518
  %v2083 = vunpack.c.l.b16 %v519
  %v2084 = vunpack.c.h.b16 %v519
  %v2085 = vunpack.c.l.b16 %v520
  %v2086 = vunpack.c.h.b16 %v520
  %v2087 = vunpack.c.l.b16 %v521
  %v2088 = vunpack.c.h.b16 %v521
  %v2089 = vunpack.c.l.b16 %v522
  %v2090 = vunpack.c.h.b16 %v522
  %v2091 = vunpack.c.l.b16 %v523
  %v2092 = vunpack.c.h.b16 %v523
  %v2093 = vunpack.c.l.b16 %v524
  %v2094 = vunpack.c.h.b16 %v524
  %v2095 = vunpack.c.l.b16 %v525
  %v2096 = vunpack.c.h.b16 %v525
  %v2097 = vunpack.c.l.b16 %v526
  %v2098 = vunpack.c.h.b16 %v526
  %v2099 = vunpack.c.l.b16 %v527
  %v2100 = vunpack.c.h.b16 %v527
  %v2101 = vunpack.c.l.b16 %v528
  %v2102 = vunpack.c.h.b16 %v528
  %v2103 = vunpack.c.l.b16 %v529
  %v2104 = vunpack.c.h.b16 %v529
  %v2105 = vunpack.c.l.b16 %v530
  %v2106 = vunpack.c.h.b16 %v530
  %v2107 = vunpack.c.l.b16 %v531
  %v2108 = vunpack.c.h.b16 %v531
  %v2109 = vunpack.c.l.b16 %v532
  %v2110 = vunpack.c.h.b16 %v532
  %v2111 = vunpack.c.l.b16 %v533
  %v2112 = vunpack.c.h.b16 %v533
  %v2113 = vunpack.c.l.b16 %v534
  %v2114 = vunpack.c.h.b16 %v534
  %v2115 = vunpack.c.l.b16 %v535
  %v2116 = vunpack.c.h.b16 %v535
  %v2117 = vunpack.c.l.b16 %v536
  %v2118 = vunpack.c.h.b16 %v536
  %v2119 = vunpack.c.l.b16 %v537
  %v2120 = vunpack.c.h.b16 %v537
  %v2121 = vunpack.c.l.b16 %v538
  %v2122 = vunpack.c.h.b16 %v538
  %v2123 = vunpack.c.l.b16 %v539
  %v2124 = vunpack.c.h.b16 %v539
  %v2125 = vunpack.c.l.b16 %v540
  %v2126 = vunpack.c.h.b16 %v540
  %v2127 = vunpack.c.l.b16 %v541
  %v2128 = vunpack.c.h.b16 %v541
  %v2129 = vunpack.c.l.b16 %v542
  %v2130 = vunpack.c.h.b16 %v542
  %v2131 = vunpack.c.l.b16 %v543
  %v2132 = vunpack.c.h.b16 %v543
  %v2133 = vunpack.c.l.b16 %v544
  %v2134 = vunpack.c.h.b16 %v544
  %v2135 = vunpack.c.l.b16 %v545
  %v2136 = vunpack.c.h.b16 %v545
  %v2137 = vunpack.c.l.b16 %v546
  %v2138 = vunpack.c.h.b16 %v546
  %v2139 = vunpack.c.l.b16 %v547
  %v2140 = vunpack.c.h.b16 %v547
  %v2141 = vunpack.c.l.b16 %v548
  %v2142 = vunpack.c.h.b16 %v548
  %v2143 = vpack.c.b16 %v1127, %v1119
  %v2144 = vpack.c.b16 %v1128, %v1120
  %v2145 = vpack.c.b16 %v1129, %v1121
  %v2146 = vpack.c.b16 %v1130, %v1122
  %v2147 = vpack.c.b16 %v1131, %v1123
  %v2148 = vpack.c.b16 %v1132, %v1124
  %v2149 = vpack.c.b16 %v1133, %v1125
  %v2150 = vpack.c.b16 %v1134, %v1126
  %v2151 = vpack.c.b16 %v1143, %v1135
  %v2152 = vpack.c.b16 %v1144, %v1136
  %v2153 = vpack.c.b16 %v1145, %v1137
  %v2154 = vpack.c.b16 %v1146, %v1138
  %v2155 = vpack.c.b16 %v1147, %v1139
  %v2156 = vpack.c.b16 %v1148, %v1140
  %v2157 = vpack.c.b16 %v1149, %v1141
  %v2158 = vpack.c.b16 %v1150, %v1142
  %v2159 = vpack.c.b16 %v1159, %v1151
  %v2160 = vpack.c.b16 %v1160, %v1152
  %v2161 = vpack.c.b16 %v1161, %v1153
  %v2162 = vpack.c.b16 %v1162, %v1154
  %v2163 = vpack.c.b16 %v1163, %v1155
  %v2164 = vpack.c.b16 %v1164, %v1156
  %v2165 = vpack.c.b16 %v1165, %v1157
  %v2166 = vpack.c.b16 %v1166, %v1158
  %v2167 = vpack.c.b16 %v1175, %v1167
  %v2168 = vpack.c.b16 %v1176, %v1168
  %v2169 = vpack.c.b16 %v1177, %v1169
  %v2170 = vpack.c.b16 %v1178, %v1170
  %v2171 = vpack.c.b16 %v1179, %v1171
  %v2172 = vpack.c.b16 %v1180, %v1172
  %v2173 = vpack.c.b16 %v1181, %v1173
  %v2174 = vpack.c.b16 %v1182, %v1174
  %v2175 = vpack.c.b16 %v1191, %v1183
  %v2176 = vpack.c.b16 %v1192, %v1184
  %v2177 = vpack.c.b16 %v1193, %v1185
  %v2178 = vpack.c.b16 %v1194, %v1186
  %v2179 = vpack.c.b16 %v1195, %v1187
  %v2180 = vpack.c.b16 %v1196, %v1188
  %v2181 = vpack.c.b16 %v1197, %v1189
  %v2182 = vpack.c.b16 %v1198, %v1190
  %v2183 = vpack.c.b16 %v1207, %v1199
  %v2184 = vpack.c.b16 %v1208, %v1200
  %v2185 = vpack.c.b16 %v1209, %v1201
  %v2186 = vpack.c.b16 %v1210, %v1202
  %v2187 = vpack.c.b16 %v1211, %v1203
  %v2188 = vpack.c.b16 %v1212, %v1204
  %v2189 = vpack.c.b16 %v1213, %v1205
  %v2190 = vpack.c.b16 %v1214, %v1206
  %v2191 = vpack.c.b16 %v1223, %v1215
  %v2192 = vpack.c.b16 %v1224, %v1216
  %v2193 = vpack.c.b16 %v1225, %v1217
  %v2194 = vpack.c.b16 %v1226, %v1218
  %v2195 = vpack.c.b16 %v1227, %v1219
  %v2196 = vpack.c.b16 %v1228, %v1220
  %v2197 = vpack.c.b16 %v1229, %v1221
  %v2198 = vpack.c.b16 %v1230, %v1222
  %v2199 = vpack.c.b16 %v1239, %v1231
  %v2200 = vpack.c.b16 %v1240, %v1232
  %v2201 = vpack.c.b16 %v1241, %v1233
  %v2202 = vpack.c.b16 %v1242, %v1234
  %v2203 = vpack.c.b16 %v1243, %v1235
  %v2204 = vpack.c.b16 %v1244, %v1236
  %v2205 = vpack.c.b16 %v1245, %v1237
  %v2206 = vpack.c.b16 %v1246, %v1238
  %v2207 = vpack.c.b16 %v1255, %v1247
  %v2208 = vpack.c.b16 %v1256, %v1248
  %v2209 = vpack.c.b16 %v1257, %v1249
  %v2210 = vpack.c.b16 %v1258, %v1250
  %v2211 = vpack.c.b16 %v1259, %v1251
  %v2212 = vpack.c.b16 %v1260, %v1252
  %v2213 = vpack.c.b16 %v1261, %v1253
  %v2214 = vpack.c.b16 %v1262, %v1254
  %v2215 = vpack.c.b16 %v1271, %v1263
  %v2216 = vpack.c.b16 %v1272, %v1264
  %v2217 = vpack.c.b16 %v1273, %v1265
  %v2218 = vpack.c.b16 %v1274, %v1266
  %v2219 = vpack.c.b16 %v1275, %v1267
  %v2220 = vpack.c.b16 %v1276, %v1268
  %v2221 = vpack.c.b16 %v1277, %v1269
  %v2222 = vpack.c.b16 %v1278, %v1270
  %v2223 = vpack.c.b16 %v1287, %v1279
  %v2224 = vpack.c.b16 %v1288, %v1280
  %v2225 = vpack.c.b16 %v1289, %v1281
  %v2226 = vpack.c.b16 %v1290, %v1282
  %v2227 = vpack.c.b16 %v1291, %v1283
  %v2228 = vpack.c.b16 %v1292, %v1284
  %v2229 = vpack.c.b16 %v1293, %v1285
  %v2230 = vpack.c.b16 %v1294, %v1286
  %v2231 = vpack.c.b16 %v1303, %v1295
  %v2232 = vpack.c.b16 %v1304, %v1296
  %v2233 = vpack.c.b16 %v1305, %v1297
  %v2234 = vpack.c.b16 %v1306, %v1298
  %v2235 = vpack.c.b16 %v1307, %v1299
  %v2236 = vpack.c.b16 %v1308, %v1300
  %v2237 = vpack.c.b16 %v1309, %v1301
  %v2238 = vpack.c.b16 %v1310, %v1302
  %v2239 = vpack.c.b16 %v1319, %v1311
  %v2240 = vpack.c.b16 %v1320, %v1312
  %v2241 = vpack.c.b16 %v1321, %v1313
  %v2242 = vpack.c.b16 %v1322, %v1314
  %v2243 = vpack.c.b16 %v1323, %v1315
  %v2244 = vpack.c.b16 %v1324, %v1316
  %v2245 = vpack.c.b16 %v1325, %v1317
  %v2246 = vpack.c.b16 %v1326, %v1318
  %v2247 = vpack.c.b16 %v1335, %v1327
  %v2248 = vpack.c.b16 %v1336, %v1328
  %v2249 = vpack.c.b16 %v1337, %v1329
  %v2250 = vpack.c.b16 %v1338, %v1330
  %v2251 = vpack.c.b16 %v1339, %v1331
  %v2252 = vpack.c.b16 %v1340, %v1332
  %v2253 = vpack.c.b16 %v1341, %v1333
  %v2254 = vpack.c.b16 %v1342, %v1334
  %v2255 = vpack.c.b16 %v1351, %v1343
  %v2256 = vpack.c.b16 %v1352, %v1344
  %v2257 = vpack.c.b16 %v1353, %v1345
  %v2258 = vpack.c.b16 %v1354, %v1346
  %v2259 = vpack.c.b16 %v1355, %v1347
  %v2260 = vpack.c.b16 %v1356, %v1348
  %v2261 = vpack.c.b16 %v1357, %v1349
  %v2262 = vpack.c.b16 %v1358, %v1350
  %v2263 = vpack.c.b16 %v1367, %v1359
  %v2264 = vpack.c.b16 %v1368, %v1360
  %v2265 = vpack.c.b16 %v1369, %v1361
  %v2266 = vpack.c.b16 %v1370, %v1362
  %v2267 = vpack.c.b16 %v1371, %v1363
  %v2268 = vpack.c.b16 %v1372, %v1364
  %v2269 = vpack.c.b16 %v1373, %v1365
  %v2270 = vpack.c.b16 %v1374, %v1366
  %v2271 = vpack.c.b16 %v1383, %v1375
  %v2272 = vpack.c.b16 %v1384, %v1376
  %v2273 = vpack.c.b16 %v1385, %v1377
  %v2274 = vpack.c.b16 %v1386, %v1378
  %v2275 = vpack.c.b16 %v1387, %v1379
  %v2276 = vpack.c.b16 %v1388, %v1380
  %v2277 = vpack.c.b16 %v1389, %v1381
  %v2278 = vpack.c.b16 %v1390, %v1382
  %v2279 = vpack.c.b16 %v1399, %v1391
  %v2280 = vpack.c.b16 %v1400, %v1392
  %v2281 = vpack.c.b16 %v1401, %v1393
  %v2282 = vpack.c.b16 %v1402, %v1394
  %v2283 = vpack.c.b16 %v1403, %v1395
  %v2284 = vpack.c.b16 %v1404, %v1396
  %v2285 = vpack.c.b16 %v1405, %v1397
  %v2286 = vpack.c.b16 %v1406, %v1398
  %v2287 = vpack.c.b16 %v1415, %v1407
  %v2288 = vpack.c.b16 %v1416, %v1408
  %v2289 = vpack.c.b16 %v1417, %v1409
  %v2290 = vpack.c.b16 %v1418, %v1410
  %v2291 = vpack.c.b16 %v1419, %v1411
  %v2292 = vpack.c.b16 %v1420, %v1412
  %v2293 = vpack.c.b16 %v1421, %v1413
  %v2294 = vpack.c.b16 %v1422, %v1414
  %v2295 = vpack.c.b16 %v1431, %v1423
  %v2296 = vpack.c.b16 %v1432, %v1424
  %v2297 = vpack.c.b16 %v1433, %v1425
  %v2298 = vpack.c.b16 %v1434, %v1426
  %v2299 = vpack.c.b16 %v1435, %v1427
  %v2300 = vpack.c.b16 %v1436, %v1428
  %v2301 = vpack.c.b16 %v1437, %v1429
  %v2302 = vpack.c.b16 %v1438, %v1430
  %v2303 = vpack.c.b16 %v1447, %v1439
  %v2304 = vpack.c.b16 %v1448, %v1440
  %v2305 = vpack.c.b16 %v1449, %v1441
  %v2306 = vpack.c.b16 %v1450, %v1442
  %v2307 = vpack.c.b16 %v1451, %v1443
  %v2308 = vpack.c.b16 %v1452, %v1444
  %v2309 = vpack.c.b16 %v1453, %v1445
  %v2310 = vpack.c.b16 %v1454, %v1446
  %v2311 = vpack.c.b16 %v1463, %v1455
  %v2312 = vpack.c.b16 %v1464, %v1456
  %v2313 = vpack.c.b16 %v1465, %v1457
  %v2314 = vpack.c.b16 %v1466, %v1458
  %v2315 = vpack.c.b16 %v1467, %v1459
  %v2316 = vpack.c.b16 %v1468, %v1460
  %v2317 = vpack.c.b16 %v1469, %v1461
  %v2318 = vpack.c.b16 %v1470, %v1462
  %v2319 = vpack.c.b16 %v1479, %v1471
  %v2320 = vpack.c.b16 %v1480, %v1472
  %v2321 = vpack.c.b16 %v1481, %v1473
  %v2322 = vpack.c.b16 %v1482, %v1474
  %v2323 = vpack.c.b16 %v1483, %v1475
  %v2324 = vpack.c.b16 %v1484, %v1476
  %v2325 = vpack.c.b16 %v1485, %v1477
  %v2326 = vpack.c.b16 %v1486, %v1478
  %v2327 = vpack.c.b16 %v1495, %v1487
  %v2328 = vpack.c.b16 %v1496, %v1488
  %v2329 = vpack.c.b16 %v1497, %v1489
  %v2330 = vpack.c.b16 %v1498, %v1490
  %v2331 = vpack.c.b16 %v1499, %v1491
  %v2332 = vpack.c.b16 %v1500, %v1492
  %v2333 = vpack.c.b16 %v1501, %v1493
  %v2334 = vpack.c.b16 %v1502, %v1494
  %v2335 = vpack.c.b16 %v1511, %v1503
  %v2336 = vpack.c.b16 %v1512, %v1504
  %v2337 = vpack.c.b16 %v1513, %v1505
  %v2338 = vpack.c.b16 %v1514, %v1506
  %v2339 = vpack.c.b16 %v1515, %v1507
  %v2340 = vpack.c.b16 %v1516, %v1508
  %v2341 = vpack.c.b16 %v1517, %v1509
  %v2342 = vpack.c.b16 %v1518, %v1510
  %v2343 = vpack.c.b16 %v1527, %v1519
  %v2344 = vpack.c.b16 %v1528, %v1520
  %v2345 = vpack.c.b16 %v1529, %v1521
  %v2346 = vpack.c.b16 %v1530, %v1522
  %v2347 = vpack.c.b16 %v1531, %v1523
  %v2348 = vpack.c.b16 %v1532, %v1524
  %v2349 = vpack.c.b16 %v1533, %v1525
  %v2350 = vpack.c.b16 %v1534, %v1526
  %v2351 = vpack.c.b16 %v1543, %v1535
  %v2352 = vpack.c.b16 %v1544, %v1536
  %v2353 = vpack.c.b16 %v1545, %v1537
  %v2354 = vpack.c.b16 %v1546, %v1538
  %v2355 = vpack.c.b16 %v1547, %v1539
  %v2356 = vpack.c.b16 %v1548, %v1540
  %v2357 = vpack.c.b16 %v1549, %v1541
  %v2358 = vpack.c.b16 %v1550, %v1542
  %v2359 = vpack.c.b16 %v1559, %v1551
  %v2360 = vpack.c.b16 %v1560, %v1552
  %v2361 = vpack.c.b16 %v1561, %v1553
  %v2362 = vpack.c.b16 %v1562, %v1554
  %v2363 = vpack.c.b16 %v1563, %v1555
  %v2364 = vpack.c.b16 %v1564, %v1556
  %v2365 = vpack.c.b16 %v1565, %v1557
  %v2366 = vpack.c.b16 %v1566, %v1558
  %v2367 = vpack.c.b16 %v1575, %v1567
  %v2368 = vpack.c.b16 %v1576, %v1568
  %v2369 = vpack.c.b16 %v1577, %v1569
  %v2370 = vpack.c.b16 %v1578, %v1570
  %v2371 = vpack.c.b16 %v1579, %v1571
  %v2372 = vpack.c.b16 %v1580, %v1572
  %v2373 = vpack.c.b16 %v1581, %v1573
  %v2374 = vpack.c.b16 %v1582, %v1574
  %v2375 = vpack.c.b16 %v1591, %v1583
  %v2376 = vpack.c.b16 %v1592, %v1584
  %v2377 = vpack.c.b16 %v1593, %v1585
  %v2378 = vpack.c.b16 %v1594, %v1586
  %v2379 = vpack.c.b16 %v1595, %v1587
  %v2380 = vpack.c.b16 %v1596, %v1588
  %v2381 = vpack.c.b16 %v1597, %v1589
  %v2382 = vpack.c.b16 %v1598, %v1590
  %v2383 = vpack.c.b16 %v1607, %v1599
  %v2384 = vpack.c.b16 %v1608, %v1600
  %v2385 = vpack.c.b16 %v1609, %v1601
  %v2386 = vpack.c.b16 %v1610, %v1602
  %v2387 = vpack.c.b16 %v1611, %v1603
  %v2388 = vpack.c.b16 %v1612, %v1604
  %v2389 = vpack.c.b16 %v1613, %v1605
  %v2390 = vpack.c.b16 %v1614, %v1606
  %v2391 = vpack.c.b16 %v1623, %v1615
  %v2392 = vpack.c.b16 %v1624, %v1616
  %v2393 = vpack.c.b16 %v1625, %v1617
  %v2394 = vpack.c.b16 %v1626, %v1618
  %v2395 = vpack.c.b16 %v1627, %v1619
  %v2396 = vpack.c.b16 %v1628, %v1620
  %v2397 = vpack.c.b16 %v1629, %v1621
  %v2398 = vpack.c.b16 %v1630, %v1622
  %v2399 = vpack.c.b16 %v1639, %v1631
  %v2400 = vpack.c.b16 %v1640, %v1632
  %v2401 = vpack.c.b16 %v1641, %v1633
  %v2402 = vpack.c.b16 %v1642, %v1634
  %v2403 = vpack.c.b16 %v1643, %v1635
  %v2404 = vpack.c.b16 %v1644, %v1636
  %v2405 = vpack.c.b16 %v1645, %v1637
  %v2406 = vpack.c.b16 %v1646, %v1638
  %v2407 = vpack.c.b16 %v1655, %v1647
  %v2408 = vpack.c.b16 %v1656, %v1648
  %v2409 = vpack.c.b16 %v1657, %v1649
  %v2410 = vpack.c.b16 %v1658, %v1650
  %v2411 = vpack.c.b16 %v1659, %v1651
  %v2412 = vpack.c.b16 %v1660, %v1652
  %v2413 = vpack.c.b16 %v1661, %v1653
  %v2414 = vpack.c.b16 %v1662, %v1654
  %v2415 = vpack.c.b16 %v1671, %v1663
  %v2416 = vpack.c.b16 %v1672, %v1664
  %v2417 = vpack.c.b16 %v1673, %v1665
  %v2418 = vpack.c.b16 %v1674, %v1666
  %v2419 = vpack.c.b16 %v1675, %v1667
  %v2420 = vpack.c.b16 %v1676, %v1668
  %v2421 = vpack.c.b16 %v1677, %v1669
  %v2422 = vpack.c.b16 %v1678, %v1670
  %v2423 = vpack.c.b16 %v1687, %v1679
  %v2424 = vpack.c.b16 %v1688, %v1680
  %v2425 = vpack.c.b16 %v1689, %v1681
  %v2426 = vpack.c.b16 %v1690, %v1682
  %v2427 = vpack.c.b16 %v1691, %v1683
  %v2428 = vpack.c.b16 %v1692, %v1684
  %v2429 = vpack.c.b16 %v1693, %v1685
  %v2430 = vpack.c.b16 %v1694, %v1686
  %v2431 = vpack.c.b16 %v1703, %v1695
  %v2432 = vpack.c.b16 %v1704, %v1696
  %v2433 = vpack.c.b16 %v1705, %v1697
  %v2434 = vpack.c.b16 %v1706, %v1698
  %v2435 = vpack.c.b16 %v1707, %v1699
  %v2436 = vpack.c.b16 %v1708, %v1700
  %v2437 = vpack.c.b16 %v1709, %v1701
  %v2438 = vpack.c.b16 %v1710, %v1702
  %v2439 = vpack.c.b16 %v1719, %v1711
  %v2440 = vpack.c.b16 %v1720, %v1712
  %v2441 = vpack.c.b16 %v1721, %v1713
  %v2442 = vpack.c.b16 %v1722, %v1714
  %v2443 = vpack.c.b16 %v1723, %v1715
  %v2444 = vpack.c.b16 %v1724, %v1716
  %v2445 = vpack.c.b16 %v1725, %v1717
  %v2446 = vpack.c.b16 %v1726, %v1718
  %v2447 = vpack.c.b16 %v1735, %v1727
  %v2448 = vpack.c.b16 %v1736, %v1728
  %v2449 = vpack.c.b16 %v1737, %v1729
  %v2450 = vpack.c.b16 %v1738, %v1730
  %v2451 = vpack.c.b16 %v1739, %v1731
  %v2452 = vpack.c.b16 %v1740, %v1732
  %v2453 = vpack.c.b16 %v1741, %v1733
  %v2454 = vpack.c.b16 %v1742, %v1734
  %v2455 = vpack.c.b16 %v1751, %v1743
  %v2456 = vpack.c.b16 %v1752, %v1744
  %v2457 = vpack.c.b16 %v1753, %v1745
  %v2458 = vpack.c.b16 %v1754, %v1746
  %v2459 = vpack.c.b16 %v1755, %v1747
  %v2460 = vpack.c.b16 %v1756, %v1748
  %v2461 = vpack.c.b16 %v1757, %v1749
  %v2462 = vpack.c.b16 %v1758, %v1750
  %v2463 = vpack.c.b16 %v1767, %v1759
  %v2464 = vpack.c.b16 %v1768, %v1760
  %v2465 = vpack.c.b16 %v1769, %v1761
  %v2466 = vpack.c.b16 %v1770, %v1762
  %v2467 = vpack.c.b16 %v1771, %v1763
  %v2468 = vpack.c.b16 %v1772, %v1764
  %v2469 = vpack.c.b16 %v1773, %v1765
  %v2470 = vpack.c.b16 %v1774, %v1766
  %v2471 = vpack.c.b16 %v1783, %v1775
  %v2472 = vpack.c.b16 %v1784, %v1776
  %v2473 = vpack.c.b16 %v1785, %v1777
  %v2474 = vpack.c.b16 %v1786, %v1778
  %v2475 = vpack.c.b16 %v1787, %v1779
  %v2476 = vpack.c.b16 %v1788, %v1780
  %v2477 = vpack.c.b16 %v1789, %v1781
  %v2478 = vpack.c.b16 %v1790, %v1782
  %v2479 = vpack.c.b16 %v1799, %v1791
  %v2480 = vpack.c.b16 %v1800, %v1792
  %v2481 = vpack.c.b16 %v1801, %v1793
  %v2482 = vpack.c.b16 %v1802, %v1794
  %v2483 = vpack.c.b16 %v1803, %v1795
  %v2484 = vpack.c.b16 %v1804, %v1796
  %v2485 = vpack.c.b16 %v1805, %v1797
  %v2486 = vpack.c.b16 %v1806, %v1798
  %v2487 = vpack.c.b16 %v1815, %v1807
  %v2488 = vpack.c.b16 %v1816, %v1808
  %v2489 = vpack.c.b16 %v1817, %v1809
  %v2490 = vpack.c.b16 %v1818, %v1810
  %v2491 = vpack.c.b16 %v1819, %v1811
  %v2492 = vpack.c.b16 %v1820, %v1812
  %v2493 = vpack.c.b16 %v1821, %v1813
  %v2494 = vpack.c.b16 %v1822, %v1814
  %v2495 = vpack.c.b16 %v1831, %v1823
  %v2496 = vpack.c.b16 %v1832, %v1824
  %v2497 = vpack.c.b16 %v1833, %v1825
  %v2498 = vpack.c.b16 %v1834, %v1826
  %v2499 = vpack.c.b16 %v1835, %v1827
  %v2500 = vpack.c.b16 %v1836, %v1828
  %v2501 = vpack.c.b16 %v1837, %v1829
  %v2502 = vpack.c.b16 %v1838, %v1830
  %v2503 = vpack.c.b16 %v1847, %v1839
  %v2504 = vpack.c.b16 %v1848, %v1840
  %v2505 = vpack.c.b16 %v1849, %v1841
  %v2506 = vpack.c.b16 %v1850, %v1842
  %v2507 = vpack.c.b16 %v1851, %v1843
  %v2508 = vpack.c.b16 %v1852, %v1844
  %v2509 = vpack.c.b16 %v1853, %v1845
  %v2510 = vpack.c.b16 %v1854, %v1846
  %v2511 = vpack.c.b16 %v1863, %v1855
  %v2512 = vpack.c.b16 %v1864, %v1856
  %v2513 = vpack.c.b16 %v1865, %v1857
  %v2514 = vpack.c.b16 %v1866, %v1858
  %v2515 = vpack.c.b16 %v1867, %v1859
  %v2516 = vpack.c.b16 %v1868, %v1860
  %v2517 = vpack.c.b16 %v1869, %v1861
  %v2518 = vpack.c.b16 %v1870, %v1862
  %v2519 = vpack.c.b16 %v1879, %v1871
  %v2520 = vpack.c.b16 %v1880, %v1872
  %v2521 = vpack.c.b16 %v1881, %v1873
  %v2522 = vpack.c.b16 %v1882, %v1874
  %v2523 = vpack.c.b16 %v1883, %v1875
  %v2524 = vpack.c.b16 %v1884, %v1876
  %v2525 = vpack.c.b16 %v1885, %v1877
  %v2526 = vpack.c.b16 %v1886, %v1878
  %v2527 = vpack.c.b16 %v1895, %v1887
  %v2528 = vpack.c.b16 %v1896, %v1888
  %v2529 = vpack.c.b16 %v1897, %v1889
  %v2530 = vpack.c.b16 %v1898, %v1890
  %v2531 = vpack.c.b16 %v1899, %v1891
  %v2532 = vpack.c.b16 %v1900, %v1892
  %v2533 = vpack.c.b16 %v1901, %v1893
  %v2534 = vpack.c.b16 %v1902, %v1894
  %v2535 = vpack.c.b16 %v1911, %v1903
  %v2536 = vpack.c.b16 %v1912, %v1904
  %v2537 = vpack.c.b16 %v1913, %v1905
  %v2538 = vpack.c.b16 %v1914, %v1906
  %v2539 = vpack.c.b16 %v1915, %v1907
  %v2540 = vpack.c.b16 %v1916, %v1908
  %v2541 = vpack.c.b16 %v1917, %v1909
  %v2542 = vpack.c.b16 %v1918, %v1910
  %v2543 = vpack.c.b16 %v1927, %v1919
  %v2544 = vpack.c.b16 %v1928, %v1920
  %v2545 = vpack.c.b16 %v1929, %v1921
  %v2546 = vpack.c.b16 %v1930, %v1922
  %v2547 = vpack.c.b16 %v1931, %v1923
  %v2548 = vpack.c.b16 %v1932, %v1924
  %v2549 = vpack.c.b16 %v1933, %v1925
  %v2550 = vpack.c.b16 %v1934, %v1926
  %v2551 = vpack.c.b16 %v1943, %v1935
  %v2552 = vpack.c.b16 %v1944, %v1936
  %v2553 = vpack.c.b16 %v1945, %v1937
  %v2554 = vpack.c.b16 %v1946, %v1938
  %v2555 = vpack.c.b16 %v1947, %v1939
  %v2556 = vpack.c.b16 %v1948, %v1940
  %v2557 = vpack.c.b16 %v1949, %v1941
  %v2558 = vpack.c.b16 %v1950, %v1942
  %v2559 = vpack.c.b16 %v1959, %v1951
  %v2560 = vpack.c.b16 %v1960, %v1952
  %v2561 = vpack.c.b16 %v1961, %v1953
  %v2562 = vpack.c.b16 %v1962, %v1954
  %v2563 = vpack.c.b16 %v1963, %v1955
  %v2564 = vpack.c.b16 %v1964, %v1956
  %v2565 = vpack.c.b16 %v1965, %v1957
  %v2566 = vpack.c.b16 %v1966, %v1958
  %v2567 = vpack.c.b16 %v1975, %v1967
  %v2568 = vpack.c.b16 %v1976, %v1968
  %v2569 = vpack.c.b16 %v1977, %v1969
  %v2570 = vpack.c.b16 %v1978, %v1970
  %v2571 = vpack.c.b16 %v1979, %v1971
  %v2572 = vpack.c.b16 %v1980, %v1972
  %v2573 = vpack.c.b16 %v1981, %v1973
  %v2574 = vpack.c.b16 %v1982, %v1974
  %v2575 = vpack.c.b16 %v1991, %v1983
  %v2576 = vpack.c.b16 %v1992, %v1984
  %v2577 = vpack.c.b16 %v1993, %v1985
  %v2578 = vpack.c.b16 %v1994, %v1986
  %v2579 = vpack.c.b16 %v1995, %v1987
  %v2580 = vpack.c.b16 %v1996, %v1988
  %v2581 = vpack.c.b16 %v1997, %v1989
  %v2582 = vpack.c.b16 %v1998, %v1990
  %v2583 = vpack.c.b16 %v2007, %v1999
  %v2584 = vpack.c.b16 %v2008, %v2000
  %v2585 = vpack.c.b16 %v2009, %v2001
  %v2586 = vpack.c.b16 %v2010, %v2002
  %v2587 = vpack.c.b16 %v2011, %v2003
  %v2588 = vpack.c.b16 %v2012, %v2004
  %v2589 = vpack.c.b16 %v2013, %v2005
  %v2590 = vpack.c.b16 %v2014, %v2006
  %v2591 = vpack.c.b16 %v2023, %v2015
  %v2592 = vpack.c.b16 %v2024, %v2016
  %v2593 = vpack.c.b16 %v2025, %v2017
  %v2594 = vpack.c.b16 %v2026, %v2018
  %v2595 = vpack.c.b16 %v2027, %v2019
  %v2596 = vpack.c.b16 %v2028, %v2020
  %v2597 = vpack.c.b16 %v2029, %v2021
  %v2598 = vpack.c.b16 %v2030, %v2022
  %v2599 = vpack.c.b16 %v2039, %v2031
  %v2600 = vpack.c.b16 %v2040, %v2032
  %v2601 = vpack.c.b16 %v2041, %v2033
  %v2602 = vpack.c.b16 %v2042, %v2034
  %v2603 = vpack.c.b16 %v2043, %v2035
  %v2604 = vpack.c.b16 %v2044, %v2036
  %v2605 = vpack.c.b16 %v2045, %v2037
  %v2606 = vpack.c.b16 %v2046, %v2038
  %v2607 = vpack.c.b16 %v2055, %v2047
  %v2608 = vpack.c.b16 %v2056, %v2048
  %v2609 = vpack.c.b16 %v2057, %v2049
  %v2610 = vpack.c.b16 %v2058, %v2050
  %v2611 = vpack.c.b16 %v2059, %v2051
  %v2612 = vpack.c.b16 %v2060, %v2052
  %v2613 = vpack.c.b16 %v2061, %v2053
  %v2614 = vpack.c.b16 %v2062, %v2054
  %v2615 = vpack.c.b16 %v2071, %v2063
  %v2616 = vpack.c.b16 %v2072, %v2064
  %v2617 = vpack.c.b16 %v2073, %v2065
  %v2618 = vpack.c.b16 %v2074, %v2066
  %v2619 = vpack.c.b16 %v2075, %v2067
  %v2620 = vpack.c.b16 %v2076, %v2068
  %v2621 = vpack.c.b16 %v2077, %v2069
  %v2622 = vpack.c.b16 %v2078, %v2070
  %v2623 = vpack.c.b16 %v2087, %v2079
  %v2624 = vpack.c.b16 %v2088, %v2080
  %v2625 = vpack.c.b16 %v2089, %v2081
  %v2626 = vpack.c.b16 %v2090, %v2082
  %v2627 = vpack.c.b16 %v2091, %v2083
  %v2628 = vpack.c.b16 %v2092, %v2084
  %v2629 = vpack.c.b16 %v2093, %v2085
  %v2630 = vpack.c.b16 %v2094, %v2086
  %v2631 = vpack.c.b16 %v2103, %v2095
  %v2632 = vpack.c.b16 %v2104, %v2096
  %v2633 = vpack.c.b16 %v2105, %v2097
  %v2634 = vpack.c.b16 %v2106, %v2098
  %v2635 = vpack.c.b16 %v2107, %v2099
  %v2636 = vpack.c.b16 %v2108, %v2100
  %v2637 = vpack.c.b16 %v2109, %v2101
  %v2638 = vpack.c.b16 %v2110, %v2102
  %v2639 = vpack.c.b16 %v2119, %v2111
  %v2640 = vpack.c.b16 %v2120, %v2112
  %v2641 = vpack.c.b16 %v2121, %v2113
  %v2642 = vpack.c.b16 %v2122, %v2114
  %v2643 = vpack.c.b16 %v2123, %v2115
  %v2644 = vpack.c.b16 %v2124, %v2116
  %v2645 = vpack.c.b16 %v2125, %v2117
  %v2646 = vpack.c.b16 %v2126, %v2118
  %v2647 = vpack.c.b16 %v2135, %v2127
  %v2648 = vpack.c.b16 %v2136, %v2128
  %v2649 = vpack.c.b16 %v2137, %v2129
  %v2650 = vpack.c.b16 %v2138, %v2130
  %v2651 = vpack.c.b16 %v2139, %v2131
  %v2652 = vpack.c.b16 %v2140, %v2132
  %v2653 = vpack.c.b16 %v2141, %v2133
  %v2654 = vpack.c.b16 %v2142, %v2134
  %3167 = vmatpush.bf16.msra.mxu0 %v2199
  %3168 = vmatpush.bf16.msra.mxu0 %v2191
  %3169 = vmatpush.bf16.msra.mxu0 %v2183
  %3170 = vmatpush.bf16.msra.mxu0 %v2175
  %3171 = vmatpush.bf16.msra.mxu0 %v2167
  %3172 = vmatpush.bf16.msra.mxu0 %v2159
  %3173 = vmatpush.bf16.msra.mxu0 %v2151
  %3174 = vmatpush.bf16.msra.mxu0 %v2143
  %3175 = vmatmul.bf16.gmra.mxu0 %v591
  %v3176 = vpop.f32.mrf.mxu0
  %v3177 = vadd.f32 %v551, %v3176
  %v3178 = vpop.f32.mrf.mxu0
  %v3179 = vadd.f32 %v551, %v3178
  %3180 = vdwg.mxu0
  %3181 = vmatpush.bf16.msra.mxu0 %v2263
  %3182 = vmatpush.bf16.msra.mxu0 %v2255
  %3183 = vmatpush.bf16.msra.mxu0 %v2247
  %3184 = vmatpush.bf16.msra.mxu0 %v2239
  %3185 = vmatpush.bf16.msra.mxu0 %v2231
  %3186 = vmatpush.bf16.msra.mxu0 %v2223
  %3187 = vmatpush.bf16.msra.mxu0 %v2215
  %3188 = vmatpush.bf16.msra.mxu0 %v2207
  %3189 = vmatmul.bf16.gmra.mxu0 %v592
  %v3190 = vpop.f32.mrf.mxu0
  %v3191 = vadd.f32 %v3177, %v3190
  %v3192 = vpop.f32.mrf.mxu0
  %v3193 = vadd.f32 %v3179, %v3192
  %3194 = vdwg.mxu0
  %3195 = vmatpush.bf16.msra.mxu0 %v2327
  %3196 = vmatpush.bf16.msra.mxu0 %v2319
  %3197 = vmatpush.bf16.msra.mxu0 %v2311
  %3198 = vmatpush.bf16.msra.mxu0 %v2303
  %3199 = vmatpush.bf16.msra.mxu0 %v2295
  %3200 = vmatpush.bf16.msra.mxu0 %v2287
  %3201 = vmatpush.bf16.msra.mxu0 %v2279
  %3202 = vmatpush.bf16.msra.mxu0 %v2271
  %3203 = vmatmul.bf16.gmra.mxu0 %v593
  %v3204 = vpop.f32.mrf.mxu0
  %v3205 = vadd.f32 %v3191, %v3204
  %v3206 = vpop.f32.mrf.mxu0
  %v3207 = vadd.f32 %v3193, %v3206
  %3208 = vdwg.mxu0
  %3209 = vmatpush.bf16.msra.mxu0 %v2391
  %3210 = vmatpush.bf16.msra.mxu0 %v2383
  %3211 = vmatpush.bf16.msra.mxu0 %v2375
  %3212 = vmatpush.bf16.msra.mxu0 %v2367
  %3213 = vmatpush.bf16.msra.mxu0 %v2359
  %3214 = vmatpush.bf16.msra.mxu0 %v2351
  %3215 = vmatpush.bf16.msra.mxu0 %v2343
  %3216 = vmatpush.bf16.msra.mxu0 %v2335
  %3217 = vmatmul.bf16.gmra.mxu0 %v594
  %v3218 = vpop.f32.mrf.mxu0
  %v3219 = vadd.f32 %v3205, %v3218
  %v3220 = vpop.f32.mrf.mxu0
  %v3221 = vadd.f32 %v3207, %v3220
  %3222 = vdwg.mxu0
  %3223 = vmatpush.bf16.msra.mxu0 %v2455
  %3224 = vmatpush.bf16.msra.mxu0 %v2447
  %3225 = vmatpush.bf16.msra.mxu0 %v2439
  %3226 = vmatpush.bf16.msra.mxu0 %v2431
  %3227 = vmatpush.bf16.msra.mxu0 %v2423
  %3228 = vmatpush.bf16.msra.mxu0 %v2415
  %3229 = vmatpush.bf16.msra.mxu0 %v2407
  %3230 = vmatpush.bf16.msra.mxu0 %v2399
  %3231 = vmatmul.bf16.gmra.mxu0 %v595
  %v3232 = vpop.f32.mrf.mxu0
  %v3233 = vadd.f32 %v3219, %v3232
  %v3234 = vpop.f32.mrf.mxu0
  %v3235 = vadd.f32 %v3221, %v3234
  %3236 = vdwg.mxu0
  %3237 = vmatpush.bf16.msra.mxu0 %v2519
  %3238 = vmatpush.bf16.msra.mxu0 %v2511
  %3239 = vmatpush.bf16.msra.mxu0 %v2503
  %3240 = vmatpush.bf16.msra.mxu0 %v2495
  %3241 = vmatpush.bf16.msra.mxu0 %v2487
  %3242 = vmatpush.bf16.msra.mxu0 %v2479
  %3243 = vmatpush.bf16.msra.mxu0 %v2471
  %3244 = vmatpush.bf16.msra.mxu0 %v2463
  %3245 = vmatmul.bf16.gmra.mxu0 %v596
  %v3246 = vpop.f32.mrf.mxu0
  %v3247 = vadd.f32 %v3233, %v3246
  %v3248 = vpop.f32.mrf.mxu0
  %v3249 = vadd.f32 %v3235, %v3248
  %3250 = vdwg.mxu0
  %3251 = vmatpush.bf16.msra.mxu0 %v2583
  %3252 = vmatpush.bf16.msra.mxu0 %v2575
  %3253 = vmatpush.bf16.msra.mxu0 %v2567
  %3254 = vmatpush.bf16.msra.mxu0 %v2559
  %3255 = vmatpush.bf16.msra.mxu0 %v2551
  %3256 = vmatpush.bf16.msra.mxu0 %v2543
  %3257 = vmatpush.bf16.msra.mxu0 %v2535
  %3258 = vmatpush.bf16.msra.mxu0 %v2527
  %3259 = vmatmul.bf16.gmra.mxu0 %v597
  %v3260 = vpop.f32.mrf.mxu0
  %v3261 = vadd.f32 %v3247, %v3260
  %v3262 = vpop.f32.mrf.mxu0
  %v3263 = vadd.f32 %v3249, %v3262
  %3264 = vdwg.mxu0
  %3265 = vmatpush.bf16.msra.mxu0 %v2647
  %3266 = vmatpush.bf16.msra.mxu0 %v2639
  %3267 = vmatpush.bf16.msra.mxu0 %v2631
  %3268 = vmatpush.bf16.msra.mxu0 %v2623
  %3269 = vmatpush.bf16.msra.mxu0 %v2615
  %3270 = vmatpush.bf16.msra.mxu0 %v2607
  %3271 = vmatpush.bf16.msra.mxu0 %v2599
  %3272 = vmatpush.bf16.msra.mxu0 %v2591
  %3273 = vmatmul.bf16.gmra.mxu0 %v598
  %v3274 = vpop.f32.mrf.mxu0
  %v3275 = vadd.f32 %v3261, %v3274
  %v3276 = vpop.f32.mrf.mxu0
  %v3277 = vadd.f32 %v3263, %v3276
  %3278 = vdwg.mxu0
  %3279 = vmatpush.bf16.msra.mxu0 %v2200
  %3280 = vmatpush.bf16.msra.mxu0 %v2192
  %3281 = vmatpush.bf16.msra.mxu0 %v2184
  %3282 = vmatpush.bf16.msra.mxu0 %v2176
  %3283 = vmatpush.bf16.msra.mxu0 %v2168
  %3284 = vmatpush.bf16.msra.mxu0 %v2160
  %3285 = vmatpush.bf16.msra.mxu0 %v2152
  %3286 = vmatpush.bf16.msra.mxu0 %v2144
  %3287 = vmatmul.bf16.gmra.mxu0 %v591
  %v3288 = vpop.f32.mrf.mxu0
  %v3289 = vadd.f32 %v552, %v3288
  %v3290 = vpop.f32.mrf.mxu0
  %v3291 = vadd.f32 %v552, %v3290
  %3292 = vdwg.mxu0
  %3293 = vmatpush.bf16.msra.mxu0 %v2264
  %3294 = vmatpush.bf16.msra.mxu0 %v2256
  %3295 = vmatpush.bf16.msra.mxu0 %v2248
  %3296 = vmatpush.bf16.msra.mxu0 %v2240
  %3297 = vmatpush.bf16.msra.mxu0 %v2232
  %3298 = vmatpush.bf16.msra.mxu0 %v2224
  %3299 = vmatpush.bf16.msra.mxu0 %v2216
  %3300 = vmatpush.bf16.msra.mxu0 %v2208
  %3301 = vmatmul.bf16.gmra.mxu0 %v592
  %v3302 = vpop.f32.mrf.mxu0
  %v3303 = vadd.f32 %v3289, %v3302
  %v3304 = vpop.f32.mrf.mxu0
  %v3305 = vadd.f32 %v3291, %v3304
  %3306 = vdwg.mxu0
  %3307 = vmatpush.bf16.msra.mxu0 %v2328
  %3308 = vmatpush.bf16.msra.mxu0 %v2320
  %3309 = vmatpush.bf16.msra.mxu0 %v2312
  %3310 = vmatpush.bf16.msra.mxu0 %v2304
  %3311 = vmatpush.bf16.msra.mxu0 %v2296
  %3312 = vmatpush.bf16.msra.mxu0 %v2288
  %3313 = vmatpush.bf16.msra.mxu0 %v2280
  %3314 = vmatpush.bf16.msra.mxu0 %v2272
  %3315 = vmatmul.bf16.gmra.mxu0 %v593
  %v3316 = vpop.f32.mrf.mxu0
  %v3317 = vadd.f32 %v3303, %v3316
  %v3318 = vpop.f32.mrf.mxu0
  %v3319 = vadd.f32 %v3305, %v3318
  %3320 = vdwg.mxu0
  %3321 = vmatpush.bf16.msra.mxu0 %v2392
  %3322 = vmatpush.bf16.msra.mxu0 %v2384
  %3323 = vmatpush.bf16.msra.mxu0 %v2376
  %3324 = vmatpush.bf16.msra.mxu0 %v2368
  %3325 = vmatpush.bf16.msra.mxu0 %v2360
  %3326 = vmatpush.bf16.msra.mxu0 %v2352
  %3327 = vmatpush.bf16.msra.mxu0 %v2344
  %3328 = vmatpush.bf16.msra.mxu0 %v2336
  %3329 = vmatmul.bf16.gmra.mxu0 %v594
  %v3330 = vpop.f32.mrf.mxu0
  %v3331 = vadd.f32 %v3317, %v3330
  %v3332 = vpop.f32.mrf.mxu0
  %v3333 = vadd.f32 %v3319, %v3332
  %3334 = vdwg.mxu0
  %3335 = vmatpush.bf16.msra.mxu0 %v2456
  %3336 = vmatpush.bf16.msra.mxu0 %v2448
  %3337 = vmatpush.bf16.msra.mxu0 %v2440
  %3338 = vmatpush.bf16.msra.mxu0 %v2432
  %3339 = vmatpush.bf16.msra.mxu0 %v2424
  %3340 = vmatpush.bf16.msra.mxu0 %v2416
  %3341 = vmatpush.bf16.msra.mxu0 %v2408
  %3342 = vmatpush.bf16.msra.mxu0 %v2400
  %3343 = vmatmul.bf16.gmra.mxu0 %v595
  %v3344 = vpop.f32.mrf.mxu0
  %v3345 = vadd.f32 %v3331, %v3344
  %v3346 = vpop.f32.mrf.mxu0
  %v3347 = vadd.f32 %v3333, %v3346
  %3348 = vdwg.mxu0
  %3349 = vmatpush.bf16.msra.mxu0 %v2520
  %3350 = vmatpush.bf16.msra.mxu0 %v2512
  %3351 = vmatpush.bf16.msra.mxu0 %v2504
  %3352 = vmatpush.bf16.msra.mxu0 %v2496
  %3353 = vmatpush.bf16.msra.mxu0 %v2488
  %3354 = vmatpush.bf16.msra.mxu0 %v2480
  %3355 = vmatpush.bf16.msra.mxu0 %v2472
  %3356 = vmatpush.bf16.msra.mxu0 %v2464
  %3357 = vmatmul.bf16.gmra.mxu0 %v596
  %v3358 = vpop.f32.mrf.mxu0
  %v3359 = vadd.f32 %v3345, %v3358
  %v3360 = vpop.f32.mrf.mxu0
  %v3361 = vadd.f32 %v3347, %v3360
  %3362 = vdwg.mxu0
  %3363 = vmatpush.bf16.msra.mxu0 %v2584
  %3364 = vmatpush.bf16.msra.mxu0 %v2576
  %3365 = vmatpush.bf16.msra.mxu0 %v2568
  %3366 = vmatpush.bf16.msra.mxu0 %v2560
  %3367 = vmatpush.bf16.msra.mxu0 %v2552
  %3368 = vmatpush.bf16.msra.mxu0 %v2544
  %3369 = vmatpush.bf16.msra.mxu0 %v2536
  %3370 = vmatpush.bf16.msra.mxu0 %v2528
  %3371 = vmatmul.bf16.gmra.mxu0 %v597
  %v3372 = vpop.f32.mrf.mxu0
  %v3373 = vadd.f32 %v3359, %v3372
  %v3374 = vpop.f32.mrf.mxu0
  %v3375 = vadd.f32 %v3361, %v3374
  %3376 = vdwg.mxu0
  %3377 = vmatpush.bf16.msra.mxu0 %v2648
  %3378 = vmatpush.bf16.msra.mxu0 %v2640
  %3379 = vmatpush.bf16.msra.mxu0 %v2632
  %3380 = vmatpush.bf16.msra.mxu0 %v2624
  %3381 = vmatpush.bf16.msra.mxu0 %v2616
  %3382 = vmatpush.bf16.msra.mxu0 %v2608
  %3383 = vmatpush.bf16.msra.mxu0 %v2600
  %3384 = vmatpush.bf16.msra.mxu0 %v2592
  %3385 = vmatmul.bf16.gmra.mxu0 %v598
  %v3386 = vpop.f32.mrf.mxu0
  %v3387 = vadd.f32 %v3373, %v3386
  %v3388 = vpop.f32.mrf.mxu0
  %v3389 = vadd.f32 %v3375, %v3388
  %3390 = vdwg.mxu0
  %3391 = vmatpush.bf16.msra.mxu0 %v2201
  %3392 = vmatpush.bf16.msra.mxu0 %v2193
  %3393 = vmatpush.bf16.msra.mxu0 %v2185
  %3394 = vmatpush.bf16.msra.mxu0 %v2177
  %3395 = vmatpush.bf16.msra.mxu0 %v2169
  %3396 = vmatpush.bf16.msra.mxu0 %v2161
  %3397 = vmatpush.bf16.msra.mxu0 %v2153
  %3398 = vmatpush.bf16.msra.mxu0 %v2145
  %3399 = vmatmul.bf16.gmra.mxu0 %v591
  %v3400 = vpop.f32.mrf.mxu0
  %v3401 = vadd.f32 %v553, %v3400
  %v3402 = vpop.f32.mrf.mxu0
  %v3403 = vadd.f32 %v553, %v3402
  %3404 = vdwg.mxu0
  %3405 = vmatpush.bf16.msra.mxu0 %v2265
  %3406 = vmatpush.bf16.msra.mxu0 %v2257
  %3407 = vmatpush.bf16.msra.mxu0 %v2249
  %3408 = vmatpush.bf16.msra.mxu0 %v2241
  %3409 = vmatpush.bf16.msra.mxu0 %v2233
  %3410 = vmatpush.bf16.msra.mxu0 %v2225
  %3411 = vmatpush.bf16.msra.mxu0 %v2217
  %3412 = vmatpush.bf16.msra.mxu0 %v2209
  %3413 = vmatmul.bf16.gmra.mxu0 %v592
  %v3414 = vpop.f32.mrf.mxu0
  %v3415 = vadd.f32 %v3401, %v3414
  %v3416 = vpop.f32.mrf.mxu0
  %v3417 = vadd.f32 %v3403, %v3416
  %3418 = vdwg.mxu0
  %3419 = vmatpush.bf16.msra.mxu0 %v2329
  %3420 = vmatpush.bf16.msra.mxu0 %v2321
  %3421 = vmatpush.bf16.msra.mxu0 %v2313
  %3422 = vmatpush.bf16.msra.mxu0 %v2305
  %3423 = vmatpush.bf16.msra.mxu0 %v2297
  %3424 = vmatpush.bf16.msra.mxu0 %v2289
  %3425 = vmatpush.bf16.msra.mxu0 %v2281
  %3426 = vmatpush.bf16.msra.mxu0 %v2273
  %3427 = vmatmul.bf16.gmra.mxu0 %v593
  %v3428 = vpop.f32.mrf.mxu0
  %v3429 = vadd.f32 %v3415, %v3428
  %v3430 = vpop.f32.mrf.mxu0
  %v3431 = vadd.f32 %v3417, %v3430
  %3432 = vdwg.mxu0
  %3433 = vmatpush.bf16.msra.mxu0 %v2393
  %3434 = vmatpush.bf16.msra.mxu0 %v2385
  %3435 = vmatpush.bf16.msra.mxu0 %v2377
  %3436 = vmatpush.bf16.msra.mxu0 %v2369
  %3437 = vmatpush.bf16.msra.mxu0 %v2361
  %3438 = vmatpush.bf16.msra.mxu0 %v2353
  %3439 = vmatpush.bf16.msra.mxu0 %v2345
  %3440 = vmatpush.bf16.msra.mxu0 %v2337
  %3441 = vmatmul.bf16.gmra.mxu0 %v594
  %v3442 = vpop.f32.mrf.mxu0
  %v3443 = vadd.f32 %v3429, %v3442
  %v3444 = vpop.f32.mrf.mxu0
  %v3445 = vadd.f32 %v3431, %v3444
  %3446 = vdwg.mxu0
  %3447 = vmatpush.bf16.msra.mxu0 %v2457
  %3448 = vmatpush.bf16.msra.mxu0 %v2449
  %3449 = vmatpush.bf16.msra.mxu0 %v2441
  %3450 = vmatpush.bf16.msra.mxu0 %v2433
  %3451 = vmatpush.bf16.msra.mxu0 %v2425
  %3452 = vmatpush.bf16.msra.mxu0 %v2417
  %3453 = vmatpush.bf16.msra.mxu0 %v2409
  %3454 = vmatpush.bf16.msra.mxu0 %v2401
  %3455 = vmatmul.bf16.gmra.mxu0 %v595
  %v3456 = vpop.f32.mrf.mxu0
  %v3457 = vadd.f32 %v3443, %v3456
  %v3458 = vpop.f32.mrf.mxu0
  %v3459 = vadd.f32 %v3445, %v3458
  %3460 = vdwg.mxu0
  %3461 = vmatpush.bf16.msra.mxu0 %v2521
  %3462 = vmatpush.bf16.msra.mxu0 %v2513
  %3463 = vmatpush.bf16.msra.mxu0 %v2505
  %3464 = vmatpush.bf16.msra.mxu0 %v2497
  %3465 = vmatpush.bf16.msra.mxu0 %v2489
  %3466 = vmatpush.bf16.msra.mxu0 %v2481
  %3467 = vmatpush.bf16.msra.mxu0 %v2473
  %3468 = vmatpush.bf16.msra.mxu0 %v2465
  %3469 = vmatmul.bf16.gmra.mxu0 %v596
  %v3470 = vpop.f32.mrf.mxu0
  %v3471 = vadd.f32 %v3457, %v3470
  %v3472 = vpop.f32.mrf.mxu0
  %v3473 = vadd.f32 %v3459, %v3472
  %3474 = vdwg.mxu0
  %3475 = vmatpush.bf16.msra.mxu0 %v2585
  %3476 = vmatpush.bf16.msra.mxu0 %v2577
  %3477 = vmatpush.bf16.msra.mxu0 %v2569
  %3478 = vmatpush.bf16.msra.mxu0 %v2561
  %3479 = vmatpush.bf16.msra.mxu0 %v2553
  %3480 = vmatpush.bf16.msra.mxu0 %v2545
  %3481 = vmatpush.bf16.msra.mxu0 %v2537
  %3482 = vmatpush.bf16.msra.mxu0 %v2529
  %3483 = vmatmul.bf16.gmra.mxu0 %v597
  %v3484 = vpop.f32.mrf.mxu0
  %v3485 = vadd.f32 %v3471, %v3484
  %v3486 = vpop.f32.mrf.mxu0
  %v3487 = vadd.f32 %v3473, %v3486
  %3488 = vdwg.mxu0
  %3489 = vmatpush.bf16.msra.mxu0 %v2649
  %3490 = vmatpush.bf16.msra.mxu0 %v2641
  %3491 = vmatpush.bf16.msra.mxu0 %v2633
  %3492 = vmatpush.bf16.msra.mxu0 %v2625
  %3493 = vmatpush.bf16.msra.mxu0 %v2617
  %3494 = vmatpush.bf16.msra.mxu0 %v2609
  %3495 = vmatpush.bf16.msra.mxu0 %v2601
  %3496 = vmatpush.bf16.msra.mxu0 %v2593
  %3497 = vmatmul.bf16.gmra.mxu0 %v598
  %v3498 = vpop.f32.mrf.mxu0
  %v3499 = vadd.f32 %v3485, %v3498
  %v3500 = vpop.f32.mrf.mxu0
  %v3501 = vadd.f32 %v3487, %v3500
  %3502 = vdwg.mxu0
  %3503 = vmatpush.bf16.msra.mxu0 %v2202
  %3504 = vmatpush.bf16.msra.mxu0 %v2194
  %3505 = vmatpush.bf16.msra.mxu0 %v2186
  %3506 = vmatpush.bf16.msra.mxu0 %v2178
  %3507 = vmatpush.bf16.msra.mxu0 %v2170
  %3508 = vmatpush.bf16.msra.mxu0 %v2162
  %3509 = vmatpush.bf16.msra.mxu0 %v2154
  %3510 = vmatpush.bf16.msra.mxu0 %v2146
  %3511 = vmatmul.bf16.gmra.mxu0 %v591
  %v3512 = vpop.f32.mrf.mxu0
  %v3513 = vadd.f32 %v554, %v3512
  %v3514 = vpop.f32.mrf.mxu0
  %v3515 = vadd.f32 %v554, %v3514
  %3516 = vdwg.mxu0
  %3517 = vmatpush.bf16.msra.mxu0 %v2266
  %3518 = vmatpush.bf16.msra.mxu0 %v2258
  %3519 = vmatpush.bf16.msra.mxu0 %v2250
  %3520 = vmatpush.bf16.msra.mxu0 %v2242
  %3521 = vmatpush.bf16.msra.mxu0 %v2234
  %3522 = vmatpush.bf16.msra.mxu0 %v2226
  %3523 = vmatpush.bf16.msra.mxu0 %v2218
  %3524 = vmatpush.bf16.msra.mxu0 %v2210
  %3525 = vmatmul.bf16.gmra.mxu0 %v592
  %v3526 = vpop.f32.mrf.mxu0
  %v3527 = vadd.f32 %v3513, %v3526
  %v3528 = vpop.f32.mrf.mxu0
  %v3529 = vadd.f32 %v3515, %v3528
  %3530 = vdwg.mxu0
  %3531 = vmatpush.bf16.msra.mxu0 %v2330
  %3532 = vmatpush.bf16.msra.mxu0 %v2322
  %3533 = vmatpush.bf16.msra.mxu0 %v2314
  %3534 = vmatpush.bf16.msra.mxu0 %v2306
  %3535 = vmatpush.bf16.msra.mxu0 %v2298
  %3536 = vmatpush.bf16.msra.mxu0 %v2290
  %3537 = vmatpush.bf16.msra.mxu0 %v2282
  %3538 = vmatpush.bf16.msra.mxu0 %v2274
  %3539 = vmatmul.bf16.gmra.mxu0 %v593
  %v3540 = vpop.f32.mrf.mxu0
  %v3541 = vadd.f32 %v3527, %v3540
  %v3542 = vpop.f32.mrf.mxu0
  %v3543 = vadd.f32 %v3529, %v3542
  %3544 = vdwg.mxu0
  %3545 = vmatpush.bf16.msra.mxu0 %v2394
  %3546 = vmatpush.bf16.msra.mxu0 %v2386
  %3547 = vmatpush.bf16.msra.mxu0 %v2378
  %3548 = vmatpush.bf16.msra.mxu0 %v2370
  %3549 = vmatpush.bf16.msra.mxu0 %v2362
  %3550 = vmatpush.bf16.msra.mxu0 %v2354
  %3551 = vmatpush.bf16.msra.mxu0 %v2346
  %3552 = vmatpush.bf16.msra.mxu0 %v2338
  %3553 = vmatmul.bf16.gmra.mxu0 %v594
  %v3554 = vpop.f32.mrf.mxu0
  %v3555 = vadd.f32 %v3541, %v3554
  %v3556 = vpop.f32.mrf.mxu0
  %v3557 = vadd.f32 %v3543, %v3556
  %3558 = vdwg.mxu0
  %3559 = vmatpush.bf16.msra.mxu0 %v2458
  %3560 = vmatpush.bf16.msra.mxu0 %v2450
  %3561 = vmatpush.bf16.msra.mxu0 %v2442
  %3562 = vmatpush.bf16.msra.mxu0 %v2434
  %3563 = vmatpush.bf16.msra.mxu0 %v2426
  %3564 = vmatpush.bf16.msra.mxu0 %v2418
  %3565 = vmatpush.bf16.msra.mxu0 %v2410
  %3566 = vmatpush.bf16.msra.mxu0 %v2402
  %3567 = vmatmul.bf16.gmra.mxu0 %v595
  %v3568 = vpop.f32.mrf.mxu0
  %v3569 = vadd.f32 %v3555, %v3568
  %v3570 = vpop.f32.mrf.mxu0
  %v3571 = vadd.f32 %v3557, %v3570
  %3572 = vdwg.mxu0
  %3573 = vmatpush.bf16.msra.mxu0 %v2522
  %3574 = vmatpush.bf16.msra.mxu0 %v2514
  %3575 = vmatpush.bf16.msra.mxu0 %v2506
  %3576 = vmatpush.bf16.msra.mxu0 %v2498
  %3577 = vmatpush.bf16.msra.mxu0 %v2490
  %3578 = vmatpush.bf16.msra.mxu0 %v2482
  %3579 = vmatpush.bf16.msra.mxu0 %v2474
  %3580 = vmatpush.bf16.msra.mxu0 %v2466
  %3581 = vmatmul.bf16.gmra.mxu0 %v596
  %v3582 = vpop.f32.mrf.mxu0
  %v3583 = vadd.f32 %v3569, %v3582
  %v3584 = vpop.f32.mrf.mxu0
  %v3585 = vadd.f32 %v3571, %v3584
  %3586 = vdwg.mxu0
  %3587 = vmatpush.bf16.msra.mxu0 %v2586
  %3588 = vmatpush.bf16.msra.mxu0 %v2578
  %3589 = vmatpush.bf16.msra.mxu0 %v2570
  %3590 = vmatpush.bf16.msra.mxu0 %v2562
  %3591 = vmatpush.bf16.msra.mxu0 %v2554
  %3592 = vmatpush.bf16.msra.mxu0 %v2546
  %3593 = vmatpush.bf16.msra.mxu0 %v2538
  %3594 = vmatpush.bf16.msra.mxu0 %v2530
  %3595 = vmatmul.bf16.gmra.mxu0 %v597
  %v3596 = vpop.f32.mrf.mxu0
  %v3597 = vadd.f32 %v3583, %v3596
  %v3598 = vpop.f32.mrf.mxu0
  %v3599 = vadd.f32 %v3585, %v3598
  %3600 = vdwg.mxu0
  %3601 = vmatpush.bf16.msra.mxu0 %v2650
  %3602 = vmatpush.bf16.msra.mxu0 %v2642
  %3603 = vmatpush.bf16.msra.mxu0 %v2634
  %3604 = vmatpush.bf16.msra.mxu0 %v2626
  %3605 = vmatpush.bf16.msra.mxu0 %v2618
  %3606 = vmatpush.bf16.msra.mxu0 %v2610
  %3607 = vmatpush.bf16.msra.mxu0 %v2602
  %3608 = vmatpush.bf16.msra.mxu0 %v2594
  %3609 = vmatmul.bf16.gmra.mxu0 %v598
  %v3610 = vpop.f32.mrf.mxu0
  %v3611 = vadd.f32 %v3597, %v3610
  %v3612 = vpop.f32.mrf.mxu0
  %v3613 = vadd.f32 %v3599, %v3612
  %3614 = vdwg.mxu0
  %3615 = vmatpush.bf16.msra.mxu0 %v2203
  %3616 = vmatpush.bf16.msra.mxu0 %v2195
  %3617 = vmatpush.bf16.msra.mxu0 %v2187
  %3618 = vmatpush.bf16.msra.mxu0 %v2179
  %3619 = vmatpush.bf16.msra.mxu0 %v2171
  %3620 = vmatpush.bf16.msra.mxu0 %v2163
  %3621 = vmatpush.bf16.msra.mxu0 %v2155
  %3622 = vmatpush.bf16.msra.mxu0 %v2147
  %3623 = vmatmul.bf16.gmra.mxu0 %v591
  %v3624 = vpop.f32.mrf.mxu0
  %v3625 = vadd.f32 %v555, %v3624
  %v3626 = vpop.f32.mrf.mxu0
  %v3627 = vadd.f32 %v555, %v3626
  %3628 = vdwg.mxu0
  %3629 = vmatpush.bf16.msra.mxu0 %v2267
  %3630 = vmatpush.bf16.msra.mxu0 %v2259
  %3631 = vmatpush.bf16.msra.mxu0 %v2251
  %3632 = vmatpush.bf16.msra.mxu0 %v2243
  %3633 = vmatpush.bf16.msra.mxu0 %v2235
  %3634 = vmatpush.bf16.msra.mxu0 %v2227
  %3635 = vmatpush.bf16.msra.mxu0 %v2219
  %3636 = vmatpush.bf16.msra.mxu0 %v2211
  %3637 = vmatmul.bf16.gmra.mxu0 %v592
  %v3638 = vpop.f32.mrf.mxu0
  %v3639 = vadd.f32 %v3625, %v3638
  %v3640 = vpop.f32.mrf.mxu0
  %v3641 = vadd.f32 %v3627, %v3640
  %3642 = vdwg.mxu0
  %3643 = vmatpush.bf16.msra.mxu0 %v2331
  %3644 = vmatpush.bf16.msra.mxu0 %v2323
  %3645 = vmatpush.bf16.msra.mxu0 %v2315
  %3646 = vmatpush.bf16.msra.mxu0 %v2307
  %3647 = vmatpush.bf16.msra.mxu0 %v2299
  %3648 = vmatpush.bf16.msra.mxu0 %v2291
  %3649 = vmatpush.bf16.msra.mxu0 %v2283
  %3650 = vmatpush.bf16.msra.mxu0 %v2275
  %3651 = vmatmul.bf16.gmra.mxu0 %v593
  %v3652 = vpop.f32.mrf.mxu0
  %v3653 = vadd.f32 %v3639, %v3652
  %v3654 = vpop.f32.mrf.mxu0
  %v3655 = vadd.f32 %v3641, %v3654
  %3656 = vdwg.mxu0
  %3657 = vmatpush.bf16.msra.mxu0 %v2395
  %3658 = vmatpush.bf16.msra.mxu0 %v2387
  %3659 = vmatpush.bf16.msra.mxu0 %v2379
  %3660 = vmatpush.bf16.msra.mxu0 %v2371
  %3661 = vmatpush.bf16.msra.mxu0 %v2363
  %3662 = vmatpush.bf16.msra.mxu0 %v2355
  %3663 = vmatpush.bf16.msra.mxu0 %v2347
  %3664 = vmatpush.bf16.msra.mxu0 %v2339
  %3665 = vmatmul.bf16.gmra.mxu0 %v594
  %v3666 = vpop.f32.mrf.mxu0
  %v3667 = vadd.f32 %v3653, %v3666
  %v3668 = vpop.f32.mrf.mxu0
  %v3669 = vadd.f32 %v3655, %v3668
  %3670 = vdwg.mxu0
  %3671 = vmatpush.bf16.msra.mxu0 %v2459
  %3672 = vmatpush.bf16.msra.mxu0 %v2451
  %3673 = vmatpush.bf16.msra.mxu0 %v2443
  %3674 = vmatpush.bf16.msra.mxu0 %v2435
  %3675 = vmatpush.bf16.msra.mxu0 %v2427
  %3676 = vmatpush.bf16.msra.mxu0 %v2419
  %3677 = vmatpush.bf16.msra.mxu0 %v2411
  %3678 = vmatpush.bf16.msra.mxu0 %v2403
  %3679 = vmatmul.bf16.gmra.mxu0 %v595
  %v3680 = vpop.f32.mrf.mxu0
  %v3681 = vadd.f32 %v3667, %v3680
  %v3682 = vpop.f32.mrf.mxu0
  %v3683 = vadd.f32 %v3669, %v3682
  %3684 = vdwg.mxu0
  %3685 = vmatpush.bf16.msra.mxu0 %v2523
  %3686 = vmatpush.bf16.msra.mxu0 %v2515
  %3687 = vmatpush.bf16.msra.mxu0 %v2507
  %3688 = vmatpush.bf16.msra.mxu0 %v2499
  %3689 = vmatpush.bf16.msra.mxu0 %v2491
  %3690 = vmatpush.bf16.msra.mxu0 %v2483
  %3691 = vmatpush.bf16.msra.mxu0 %v2475
  %3692 = vmatpush.bf16.msra.mxu0 %v2467
  %3693 = vmatmul.bf16.gmra.mxu0 %v596
  %v3694 = vpop.f32.mrf.mxu0
  %v3695 = vadd.f32 %v3681, %v3694
  %v3696 = vpop.f32.mrf.mxu0
  %v3697 = vadd.f32 %v3683, %v3696
  %3698 = vdwg.mxu0
  %3699 = vmatpush.bf16.msra.mxu0 %v2587
  %3700 = vmatpush.bf16.msra.mxu0 %v2579
  %3701 = vmatpush.bf16.msra.mxu0 %v2571
  %3702 = vmatpush.bf16.msra.mxu0 %v2563
  %3703 = vmatpush.bf16.msra.mxu0 %v2555
  %3704 = vmatpush.bf16.msra.mxu0 %v2547
  %3705 = vmatpush.bf16.msra.mxu0 %v2539
  %3706 = vmatpush.bf16.msra.mxu0 %v2531
  %3707 = vmatmul.bf16.gmra.mxu0 %v597
  %v3708 = vpop.f32.mrf.mxu0
  %v3709 = vadd.f32 %v3695, %v3708
  %v3710 = vpop.f32.mrf.mxu0
  %v3711 = vadd.f32 %v3697, %v3710
  %3712 = vdwg.mxu0
  %3713 = vmatpush.bf16.msra.mxu0 %v2651
  %3714 = vmatpush.bf16.msra.mxu0 %v2643
  %3715 = vmatpush.bf16.msra.mxu0 %v2635
  %3716 = vmatpush.bf16.msra.mxu0 %v2627
  %3717 = vmatpush.bf16.msra.mxu0 %v2619
  %3718 = vmatpush.bf16.msra.mxu0 %v2611
  %3719 = vmatpush.bf16.msra.mxu0 %v2603
  %3720 = vmatpush.bf16.msra.mxu0 %v2595
  %3721 = vmatmul.bf16.gmra.mxu0 %v598
  %v3722 = vpop.f32.mrf.mxu0
  %v3723 = vadd.f32 %v3709, %v3722
  %v3724 = vpop.f32.mrf.mxu0
  %v3725 = vadd.f32 %v3711, %v3724
  %3726 = vdwg.mxu0
  %3727 = vmatpush.bf16.msra.mxu0 %v2204
  %3728 = vmatpush.bf16.msra.mxu0 %v2196
  %3729 = vmatpush.bf16.msra.mxu0 %v2188
  %3730 = vmatpush.bf16.msra.mxu0 %v2180
  %3731 = vmatpush.bf16.msra.mxu0 %v2172
  %3732 = vmatpush.bf16.msra.mxu0 %v2164
  %3733 = vmatpush.bf16.msra.mxu0 %v2156
  %3734 = vmatpush.bf16.msra.mxu0 %v2148
  %3735 = vmatmul.bf16.gmra.mxu0 %v591
  %v3736 = vpop.f32.mrf.mxu0
  %v3737 = vadd.f32 %v556, %v3736
  %v3738 = vpop.f32.mrf.mxu0
  %v3739 = vadd.f32 %v556, %v3738
  %3740 = vdwg.mxu0
  %3741 = vmatpush.bf16.msra.mxu0 %v2268
  %3742 = vmatpush.bf16.msra.mxu0 %v2260
  %3743 = vmatpush.bf16.msra.mxu0 %v2252
  %3744 = vmatpush.bf16.msra.mxu0 %v2244
  %3745 = vmatpush.bf16.msra.mxu0 %v2236
  %3746 = vmatpush.bf16.msra.mxu0 %v2228
  %3747 = vmatpush.bf16.msra.mxu0 %v2220
  %3748 = vmatpush.bf16.msra.mxu0 %v2212
  %3749 = vmatmul.bf16.gmra.mxu0 %v592
  %v3750 = vpop.f32.mrf.mxu0
  %v3751 = vadd.f32 %v3737, %v3750
  %v3752 = vpop.f32.mrf.mxu0
  %v3753 = vadd.f32 %v3739, %v3752
  %3754 = vdwg.mxu0
  %3755 = vmatpush.bf16.msra.mxu0 %v2332
  %3756 = vmatpush.bf16.msra.mxu0 %v2324
  %3757 = vmatpush.bf16.msra.mxu0 %v2316
  %3758 = vmatpush.bf16.msra.mxu0 %v2308
  %3759 = vmatpush.bf16.msra.mxu0 %v2300
  %3760 = vmatpush.bf16.msra.mxu0 %v2292
  %3761 = vmatpush.bf16.msra.mxu0 %v2284
  %3762 = vmatpush.bf16.msra.mxu0 %v2276
  %3763 = vmatmul.bf16.gmra.mxu0 %v593
  %v3764 = vpop.f32.mrf.mxu0
  %v3765 = vadd.f32 %v3751, %v3764
  %v3766 = vpop.f32.mrf.mxu0
  %v3767 = vadd.f32 %v3753, %v3766
  %3768 = vdwg.mxu0
  %3769 = vmatpush.bf16.msra.mxu0 %v2396
  %3770 = vmatpush.bf16.msra.mxu0 %v2388
  %3771 = vmatpush.bf16.msra.mxu0 %v2380
  %3772 = vmatpush.bf16.msra.mxu0 %v2372
  %3773 = vmatpush.bf16.msra.mxu0 %v2364
  %3774 = vmatpush.bf16.msra.mxu0 %v2356
  %3775 = vmatpush.bf16.msra.mxu0 %v2348
  %3776 = vmatpush.bf16.msra.mxu0 %v2340
  %3777 = vmatmul.bf16.gmra.mxu0 %v594
  %v3778 = vpop.f32.mrf.mxu0
  %v3779 = vadd.f32 %v3765, %v3778
  %v3780 = vpop.f32.mrf.mxu0
  %v3781 = vadd.f32 %v3767, %v3780
  %3782 = vdwg.mxu0
  %3783 = vmatpush.bf16.msra.mxu0 %v2460
  %3784 = vmatpush.bf16.msra.mxu0 %v2452
  %3785 = vmatpush.bf16.msra.mxu0 %v2444
  %3786 = vmatpush.bf16.msra.mxu0 %v2436
  %3787 = vmatpush.bf16.msra.mxu0 %v2428
  %3788 = vmatpush.bf16.msra.mxu0 %v2420
  %3789 = vmatpush.bf16.msra.mxu0 %v2412
  %3790 = vmatpush.bf16.msra.mxu0 %v2404
  %3791 = vmatmul.bf16.gmra.mxu0 %v595
  %v3792 = vpop.f32.mrf.mxu0
  %v3793 = vadd.f32 %v3779, %v3792
  %v3794 = vpop.f32.mrf.mxu0
  %v3795 = vadd.f32 %v3781, %v3794
  %3796 = vdwg.mxu0
  %3797 = vmatpush.bf16.msra.mxu0 %v2524
  %3798 = vmatpush.bf16.msra.mxu0 %v2516
  %3799 = vmatpush.bf16.msra.mxu0 %v2508
  %3800 = vmatpush.bf16.msra.mxu0 %v2500
  %3801 = vmatpush.bf16.msra.mxu0 %v2492
  %3802 = vmatpush.bf16.msra.mxu0 %v2484
  %3803 = vmatpush.bf16.msra.mxu0 %v2476
  %3804 = vmatpush.bf16.msra.mxu0 %v2468
  %3805 = vmatmul.bf16.gmra.mxu0 %v596
  %v3806 = vpop.f32.mrf.mxu0
  %v3807 = vadd.f32 %v3793, %v3806
  %v3808 = vpop.f32.mrf.mxu0
  %v3809 = vadd.f32 %v3795, %v3808
  %3810 = vdwg.mxu0
  %3811 = vmatpush.bf16.msra.mxu0 %v2588
  %3812 = vmatpush.bf16.msra.mxu0 %v2580
  %3813 = vmatpush.bf16.msra.mxu0 %v2572
  %3814 = vmatpush.bf16.msra.mxu0 %v2564
  %3815 = vmatpush.bf16.msra.mxu0 %v2556
  %3816 = vmatpush.bf16.msra.mxu0 %v2548
  %3817 = vmatpush.bf16.msra.mxu0 %v2540
  %3818 = vmatpush.bf16.msra.mxu0 %v2532
  %3819 = vmatmul.bf16.gmra.mxu0 %v597
  %v3820 = vpop.f32.mrf.mxu0
  %v3821 = vadd.f32 %v3807, %v3820
  %v3822 = vpop.f32.mrf.mxu0
  %v3823 = vadd.f32 %v3809, %v3822
  %3824 = vdwg.mxu0
  %3825 = vmatpush.bf16.msra.mxu0 %v2652
  %3826 = vmatpush.bf16.msra.mxu0 %v2644
  %3827 = vmatpush.bf16.msra.mxu0 %v2636
  %3828 = vmatpush.bf16.msra.mxu0 %v2628
  %3829 = vmatpush.bf16.msra.mxu0 %v2620
  %3830 = vmatpush.bf16.msra.mxu0 %v2612
  %3831 = vmatpush.bf16.msra.mxu0 %v2604
  %3832 = vmatpush.bf16.msra.mxu0 %v2596
  %3833 = vmatmul.bf16.gmra.mxu0 %v598
  %v3834 = vpop.f32.mrf.mxu0
  %v3835 = vadd.f32 %v3821, %v3834
  %v3836 = vpop.f32.mrf.mxu0
  %v3837 = vadd.f32 %v3823, %v3836
  %3838 = vdwg.mxu0
  %3839 = vmatpush.bf16.msra.mxu0 %v2205
  %3840 = vmatpush.bf16.msra.mxu0 %v2197
  %3841 = vmatpush.bf16.msra.mxu0 %v2189
  %3842 = vmatpush.bf16.msra.mxu0 %v2181
  %3843 = vmatpush.bf16.msra.mxu0 %v2173
  %3844 = vmatpush.bf16.msra.mxu0 %v2165
  %3845 = vmatpush.bf16.msra.mxu0 %v2157
  %3846 = vmatpush.bf16.msra.mxu0 %v2149
  %3847 = vmatmul.bf16.gmra.mxu0 %v591
  %v3848 = vpop.f32.mrf.mxu0
  %v3849 = vadd.f32 %v557, %v3848
  %v3850 = vpop.f32.mrf.mxu0
  %v3851 = vadd.f32 %v557, %v3850
  %3852 = vdwg.mxu0
  %3853 = vmatpush.bf16.msra.mxu0 %v2269
  %3854 = vmatpush.bf16.msra.mxu0 %v2261
  %3855 = vmatpush.bf16.msra.mxu0 %v2253
  %3856 = vmatpush.bf16.msra.mxu0 %v2245
  %3857 = vmatpush.bf16.msra.mxu0 %v2237
  %3858 = vmatpush.bf16.msra.mxu0 %v2229
  %3859 = vmatpush.bf16.msra.mxu0 %v2221
  %3860 = vmatpush.bf16.msra.mxu0 %v2213
  %3861 = vmatmul.bf16.gmra.mxu0 %v592
  %v3862 = vpop.f32.mrf.mxu0
  %v3863 = vadd.f32 %v3849, %v3862
  %v3864 = vpop.f32.mrf.mxu0
  %v3865 = vadd.f32 %v3851, %v3864
  %3866 = vdwg.mxu0
  %3867 = vmatpush.bf16.msra.mxu0 %v2333
  %3868 = vmatpush.bf16.msra.mxu0 %v2325
  %3869 = vmatpush.bf16.msra.mxu0 %v2317
  %3870 = vmatpush.bf16.msra.mxu0 %v2309
  %3871 = vmatpush.bf16.msra.mxu0 %v2301
  %3872 = vmatpush.bf16.msra.mxu0 %v2293
  %3873 = vmatpush.bf16.msra.mxu0 %v2285
  %3874 = vmatpush.bf16.msra.mxu0 %v2277
  %3875 = vmatmul.bf16.gmra.mxu0 %v593
  %v3876 = vpop.f32.mrf.mxu0
  %v3877 = vadd.f32 %v3863, %v3876
  %v3878 = vpop.f32.mrf.mxu0
  %v3879 = vadd.f32 %v3865, %v3878
  %3880 = vdwg.mxu0
  %3881 = vmatpush.bf16.msra.mxu0 %v2397
  %3882 = vmatpush.bf16.msra.mxu0 %v2389
  %3883 = vmatpush.bf16.msra.mxu0 %v2381
  %3884 = vmatpush.bf16.msra.mxu0 %v2373
  %3885 = vmatpush.bf16.msra.mxu0 %v2365
  %3886 = vmatpush.bf16.msra.mxu0 %v2357
  %3887 = vmatpush.bf16.msra.mxu0 %v2349
  %3888 = vmatpush.bf16.msra.mxu0 %v2341
  %3889 = vmatmul.bf16.gmra.mxu0 %v594
  %v3890 = vpop.f32.mrf.mxu0
  %v3891 = vadd.f32 %v3877, %v3890
  %v3892 = vpop.f32.mrf.mxu0
  %v3893 = vadd.f32 %v3879, %v3892
  %3894 = vdwg.mxu0
  %3895 = vmatpush.bf16.msra.mxu0 %v2461
  %3896 = vmatpush.bf16.msra.mxu0 %v2453
  %3897 = vmatpush.bf16.msra.mxu0 %v2445
  %3898 = vmatpush.bf16.msra.mxu0 %v2437
  %3899 = vmatpush.bf16.msra.mxu0 %v2429
  %3900 = vmatpush.bf16.msra.mxu0 %v2421
  %3901 = vmatpush.bf16.msra.mxu0 %v2413
  %3902 = vmatpush.bf16.msra.mxu0 %v2405
  %3903 = vmatmul.bf16.gmra.mxu0 %v595
  %v3904 = vpop.f32.mrf.mxu0
  %v3905 = vadd.f32 %v3891, %v3904
  %v3906 = vpop.f32.mrf.mxu0
  %v3907 = vadd.f32 %v3893, %v3906
  %3908 = vdwg.mxu0
  %3909 = vmatpush.bf16.msra.mxu0 %v2525
  %3910 = vmatpush.bf16.msra.mxu0 %v2517
  %3911 = vmatpush.bf16.msra.mxu0 %v2509
  %3912 = vmatpush.bf16.msra.mxu0 %v2501
  %3913 = vmatpush.bf16.msra.mxu0 %v2493
  %3914 = vmatpush.bf16.msra.mxu0 %v2485
  %3915 = vmatpush.bf16.msra.mxu0 %v2477
  %3916 = vmatpush.bf16.msra.mxu0 %v2469
  %3917 = vmatmul.bf16.gmra.mxu0 %v596
  %v3918 = vpop.f32.mrf.mxu0
  %v3919 = vadd.f32 %v3905, %v3918
  %v3920 = vpop.f32.mrf.mxu0
  %v3921 = vadd.f32 %v3907, %v3920
  %3922 = vdwg.mxu0
  %3923 = vmatpush.bf16.msra.mxu0 %v2589
  %3924 = vmatpush.bf16.msra.mxu0 %v2581
  %3925 = vmatpush.bf16.msra.mxu0 %v2573
  %3926 = vmatpush.bf16.msra.mxu0 %v2565
  %3927 = vmatpush.bf16.msra.mxu0 %v2557
  %3928 = vmatpush.bf16.msra.mxu0 %v2549
  %3929 = vmatpush.bf16.msra.mxu0 %v2541
  %3930 = vmatpush.bf16.msra.mxu0 %v2533
  %3931 = vmatmul.bf16.gmra.mxu0 %v597
  %v3932 = vpop.f32.mrf.mxu0
  %v3933 = vadd.f32 %v3919, %v3932
  %v3934 = vpop.f32.mrf.mxu0
  %v3935 = vadd.f32 %v3921, %v3934
  %3936 = vdwg.mxu0
  %3937 = vmatpush.bf16.msra.mxu0 %v2653
  %3938 = vmatpush.bf16.msra.mxu0 %v2645
  %3939 = vmatpush.bf16.msra.mxu0 %v2637
  %3940 = vmatpush.bf16.msra.mxu0 %v2629
  %3941 = vmatpush.bf16.msra.mxu0 %v2621
  %3942 = vmatpush.bf16.msra.mxu0 %v2613
  %3943 = vmatpush.bf16.msra.mxu0 %v2605
  %3944 = vmatpush.bf16.msra.mxu0 %v2597
  %3945 = vmatmul.bf16.gmra.mxu0 %v598
  %v3946 = vpop.f32.mrf.mxu0
  %v3947 = vadd.f32 %v3933, %v3946
  %v3948 = vpop.f32.mrf.mxu0
  %v3949 = vadd.f32 %v3935, %v3948
  %3950 = vdwg.mxu0
  %3951 = vmatpush.bf16.msra.mxu0 %v2206
  %3952 = vmatpush.bf16.msra.mxu0 %v2198
  %3953 = vmatpush.bf16.msra.mxu0 %v2190
  %3954 = vmatpush.bf16.msra.mxu0 %v2182
  %3955 = vmatpush.bf16.msra.mxu0 %v2174
  %3956 = vmatpush.bf16.msra.mxu0 %v2166
  %3957 = vmatpush.bf16.msra.mxu0 %v2158
  %3958 = vmatpush.bf16.msra.mxu0 %v2150
  %3959 = vmatmul.bf16.gmra.mxu0 %v591
  %v3960 = vpop.f32.mrf.mxu0
  %v3961 = vadd.f32 %v558, %v3960
  %v3962 = vpop.f32.mrf.mxu0
  %v3963 = vadd.f32 %v558, %v3962
  %3964 = vdwg.mxu0
  %3965 = vmatpush.bf16.msra.mxu0 %v2270
  %3966 = vmatpush.bf16.msra.mxu0 %v2262
  %3967 = vmatpush.bf16.msra.mxu0 %v2254
  %3968 = vmatpush.bf16.msra.mxu0 %v2246
  %3969 = vmatpush.bf16.msra.mxu0 %v2238
  %3970 = vmatpush.bf16.msra.mxu0 %v2230
  %3971 = vmatpush.bf16.msra.mxu0 %v2222
  %3972 = vmatpush.bf16.msra.mxu0 %v2214
  %3973 = vmatmul.bf16.gmra.mxu0 %v592
  %v3974 = vpop.f32.mrf.mxu0
  %v3975 = vadd.f32 %v3961, %v3974
  %v3976 = vpop.f32.mrf.mxu0
  %v3977 = vadd.f32 %v3963, %v3976
  %3978 = vdwg.mxu0
  %3979 = vmatpush.bf16.msra.mxu0 %v2334
  %3980 = vmatpush.bf16.msra.mxu0 %v2326
  %3981 = vmatpush.bf16.msra.mxu0 %v2318
  %3982 = vmatpush.bf16.msra.mxu0 %v2310
  %3983 = vmatpush.bf16.msra.mxu0 %v2302
  %3984 = vmatpush.bf16.msra.mxu0 %v2294
  %3985 = vmatpush.bf16.msra.mxu0 %v2286
  %3986 = vmatpush.bf16.msra.mxu0 %v2278
  %3987 = vmatmul.bf16.gmra.mxu0 %v593
  %v3988 = vpop.f32.mrf.mxu0
  %v3989 = vadd.f32 %v3975, %v3988
  %v3990 = vpop.f32.mrf.mxu0
  %v3991 = vadd.f32 %v3977, %v3990
  %3992 = vdwg.mxu0
  %3993 = vmatpush.bf16.msra.mxu0 %v2398
  %3994 = vmatpush.bf16.msra.mxu0 %v2390
  %3995 = vmatpush.bf16.msra.mxu0 %v2382
  %3996 = vmatpush.bf16.msra.mxu0 %v2374
  %3997 = vmatpush.bf16.msra.mxu0 %v2366
  %3998 = vmatpush.bf16.msra.mxu0 %v2358
  %3999 = vmatpush.bf16.msra.mxu0 %v2350
  %4000 = vmatpush.bf16.msra.mxu0 %v2342
  %4001 = vmatmul.bf16.gmra.mxu0 %v594
  %v4002 = vpop.f32.mrf.mxu0
  %v4003 = vadd.f32 %v3989, %v4002
  %v4004 = vpop.f32.mrf.mxu0
  %v4005 = vadd.f32 %v3991, %v4004
  %4006 = vdwg.mxu0
  %4007 = vmatpush.bf16.msra.mxu0 %v2462
  %4008 = vmatpush.bf16.msra.mxu0 %v2454
  %4009 = vmatpush.bf16.msra.mxu0 %v2446
  %4010 = vmatpush.bf16.msra.mxu0 %v2438
  %4011 = vmatpush.bf16.msra.mxu0 %v2430
  %4012 = vmatpush.bf16.msra.mxu0 %v2422
  %4013 = vmatpush.bf16.msra.mxu0 %v2414
  %4014 = vmatpush.bf16.msra.mxu0 %v2406
  %4015 = vmatmul.bf16.gmra.mxu0 %v595
  %v4016 = vpop.f32.mrf.mxu0
  %v4017 = vadd.f32 %v4003, %v4016
  %v4018 = vpop.f32.mrf.mxu0
  %v4019 = vadd.f32 %v4005, %v4018
  %4020 = vdwg.mxu0
  %4021 = vmatpush.bf16.msra.mxu0 %v2526
  %4022 = vmatpush.bf16.msra.mxu0 %v2518
  %4023 = vmatpush.bf16.msra.mxu0 %v2510
  %4024 = vmatpush.bf16.msra.mxu0 %v2502
  %4025 = vmatpush.bf16.msra.mxu0 %v2494
  %4026 = vmatpush.bf16.msra.mxu0 %v2486
  %4027 = vmatpush.bf16.msra.mxu0 %v2478
  %4028 = vmatpush.bf16.msra.mxu0 %v2470
  %4029 = vmatmul.bf16.gmra.mxu0 %v596
  %v4030 = vpop.f32.mrf.mxu0
  %v4031 = vadd.f32 %v4017, %v4030
  %v4032 = vpop.f32.mrf.mxu0
  %v4033 = vadd.f32 %v4019, %v4032
  %4034 = vdwg.mxu0
  %4035 = vmatpush.bf16.msra.mxu0 %v2590
  %4036 = vmatpush.bf16.msra.mxu0 %v2582
  %4037 = vmatpush.bf16.msra.mxu0 %v2574
  %4038 = vmatpush.bf16.msra.mxu0 %v2566
  %4039 = vmatpush.bf16.msra.mxu0 %v2558
  %4040 = vmatpush.bf16.msra.mxu0 %v2550
  %4041 = vmatpush.bf16.msra.mxu0 %v2542
  %4042 = vmatpush.bf16.msra.mxu0 %v2534
  %4043 = vmatmul.bf16.gmra.mxu0 %v597
  %v4044 = vpop.f32.mrf.mxu0
  %v4045 = vadd.f32 %v4031, %v4044
  %v4046 = vpop.f32.mrf.mxu0
  %v4047 = vadd.f32 %v4033, %v4046
  %4048 = vdwg.mxu0
  %4049 = vmatpush.bf16.msra.mxu0 %v2654
  %4050 = vmatpush.bf16.msra.mxu0 %v2646
  %4051 = vmatpush.bf16.msra.mxu0 %v2638
  %4052 = vmatpush.bf16.msra.mxu0 %v2630
  %4053 = vmatpush.bf16.msra.mxu0 %v2622
  %4054 = vmatpush.bf16.msra.mxu0 %v2614
  %4055 = vmatpush.bf16.msra.mxu0 %v2606
  %4056 = vmatpush.bf16.msra.mxu0 %v2598
  %4057 = vmatmul.bf16.gmra.mxu0 %v598
  %v4058 = vpop.f32.mrf.mxu0
  %v4059 = vadd.f32 %v4045, %v4058
  %v4060 = vpop.f32.mrf.mxu0
  %v4061 = vadd.f32 %v4047, %v4060
  %4062 = vdwg.mxu0
  %v4063 = vmax.f32 %v3275, 0.0
  %v4064 = vmax.f32 %v3387, 0.0
  %v4065 = vmax.f32 %v3499, 0.0
  %v4066 = vmax.f32 %v3611, 0.0
  %v4067 = vmax.f32 %v3723, 0.0
  %v4068 = vmax.f32 %v3835, 0.0
  %v4069 = vmax.f32 %v3947, 0.0
  %v4070 = vmax.f32 %v4059, 0.0
  %v4071 = vmax.f32 %v3277, 0.0
  %v4072 = vmax.f32 %v3389, 0.0
  %v4073 = vmax.f32 %v3501, 0.0
  %v4074 = vmax.f32 %v3613, 0.0
  %v4075 = vmax.f32 %v3725, 0.0
  %v4076 = vmax.f32 %v3837, 0.0
  %v4077 = vmax.f32 %v3949, 0.0
  %v4078 = vmax.f32 %v4061, 0.0
  %v4079 = vpack.c.bf16 %v4064, %v4063
  %v4080 = vpack.c.bf16 %v4066, %v4065
  %v4081 = vpack.c.bf16 %v4068, %v4067
  %v4082 = vpack.c.bf16 %v4070, %v4069
  %v4083 = vpack.c.bf16 %v4072, %v4071
  %v4084 = vpack.c.bf16 %v4074, %v4073
  %v4085 = vpack.c.bf16 %v4076, %v4075
  %v4086 = vpack.c.bf16 %v4078, %v4077
  %v4087 = vld [vmem:[%s3] sm:$0xf]
  %v4088 = vld [vmem:[%s3 + $0x4] sm:$0xf]
  %v4089 = vld [vmem:[%s3 + $0x8] sm:$0xf]
  %v4090 = vld [vmem:[%s3 + $0xc] sm:$0xf]
  %v4091 = vld [vmem:[%s3 + $0x10] sm:$0xf]
  %v4092 = vld [vmem:[%s3 + $0x14] sm:$0xf]
  %v4093 = vld [vmem:[%s3 + $0x18] sm:$0xf]
  %v4094 = vld [vmem:[%s3 + $0x1c] sm:$0xf]
  %v4095 = vld [vmem:[%s3 + $0x20] sm:$0xf]
  %v4096 = vld [vmem:[%s3 + $0x24] sm:$0xf]
  %v4097 = vld [vmem:[%s3 + $0x28] sm:$0xf]
  %v4098 = vld [vmem:[%s3 + $0x2c] sm:$0xf]
  %v4099 = vld [vmem:[%s3 + $0x30] sm:$0xf]
  %v4100 = vld [vmem:[%s3 + $0x34] sm:$0xf]
  %v4101 = vld [vmem:[%s3 + $0x38] sm:$0xf]
  %v4102 = vld [vmem:[%s3 + $0x3c] sm:$0xf]
  %v4103 = vld [vmem:[%s3 + $0x40] sm:$0xf]
  %v4104 = vld [vmem:[%s3 + $0x44] sm:$0xf]
  %v4105 = vld [vmem:[%s3 + $0x48] sm:$0xf]
  %v4106 = vld [vmem:[%s3 + $0x4c] sm:$0xf]
  %v4107 = vld [vmem:[%s3 + $0x50] sm:$0xf]
  %v4108 = vld [vmem:[%s3 + $0x54] sm:$0xf]
  %v4109 = vld [vmem:[%s3 + $0x58] sm:$0xf]
  %v4110 = vld [vmem:[%s3 + $0x5c] sm:$0xf]
  %v4111 = vld [vmem:[%s3 + $0x60] sm:$0xf]
  %v4112 = vld [vmem:[%s3 + $0x64] sm:$0xf]
  %v4113 = vld [vmem:[%s3 + $0x68] sm:$0xf]
  %v4114 = vld [vmem:[%s3 + $0x6c] sm:$0xf]
  %v4115 = vld [vmem:[%s3 + $0x70] sm:$0xf]
  %v4116 = vld [vmem:[%s3 + $0x74] sm:$0xf]
  %v4117 = vld [vmem:[%s3 + $0x78] sm:$0xf]
  %v4118 = vld [vmem:[%s3 + $0x7c] sm:$0xf]
  %v4119 = vld [vmem:[%s3 + $0x80] sm:$0xf]
  %v4120 = vld [vmem:[%s3 + $0x84] sm:$0xf]
  %v4121 = vld [vmem:[%s3 + $0x88] sm:$0xf]
  %v4122 = vld [vmem:[%s3 + $0x8c] sm:$0xf]
  %v4123 = vld [vmem:[%s3 + $0x90] sm:$0xf]
  %v4124 = vld [vmem:[%s3 + $0x94] sm:$0xf]
  %v4125 = vld [vmem:[%s3 + $0x98] sm:$0xf]
  %v4126 = vld [vmem:[%s3 + $0x9c] sm:$0xf]
  %v4127 = vld [vmem:[%s3 + $0xa0] sm:$0xf]
  %v4128 = vld [vmem:[%s3 + $0xa4] sm:$0xf]
  %v4129 = vld [vmem:[%s3 + $0xa8] sm:$0xf]
  %v4130 = vld [vmem:[%s3 + $0xac] sm:$0xf]
  %v4131 = vld [vmem:[%s3 + $0xb0] sm:$0xf]
  %v4132 = vld [vmem:[%s3 + $0xb4] sm:$0xf]
  %v4133 = vld [vmem:[%s3 + $0xb8] sm:$0xf]
  %v4134 = vld [vmem:[%s3 + $0xbc] sm:$0xf]
  %v4135 = vld [vmem:[%s3 + $0xc0] sm:$0xf]
  %v4136 = vld [vmem:[%s3 + $0xc4] sm:$0xf]
  %v4137 = vld [vmem:[%s3 + $0xc8] sm:$0xf]
  %v4138 = vld [vmem:[%s3 + $0xcc] sm:$0xf]
  %v4139 = vld [vmem:[%s3 + $0xd0] sm:$0xf]
  %v4140 = vld [vmem:[%s3 + $0xd4] sm:$0xf]
  %v4141 = vld [vmem:[%s3 + $0xd8] sm:$0xf]
  %v4142 = vld [vmem:[%s3 + $0xdc] sm:$0xf]
  %v4143 = vld [vmem:[%s3 + $0xe0] sm:$0xf]
  %v4144 = vld [vmem:[%s3 + $0xe4] sm:$0xf]
  %v4145 = vld [vmem:[%s3 + $0xe8] sm:$0xf]
  %v4146 = vld [vmem:[%s3 + $0xec] sm:$0xf]
  %v4147 = vld [vmem:[%s3 + $0xf0] sm:$0xf]
  %v4148 = vld [vmem:[%s3 + $0xf4] sm:$0xf]
  %v4149 = vld [vmem:[%s3 + $0xf8] sm:$0xf]
  %v4150 = vld [vmem:[%s3 + $0xfc] sm:$0xf]
  %v4151 = vld [vmem:[%s4] sm:$0x1]
  %v4153 = vperm.slane %v4151, 0
  %v4159 = vunpack.c.l.b16 %v4079
  %v4160 = vunpack.c.h.b16 %v4079
  %v4161 = vunpack.c.l.b16 %v4080
  %v4162 = vunpack.c.h.b16 %v4080
  %v4163 = vunpack.c.l.b16 %v4083
  %v4164 = vunpack.c.h.b16 %v4083
  %v4165 = vunpack.c.l.b16 %v4084
  %v4166 = vunpack.c.h.b16 %v4084
  %v4167 = vpack.c.b16 %v4163, %v4159
  %v4168 = vpack.c.b16 %v4164, %v4160
  %v4169 = vpack.c.b16 %v4165, %v4161
  %v4170 = vpack.c.b16 %v4166, %v4162
  %v4239 = vunpack.c.l.b16 %v4087
  %v4240 = vunpack.c.l.b16 %v4088
  %v4241 = vunpack.c.l.b16 %v4089
  %v4242 = vunpack.c.l.b16 %v4090
  %v4243 = vunpack.c.l.b16 %v4091
  %v4244 = vunpack.c.l.b16 %v4092
  %v4245 = vunpack.c.l.b16 %v4093
  %v4246 = vunpack.c.l.b16 %v4094
  %v4247 = vunpack.c.l.b16 %v4095
  %v4248 = vunpack.c.l.b16 %v4096
  %v4249 = vunpack.c.l.b16 %v4097
  %v4250 = vunpack.c.l.b16 %v4098
  %v4251 = vunpack.c.l.b16 %v4099
  %v4252 = vunpack.c.l.b16 %v4100
  %v4253 = vunpack.c.l.b16 %v4101
  %v4254 = vunpack.c.l.b16 %v4102
  %v4255 = vunpack.c.l.b16 %v4103
  %v4256 = vunpack.c.l.b16 %v4104
  %v4257 = vunpack.c.l.b16 %v4105
  %v4258 = vunpack.c.l.b16 %v4106
  %v4259 = vunpack.c.l.b16 %v4107
  %v4260 = vunpack.c.l.b16 %v4108
  %v4261 = vunpack.c.l.b16 %v4109
  %v4262 = vunpack.c.l.b16 %v4110
  %v4263 = vunpack.c.l.b16 %v4111
  %v4264 = vunpack.c.l.b16 %v4112
  %v4265 = vunpack.c.l.b16 %v4113
  %v4266 = vunpack.c.l.b16 %v4114
  %v4267 = vunpack.c.l.b16 %v4115
  %v4268 = vunpack.c.l.b16 %v4116
  %v4269 = vunpack.c.l.b16 %v4117
  %v4270 = vunpack.c.l.b16 %v4118
  %v4271 = vunpack.c.l.b16 %v4119
  %v4272 = vunpack.c.l.b16 %v4120
  %v4273 = vunpack.c.l.b16 %v4121
  %v4274 = vunpack.c.l.b16 %v4122
  %v4275 = vunpack.c.l.b16 %v4123
  %v4276 = vunpack.c.l.b16 %v4124
  %v4277 = vunpack.c.l.b16 %v4125
  %v4278 = vunpack.c.l.b16 %v4126
  %v4279 = vunpack.c.l.b16 %v4127
  %v4280 = vunpack.c.l.b16 %v4128
  %v4281 = vunpack.c.l.b16 %v4129
  %v4282 = vunpack.c.l.b16 %v4130
  %v4283 = vunpack.c.l.b16 %v4131
  %v4284 = vunpack.c.l.b16 %v4132
  %v4285 = vunpack.c.l.b16 %v4133
  %v4286 = vunpack.c.l.b16 %v4134
  %v4287 = vunpack.c.l.b16 %v4135
  %v4288 = vunpack.c.l.b16 %v4136
  %v4289 = vunpack.c.l.b16 %v4137
  %v4290 = vunpack.c.l.b16 %v4138
  %v4291 = vunpack.c.l.b16 %v4139
  %v4292 = vunpack.c.l.b16 %v4140
  %v4293 = vunpack.c.l.b16 %v4141
  %v4294 = vunpack.c.l.b16 %v4142
  %v4295 = vunpack.c.l.b16 %v4143
  %v4296 = vunpack.c.l.b16 %v4144
  %v4297 = vunpack.c.l.b16 %v4145
  %v4298 = vunpack.c.l.b16 %v4146
  %v4299 = vunpack.c.l.b16 %v4147
  %v4300 = vunpack.c.l.b16 %v4148
  %v4301 = vunpack.c.l.b16 %v4149
  %v4302 = vunpack.c.l.b16 %v4150
  %v4303 = vpack.c.b16 %v4240, %v4239
  %v4304 = vpack.c.b16 %v4242, %v4241
  %v4305 = vpack.c.b16 %v4244, %v4243
  %v4306 = vpack.c.b16 %v4246, %v4245
  %v4307 = vpack.c.b16 %v4248, %v4247
  %v4308 = vpack.c.b16 %v4250, %v4249
  %v4309 = vpack.c.b16 %v4252, %v4251
  %v4310 = vpack.c.b16 %v4254, %v4253
  %v4311 = vpack.c.b16 %v4256, %v4255
  %v4312 = vpack.c.b16 %v4258, %v4257
  %v4313 = vpack.c.b16 %v4260, %v4259
  %v4314 = vpack.c.b16 %v4262, %v4261
  %v4315 = vpack.c.b16 %v4264, %v4263
  %v4316 = vpack.c.b16 %v4266, %v4265
  %v4317 = vpack.c.b16 %v4268, %v4267
  %v4318 = vpack.c.b16 %v4270, %v4269
  %v4319 = vpack.c.b16 %v4272, %v4271
  %v4320 = vpack.c.b16 %v4274, %v4273
  %v4321 = vpack.c.b16 %v4276, %v4275
  %v4322 = vpack.c.b16 %v4278, %v4277
  %v4323 = vpack.c.b16 %v4280, %v4279
  %v4324 = vpack.c.b16 %v4282, %v4281
  %v4325 = vpack.c.b16 %v4284, %v4283
  %v4326 = vpack.c.b16 %v4286, %v4285
  %v4327 = vpack.c.b16 %v4288, %v4287
  %v4328 = vpack.c.b16 %v4290, %v4289
  %v4329 = vpack.c.b16 %v4292, %v4291
  %v4330 = vpack.c.b16 %v4294, %v4293
  %v4331 = vpack.c.b16 %v4296, %v4295
  %v4332 = vpack.c.b16 %v4298, %v4297
  %v4333 = vpack.c.b16 %v4300, %v4299
  %v4334 = vpack.c.b16 %v4302, %v4301
  %4367 = vmatpush.bf16.msra.mxu0 %v4310
  %4368 = vmatpush.bf16.msra.mxu0 %v4309
  %4369 = vmatpush.bf16.msra.mxu0 %v4308
  %4370 = vmatpush.bf16.msra.mxu0 %v4307
  %4371 = vmatpush.bf16.msra.mxu0 %v4306
  %4372 = vmatpush.bf16.msra.mxu0 %v4305
  %4373 = vmatpush.bf16.msra.mxu0 %v4304
  %4374 = vmatpush.bf16.msra.mxu0 %v4303
  %4375 = vmatmul.bf16.gmra.mxu0 %v4167
  %v4376 = vpop.f32.mrf.mxu0
  %v4377 = vadd.f32 %v4153, %v4376
  %v4378 = vpop.f32.mrf.mxu0
  %v4379 = vadd.f32 %v4153, %v4378
  %4380 = vdwg.mxu0
  %4381 = vmatpush.bf16.msra.mxu0 %v4318
  %4382 = vmatpush.bf16.msra.mxu0 %v4317
  %4383 = vmatpush.bf16.msra.mxu0 %v4316
  %4384 = vmatpush.bf16.msra.mxu0 %v4315
  %4385 = vmatpush.bf16.msra.mxu0 %v4314
  %4386 = vmatpush.bf16.msra.mxu0 %v4313
  %4387 = vmatpush.bf16.msra.mxu0 %v4312
  %4388 = vmatpush.bf16.msra.mxu0 %v4311
  %4389 = vmatmul.bf16.gmra.mxu0 %v4168
  %v4390 = vpop.f32.mrf.mxu0
  %v4391 = vadd.f32 %v4377, %v4390
  %v4392 = vpop.f32.mrf.mxu0
  %v4393 = vadd.f32 %v4379, %v4392
  %4394 = vdwg.mxu0
  %4395 = vmatpush.bf16.msra.mxu0 %v4326
  %4396 = vmatpush.bf16.msra.mxu0 %v4325
  %4397 = vmatpush.bf16.msra.mxu0 %v4324
  %4398 = vmatpush.bf16.msra.mxu0 %v4323
  %4399 = vmatpush.bf16.msra.mxu0 %v4322
  %4400 = vmatpush.bf16.msra.mxu0 %v4321
  %4401 = vmatpush.bf16.msra.mxu0 %v4320
  %4402 = vmatpush.bf16.msra.mxu0 %v4319
  %4403 = vmatmul.bf16.gmra.mxu0 %v4169
  %v4404 = vpop.f32.mrf.mxu0
  %v4405 = vadd.f32 %v4391, %v4404
  %v4406 = vpop.f32.mrf.mxu0
  %v4407 = vadd.f32 %v4393, %v4406
  %4408 = vdwg.mxu0
  %4409 = vmatpush.bf16.msra.mxu0 %v4334
  %4410 = vmatpush.bf16.msra.mxu0 %v4333
  %4411 = vmatpush.bf16.msra.mxu0 %v4332
  %4412 = vmatpush.bf16.msra.mxu0 %v4331
  %4413 = vmatpush.bf16.msra.mxu0 %v4330
  %4414 = vmatpush.bf16.msra.mxu0 %v4329
  %4415 = vmatpush.bf16.msra.mxu0 %v4328
  %4416 = vmatpush.bf16.msra.mxu0 %v4327
  %4417 = vmatmul.bf16.gmra.mxu0 %v4170
  %v4418 = vpop.f32.mrf.mxu0
  %v4419 = vadd.f32 %v4405, %v4418
  %v4420 = vpop.f32.mrf.mxu0
  %v4421 = vadd.f32 %v4407, %v4420
  %4422 = vdwg.mxu0
  %v4423 = vld [vmem:[%s5] sm:$0xf]
  %v4424 = vld [vmem:[%s5 + $0x4] sm:$0xf]
  %v4425 = vld [vmem:[%s5 + $0x8] sm:$0xf]
  %v4426 = vld [vmem:[%s5 + $0xc] sm:$0xf]
  %v4427 = vld [vmem:[%s5 + $0x10] sm:$0xf]
  %v4428 = vld [vmem:[%s5 + $0x14] sm:$0xf]
  %v4429 = vld [vmem:[%s5 + $0x18] sm:$0xf]
  %v4430 = vld [vmem:[%s5 + $0x1c] sm:$0xf]
  %v4431 = vld [vmem:[%s5 + $0x20] sm:$0xf]
  %v4432 = vld [vmem:[%s5 + $0x24] sm:$0xf]
  %v4433 = vld [vmem:[%s5 + $0x28] sm:$0xf]
  %v4434 = vld [vmem:[%s5 + $0x2c] sm:$0xf]
  %v4435 = vld [vmem:[%s5 + $0x30] sm:$0xf]
  %v4436 = vld [vmem:[%s5 + $0x34] sm:$0xf]
  %v4437 = vld [vmem:[%s5 + $0x38] sm:$0xf]
  %v4438 = vld [vmem:[%s5 + $0x3c] sm:$0xf]
  %v4439 = vld [vmem:[%s5 + $0x40] sm:$0xf]
  %v4440 = vld [vmem:[%s5 + $0x44] sm:$0xf]
  %v4441 = vld [vmem:[%s5 + $0x48] sm:$0xf]
  %v4442 = vld [vmem:[%s5 + $0x4c] sm:$0xf]
  %v4443 = vld [vmem:[%s5 + $0x50] sm:$0xf]
  %v4444 = vld [vmem:[%s5 + $0x54] sm:$0xf]
  %v4445 = vld [vmem:[%s5 + $0x58] sm:$0xf]
  %v4446 = vld [vmem:[%s5 + $0x5c] sm:$0xf]
  %v4447 = vld [vmem:[%s5 + $0x60] sm:$0xf]
  %v4448 = vld [vmem:[%s5 + $0x64] sm:$0xf]
  %v4449 = vld [vmem:[%s5 + $0x68] sm:$0xf]
  %v4450 = vld [vmem:[%s5 + $0x6c] sm:$0xf]
  %v4451 = vld [vmem:[%s5 + $0x70] sm:$0xf]
  %v4452 = vld [vmem:[%s5 + $0x74] sm:$0xf]
  %v4453 = vld [vmem:[%s5 + $0x78] sm:$0xf]
  %v4454 = vld [vmem:[%s5 + $0x7c] sm:$0xf]
  %v4455 = vld [vmem:[%s5 + $0x80] sm:$0xf]
  %v4456 = vld [vmem:[%s5 + $0x84] sm:$0xf]
  %v4457 = vld [vmem:[%s5 + $0x88] sm:$0xf]
  %v4458 = vld [vmem:[%s5 + $0x8c] sm:$0xf]
  %v4459 = vld [vmem:[%s5 + $0x90] sm:$0xf]
  %v4460 = vld [vmem:[%s5 + $0x94] sm:$0xf]
  %v4461 = vld [vmem:[%s5 + $0x98] sm:$0xf]
  %v4462 = vld [vmem:[%s5 + $0x9c] sm:$0xf]
  %v4463 = vld [vmem:[%s5 + $0xa0] sm:$0xf]
  %v4464 = vld [vmem:[%s5 + $0xa4] sm:$0xf]
  %v4465 = vld [vmem:[%s5 + $0xa8] sm:$0xf]
  %v4466 = vld [vmem:[%s5 + $0xac] sm:$0xf]
  %v4467 = vld [vmem:[%s5 + $0xb0] sm:$0xf]
  %v4468 = vld [vmem:[%s5 + $0xb4] sm:$0xf]
  %v4469 = vld [vmem:[%s5 + $0xb8] sm:$0xf]
  %v4470 = vld [vmem:[%s5 + $0xbc] sm:$0xf]
  %v4471 = vld [vmem:[%s5 + $0xc0] sm:$0xf]
  %v4472 = vld [vmem:[%s5 + $0xc4] sm:$0xf]
  %v4473 = vld [vmem:[%s5 + $0xc8] sm:$0xf]
  %v4474 = vld [vmem:[%s5 + $0xcc] sm:$0xf]
  %v4475 = vld [vmem:[%s5 + $0xd0] sm:$0xf]
  %v4476 = vld [vmem:[%s5 + $0xd4] sm:$0xf]
  %v4477 = vld [vmem:[%s5 + $0xd8] sm:$0xf]
  %v4478 = vld [vmem:[%s5 + $0xdc] sm:$0xf]
  %v4479 = vld [vmem:[%s5 + $0xe0] sm:$0xf]
  %v4480 = vld [vmem:[%s5 + $0xe4] sm:$0xf]
  %v4481 = vld [vmem:[%s5 + $0xe8] sm:$0xf]
  %v4482 = vld [vmem:[%s5 + $0xec] sm:$0xf]
  %v4483 = vld [vmem:[%s5 + $0xf0] sm:$0xf]
  %v4484 = vld [vmem:[%s5 + $0xf4] sm:$0xf]
  %v4485 = vld [vmem:[%s5 + $0xf8] sm:$0xf]
  %v4486 = vld [vmem:[%s5 + $0xfc] sm:$0xf]
  %v4487 = vld [vmem:[%s6] sm:$0x1]
  %v4489 = vperm.slane %v4487, 0
  %v4495 = vunpack.c.l.b16 %v4081
  %v4496 = vunpack.c.h.b16 %v4081
  %v4497 = vunpack.c.l.b16 %v4082
  %v4498 = vunpack.c.h.b16 %v4082
  %v4499 = vunpack.c.l.b16 %v4085
  %v4500 = vunpack.c.h.b16 %v4085
  %v4501 = vunpack.c.l.b16 %v4086
  %v4502 = vunpack.c.h.b16 %v4086
  %v4503 = vpack.c.b16 %v4499, %v4495
  %v4504 = vpack.c.b16 %v4500, %v4496
  %v4505 = vpack.c.b16 %v4501, %v4497
  %v4506 = vpack.c.b16 %v4502, %v4498
  %v4575 = vunpack.c.l.b16 %v4423
  %v4576 = vunpack.c.l.b16 %v4424
  %v4577 = vunpack.c.l.b16 %v4425
  %v4578 = vunpack.c.l.b16 %v4426
  %v4579 = vunpack.c.l.b16 %v4427
  %v4580 = vunpack.c.l.b16 %v4428
  %v4581 = vunpack.c.l.b16 %v4429
  %v4582 = vunpack.c.l.b16 %v4430
  %v4583 = vunpack.c.l.b16 %v4431
  %v4584 = vunpack.c.l.b16 %v4432
  %v4585 = vunpack.c.l.b16 %v4433
  %v4586 = vunpack.c.l.b16 %v4434
  %v4587 = vunpack.c.l.b16 %v4435
  %v4588 = vunpack.c.l.b16 %v4436
  %v4589 = vunpack.c.l.b16 %v4437
  %v4590 = vunpack.c.l.b16 %v4438
  %v4591 = vunpack.c.l.b16 %v4439
  %v4592 = vunpack.c.l.b16 %v4440
  %v4593 = vunpack.c.l.b16 %v4441
  %v4594 = vunpack.c.l.b16 %v4442
  %v4595 = vunpack.c.l.b16 %v4443
  %v4596 = vunpack.c.l.b16 %v4444
  %v4597 = vunpack.c.l.b16 %v4445
  %v4598 = vunpack.c.l.b16 %v4446
  %v4599 = vunpack.c.l.b16 %v4447
  %v4600 = vunpack.c.l.b16 %v4448
  %v4601 = vunpack.c.l.b16 %v4449
  %v4602 = vunpack.c.l.b16 %v4450
  %v4603 = vunpack.c.l.b16 %v4451
  %v4604 = vunpack.c.l.b16 %v4452
  %v4605 = vunpack.c.l.b16 %v4453
  %v4606 = vunpack.c.l.b16 %v4454
  %v4607 = vunpack.c.l.b16 %v4455
  %v4608 = vunpack.c.l.b16 %v4456
  %v4609 = vunpack.c.l.b16 %v4457
  %v4610 = vunpack.c.l.b16 %v4458
  %v4611 = vunpack.c.l.b16 %v4459
  %v4612 = vunpack.c.l.b16 %v4460
  %v4613 = vunpack.c.l.b16 %v4461
  %v4614 = vunpack.c.l.b16 %v4462
  %v4615 = vunpack.c.l.b16 %v4463
  %v4616 = vunpack.c.l.b16 %v4464
  %v4617 = vunpack.c.l.b16 %v4465
  %v4618 = vunpack.c.l.b16 %v4466
  %v4619 = vunpack.c.l.b16 %v4467
  %v4620 = vunpack.c.l.b16 %v4468
  %v4621 = vunpack.c.l.b16 %v4469
  %v4622 = vunpack.c.l.b16 %v4470
  %v4623 = vunpack.c.l.b16 %v4471
  %v4624 = vunpack.c.l.b16 %v4472
  %v4625 = vunpack.c.l.b16 %v4473
  %v4626 = vunpack.c.l.b16 %v4474
  %v4627 = vunpack.c.l.b16 %v4475
  %v4628 = vunpack.c.l.b16 %v4476
  %v4629 = vunpack.c.l.b16 %v4477
  %v4630 = vunpack.c.l.b16 %v4478
  %v4631 = vunpack.c.l.b16 %v4479
  %v4632 = vunpack.c.l.b16 %v4480
  %v4633 = vunpack.c.l.b16 %v4481
  %v4634 = vunpack.c.l.b16 %v4482
  %v4635 = vunpack.c.l.b16 %v4483
  %v4636 = vunpack.c.l.b16 %v4484
  %v4637 = vunpack.c.l.b16 %v4485
  %v4638 = vunpack.c.l.b16 %v4486
  %v4639 = vpack.c.b16 %v4576, %v4575
  %v4640 = vpack.c.b16 %v4578, %v4577
  %v4641 = vpack.c.b16 %v4580, %v4579
  %v4642 = vpack.c.b16 %v4582, %v4581
  %v4643 = vpack.c.b16 %v4584, %v4583
  %v4644 = vpack.c.b16 %v4586, %v4585
  %v4645 = vpack.c.b16 %v4588, %v4587
  %v4646 = vpack.c.b16 %v4590, %v4589
  %v4647 = vpack.c.b16 %v4592, %v4591
  %v4648 = vpack.c.b16 %v4594, %v4593
  %v4649 = vpack.c.b16 %v4596, %v4595
  %v4650 = vpack.c.b16 %v4598, %v4597
  %v4651 = vpack.c.b16 %v4600, %v4599
  %v4652 = vpack.c.b16 %v4602, %v4601
  %v4653 = vpack.c.b16 %v4604, %v4603
  %v4654 = vpack.c.b16 %v4606, %v4605
  %v4655 = vpack.c.b16 %v4608, %v4607
  %v4656 = vpack.c.b16 %v4610, %v4609
  %v4657 = vpack.c.b16 %v4612, %v4611
  %v4658 = vpack.c.b16 %v4614, %v4613
  %v4659 = vpack.c.b16 %v4616, %v4615
  %v4660 = vpack.c.b16 %v4618, %v4617
  %v4661 = vpack.c.b16 %v4620, %v4619
  %v4662 = vpack.c.b16 %v4622, %v4621
  %v4663 = vpack.c.b16 %v4624, %v4623
  %v4664 = vpack.c.b16 %v4626, %v4625
  %v4665 = vpack.c.b16 %v4628, %v4627
  %v4666 = vpack.c.b16 %v4630, %v4629
  %v4667 = vpack.c.b16 %v4632, %v4631
  %v4668 = vpack.c.b16 %v4634, %v4633
  %v4669 = vpack.c.b16 %v4636, %v4635
  %v4670 = vpack.c.b16 %v4638, %v4637
  %4703 = vmatpush.bf16.msra.mxu0 %v4646
  %4704 = vmatpush.bf16.msra.mxu0 %v4645
  %4705 = vmatpush.bf16.msra.mxu0 %v4644
  %4706 = vmatpush.bf16.msra.mxu0 %v4643
  %4707 = vmatpush.bf16.msra.mxu0 %v4642
  %4708 = vmatpush.bf16.msra.mxu0 %v4641
  %4709 = vmatpush.bf16.msra.mxu0 %v4640
  %4710 = vmatpush.bf16.msra.mxu0 %v4639
  %4711 = vmatmul.bf16.gmra.mxu0 %v4503
  %v4712 = vpop.f32.mrf.mxu0
  %v4713 = vadd.f32 %v4489, %v4712
  %v4714 = vpop.f32.mrf.mxu0
  %v4715 = vadd.f32 %v4489, %v4714
  %4716 = vdwg.mxu0
  %4717 = vmatpush.bf16.msra.mxu0 %v4654
  %4718 = vmatpush.bf16.msra.mxu0 %v4653
  %4719 = vmatpush.bf16.msra.mxu0 %v4652
  %4720 = vmatpush.bf16.msra.mxu0 %v4651
  %4721 = vmatpush.bf16.msra.mxu0 %v4650
  %4722 = vmatpush.bf16.msra.mxu0 %v4649
  %4723 = vmatpush.bf16.msra.mxu0 %v4648
  %4724 = vmatpush.bf16.msra.mxu0 %v4647
  %4725 = vmatmul.bf16.gmra.mxu0 %v4504
  %v4726 = vpop.f32.mrf.mxu0
  %v4727 = vadd.f32 %v4713, %v4726
  %v4728 = vpop.f32.mrf.mxu0
  %v4729 = vadd.f32 %v4715, %v4728
  %4730 = vdwg.mxu0
  %4731 = vmatpush.bf16.msra.mxu0 %v4662
  %4732 = vmatpush.bf16.msra.mxu0 %v4661
  %4733 = vmatpush.bf16.msra.mxu0 %v4660
  %4734 = vmatpush.bf16.msra.mxu0 %v4659
  %4735 = vmatpush.bf16.msra.mxu0 %v4658
  %4736 = vmatpush.bf16.msra.mxu0 %v4657
  %4737 = vmatpush.bf16.msra.mxu0 %v4656
  %4738 = vmatpush.bf16.msra.mxu0 %v4655
  %4739 = vmatmul.bf16.gmra.mxu0 %v4505
  %v4740 = vpop.f32.mrf.mxu0
  %v4741 = vadd.f32 %v4727, %v4740
  %v4742 = vpop.f32.mrf.mxu0
  %v4743 = vadd.f32 %v4729, %v4742
  %4744 = vdwg.mxu0
  %4745 = vmatpush.bf16.msra.mxu0 %v4670
  %4746 = vmatpush.bf16.msra.mxu0 %v4669
  %4747 = vmatpush.bf16.msra.mxu0 %v4668
  %4748 = vmatpush.bf16.msra.mxu0 %v4667
  %4749 = vmatpush.bf16.msra.mxu0 %v4666
  %4750 = vmatpush.bf16.msra.mxu0 %v4665
  %4751 = vmatpush.bf16.msra.mxu0 %v4664
  %4752 = vmatpush.bf16.msra.mxu0 %v4663
  %4753 = vmatmul.bf16.gmra.mxu0 %v4506
  %v4754 = vpop.f32.mrf.mxu0
  %v4755 = vadd.f32 %v4741, %v4754
  %v4756 = vpop.f32.mrf.mxu0
  %v4757 = vadd.f32 %v4743, %v4756
  %4758 = vdwg.mxu0
  %4759 = vst [vmem:[%s7] sm:$0xff] %v4419
  %4760 = vst [vmem:[%s7 + $0x8] sm:$0xff] %v4421
  %4761 = vst [vmem:[%s8] sm:$0xff] %v4755
  %4762 = vst [vmem:[%s8 + $0x8] sm:$0xff] %v4757
  %v4763 = vlaneseq
  %v4764 = vand.u32 %v4763, 127
  %vm4765 = vcmp.lt.s32.totalorder %v4764, 15
  %v4766 = vsel %vm4765, %v4755, -3.4028235e+38
  %v4767 = vsel %vm4765, %v4757, -3.4028235e+38
  %4768 = vmax.xlane.f32.xlu0 %v4766
  %v4769 = vpop.xlane.xlu0 %4768
  %4770 = vmax.xlane.f32.xlu0 %v4767
  %v4771 = vpop.xlane.xlu0 %4770
  %v4772 = vsub.f32 %v4766, %v4769
  %v4773 = vsub.f32 %v4767, %v4771
  %v4774 = vmul.f32 %v4772, 1.442695
  %v4775 = vpow.pop %v4774
  %v4776 = vmul.f32 %v4773, 1.442695
  %v4777 = vpow.pop %v4776
  %4778 = vadd.xlane.f32.xlu0 %v4775
  %v4779 = vpop.xlane.xlu0 %4778
  %4780 = vadd.xlane.f32.xlu0 %v4777
  %v4781 = vpop.xlane.xlu0 %4780
  %v4782 = vlog2.pop %v4779
  %v4783 = vmul.f32 %v4782, 0.6931472
  %v4784 = vlog2.pop %v4781
  %v4785 = vmul.f32 %v4784, 0.6931472
  %v4786 = vadd.f32 %v4769, %v4783
  %v4787 = vadd.f32 %v4771, %v4785
  %v4788 = vsub.f32 %v4755, %v4786
  %v4789 = vsub.f32 %v4757, %v4787
  %4790 = vst [vmem:[%s9] sm:$0xff] %v4788
  %4791 = vst [vmem:[%s9 + $0x8] sm:$0xff] %v4789
  // Predicated region
  $region30: #{bcq_encoder_forward.7} parent=0 // pred_check
    _
  $region31: #{bcq_encoder_forward.7} parent=0 // pred_check_branch
    %4793 = sbr.rel (0) target = $region33
  $region32: #{bcq_encoder_forward.7} parent=0 // pred_region
    _
  $region33: #{bcq_encoder_forward.7} parent=0 // pred_fallthru
    _
  // Predicated region
  $region34: #{bcq_encoder_forward.7} parent=0 // pred_check
    _
  $region35: #{bcq_encoder_forward.7} parent=0 // pred_check_branch
    %4795 = sbr.rel (0) target = $region37
  $region36: #{bcq_encoder_forward.7} parent=0 // pred_region
    _
  $region37: #{bcq_encoder_forward.7} parent=0 // pred_fallthru
    _
  // Predicated region
  $region38: #{bcq_encoder_forward.7} parent=0 // pred_check
    _
  $region39: #{bcq_encoder_forward.7} parent=0 // pred_check_branch
    %4797 = sbr.rel (0) target = $region41
  $region40: #{bcq_encoder_forward.7} parent=0 // pred_region
    _
  $region41: #{bcq_encoder_forward.7} parent=0 // pred_fallthru
    _
  // Predicated region
  $region42: #{bcq_encoder_forward.7} parent=0 // pred_check
    _
  $region43: #{bcq_encoder_forward.7} parent=0 // pred_check_branch
    %4799 = sbr.rel (0) target = $region45
  $region44: #{bcq_encoder_forward.7} parent=0 // pred_region
    _
  $region45: #{bcq_encoder_forward.7} parent=0 // pred_fallthru
    _
  // Predicated region
  $region46: #{bcq_encoder_forward.7} parent=0 // pred_check
    _
  $region47: #{bcq_encoder_forward.7} parent=0 // pred_check_branch
    %4801 = sbr.rel (0) target = $region49
  $region48: #{bcq_encoder_forward.7} parent=0 // pred_region
    _
  $region49: #{bcq_encoder_forward.7} parent=0 // pred_fallthru
    _
  // Predicated region
  $region50: #{bcq_encoder_forward.7} parent=0 // pred_check
    _
  $region51: #{bcq_encoder_forward.7} parent=0 // pred_check_branch
    %4803 = sbr.rel (0) target = $region53
  $region52: #{bcq_encoder_forward.7} parent=0 // pred_region
    _
  $region53: #{bcq_encoder_forward.7} parent=0 // pred_fallthru
    _

</llo_original>
